<compile_context>
chip_gen: v7x
topology: tpu7x:2x2x1
jax: 0.10.0
libtpu: 0.0.40
codegen_flags: <defaults>
</compile_context>

<pallas_src>
import functools

import jax
import jax.numpy as jnp
from jax.experimental import pallas as pl
from jax.experimental.pallas import tpu as pltpu


# ---------------------------------------------------------------------------
# Fused kernel: projection + Z/sigmoid + spatial-attention gate + bmm + add
# ---------------------------------------------------------------------------
def _token_fuser_kernel(u_ref, z_ref, wpt_ref, bp_ref, wzt_ref, bz_ref, cp_ref,
                        out_ref, uproj_ref, zhat_ref, mhat_ref, *,
                        matmul_dtype):
    # u_ref / z_ref : (bt, S, C) VMEM blocks (bt batches per grid step)
    # wpt_ref       : (S, S)  projection.weight^T
    # bp_ref        : (1, S)  projection.bias
    # wzt_ref       : (C, S)  Z.weight^T
    # bz_ref        : (1, S)  Z.bias
    # cp_ref        : SMEM (8,) = [conv_w0, conv_w1, conv_b,
    #                              bn_gamma, bn_beta, bn_mean, bn_var, bn_eps]
    # uproj_ref     : (bt, S, C) VMEM scratch
    # zhat_ref      : (bt, S, S) VMEM scratch
    # mhat_ref      : (bt, C, S) VMEM scratch (PyTorch m_hat layout)
    bt, S, C = u_ref.shape
    f32 = jnp.float32

    def mm(a, b):
        if matmul_dtype is not None:
            a = a.astype(matmul_dtype)
            b = b.astype(matmul_dtype)
        return jnp.dot(a, b, preferred_element_type=f32)

    # ---- projection: Linear(S, S) on the raw view u.view(B, C, S) ----------
    # (bt, S, C) row-major == (bt*C, S) row-major (PyTorch .view semantics).
    # For S == C these reshapes are pure leading-dim splits/merges.
    u_view = u_ref[...].reshape(bt * C, S)                     # batch-folded M
    y = mm(u_view, wpt_ref[...]) + bp_ref[...]                 # (bt*C, S)
    uproj_ref[...] = y.reshape(bt, S, C).astype(uproj_ref.dtype)

    # ---- z_hat = sigmoid(Linear(C, S)(z_line)), batch-folded M -------------
    zflat = z_ref[...].reshape(bt * S, C)
    zh = jax.nn.sigmoid(mm(zflat, wzt_ref[...]) + bz_ref[...])  # (bt*S, S)
    zhat_ref[...] = zh.reshape(bt, S, S).astype(zhat_ref.dtype)

    # ---- SpatialAttention gate m(b, l), per batch (bounded vreg pressure) ---
    w0, w1, cb = cp_ref[0], cp_ref[1], cp_ref[2]
    gamma, beta = cp_ref[3], cp_ref[4]
    rmean, rvar, eps = cp_ref[5], cp_ref[6], cp_ref[7]
    bn_scale = gamma * jax.lax.rsqrt(rvar + eps)
    for b in range(bt):                       # bt is static -> unrolled
        zb = z_ref[b].astype(f32)                              # (S, C)
        zmax = jnp.max(zb, axis=-1, keepdims=True)             # (S, 1)
        zavg = jnp.mean(zb, axis=-1, keepdims=True)            # (S, 1)
        fmap = w0 * zmax + w1 * zavg + cb                      # Conv1d(2,1,k=1)
        bn = (fmap - rmean) * bn_scale + beta                  # BatchNorm1d (eval)
        m = jax.nn.sigmoid(jnp.maximum(bn, 0.0))               # sigmoid(relu(bn))
        mhat_ref[b] = (zb * m).T                               # (C, S) == m_hat[b]

    # ---- per-batch bmm + m_line add, lane-dense (S, C) stores --------------
    # The XLU transposes above feed only the final adds, so they interleave
    # with the MXU pushes here.
    for b in range(bt):
        u_line_b = mm(zhat_ref[b], uproj_ref[b])               # (S, C), f32 acc
        m_line_b = mhat_ref[b].reshape(S, C)                   # raw .reshape(B,S,C)
        out_ref[b] = (u_line_b + m_line_b).astype(out_ref.dtype)


# ---------------------------------------------------------------------------
# One-time parameter prep (do NOT pay wp.T / bp.reshape per forward call)
# ---------------------------------------------------------------------------
def prepare_token_fuser_params(wp, bp, wz, bz, conv_w, conv_b,
                               bn_gamma=1.0, bn_beta=0.0,
                               bn_mean=0.0, bn_var=1.0, bn_eps=1e-5):
    S = wp.shape[0]
    conv_bn = jnp.asarray(
        [conv_w[0], conv_w[1], conv_b[0],
         bn_gamma, bn_beta, bn_mean, bn_var, bn_eps], dtype=jnp.float32)
    return (jnp.asarray(wp).T,                 # (S, S)  projection.weight^T
            jnp.asarray(bp).reshape(1, S),     # (1, S)
            jnp.asarray(wz).T,                 # (C, S)  Z.weight^T
            jnp.asarray(bz).reshape(1, S),     # (1, S)
            conv_bn)                           # (8,) SMEM scalars


def _default_batch_block(B):
    # v5e/v6e have 1 TensorCore -> fold the whole batch into one grid step.
    # v7x has 2 TensorCores -> keep >= 2 grid steps so both get work.
    try:
        kind = jax.local_devices()[0].device_kind.lower()
    except Exception:
        kind = ""
    multi_tc = ("v7" in kind) or ("7x" in kind)
    target = max(1, B // 2) if multi_tc else B
    for d in range(min(B, target), 0, -1):
        if B % d == 0:
            return d
    return 1


# ---------------------------------------------------------------------------
# Wrapper
# ---------------------------------------------------------------------------
def token_fuser_forward(u, z_line, params, *, batch_block=None,
                        matmul_dtype=None):
    B, S, C = u.shape
    wpt, bp2, wzt, bz2, conv_bn = params
    bt = batch_block if batch_block is not None else _default_batch_block(B)
    assert B % bt == 0, "B must be divisible by batch_block"

    acc_dtype = jnp.float32 if matmul_dtype is None else matmul_dtype
    kernel = functools.partial(_token_fuser_kernel, matmul_dtype=matmul_dtype)

    # Advisory cost hint so XLA can overlap the custom call with neighbors.
    flops = 6 * B * S * S * C                      # projection + Z + bmm
    transcendentals = B * (S * S + 2 * S)          # sigmoids (z_hat + gate)
    bytes_accessed = 4 * (3 * B * S * C + S * S + C * S + 2 * S + 8)

    grid_spec = pltpu.PrefetchScalarGridSpec(
        num_scalar_prefetch=0,
        grid=(B // bt,),
        in_specs=[
            pl.BlockSpec((bt, S, C), lambda i: (i, 0, 0)),       # u
            pl.BlockSpec((bt, S, C), lambda i: (i, 0, 0)),       # z_line
            pl.BlockSpec((S, S), lambda i: (0, 0)),              # projection.w^T
            pl.BlockSpec((1, S), lambda i: (0, 0)),              # projection.bias
            pl.BlockSpec((C, S), lambda i: (0, 0)),              # Z.weight^T
            pl.BlockSpec((1, S), lambda i: (0, 0)),              # Z.bias
            pl.BlockSpec(memory_space=pltpu.MemorySpace.SMEM),   # conv/bn scalars
        ],
        out_specs=pl.BlockSpec((bt, S, C), lambda i: (i, 0, 0)),
        scratch_shapes=[
            pltpu.VMEM((bt, S, C), acc_dtype),     # u_proj
            pltpu.VMEM((bt, S, S), acc_dtype),     # z_hat
            pltpu.VMEM((bt, C, S), jnp.float32),   # m_hat (PyTorch layout)
        ],
    )

    return pl.pallas_call(
        kernel,
        out_shape=jax.ShapeDtypeStruct((B, S, C), u.dtype),
        grid_spec=grid_spec,
        compiler_params=pltpu.CompilerParams(
            dimension_semantics=("parallel",)),
        cost_estimate=pl.CostEstimate(
            flops=flops,
            transcendentals=transcendentals,
            bytes_accessed=bytes_accessed),
    )(u, z_line, wpt, bp2, wzt, bz2, conv_bn)


# ---------------------------------------------------------------------------
# Pure-JAX reference (mirrors the PyTorch forward exactly) for verification
# ---------------------------------------------------------------------------
def token_fuser_reference(u, z_line, wp, bp, wz, bz, conv_bn):
    B, S, C = u.shape
    hp = jax.lax.Precision.HIGHEST
    w0, w1, cb, gamma, beta, rmean, rvar, eps = [conv_bn[i] for i in range(8)]
    u_proj = (jnp.matmul(u.reshape(B, C, S), wp.T, precision=hp) + bp).reshape(B, S, C)
    z_hat = jax.nn.sigmoid(jnp.matmul(z_line, wz.T, precision=hp) + bz)   # (B, S, S)
    u_line = jnp.einsum('bij,bjc->bic', z_hat, u_proj, precision=hp)      # (B, S, C)
    x = jnp.transpose(z_line, (0, 2, 1))                                  # (B, C, S)
    mx = jnp.max(x, axis=1, keepdims=True)
    av = jnp.mean(x, axis=1, keepdims=True)
    fmap = w0 * mx + w1 * av + cb
    bn = (fmap - rmean) * gamma / jnp.sqrt(rvar + eps) + beta
    m = jax.nn.sigmoid(jnp.maximum(bn, 0.0))
    m_hat = x * m                                                         # (B, C, S)
    m_line = m_hat.reshape(B, S, C)
    return u_line + m_line


if __name__ == "__main__":
    # Lane-dense small shapes (C = 128 fills one vreg lane dim; S == C keeps
    # the raw .view reshapes on the verified in-kernel path).
    B, S, C = 4, 128, 128

    key = jax.random.PRNGKey(0)
    k_u, k_z, k_wp, k_bp, k_wz, k_bz, k_cw, k_cb = jax.random.split(key, 8)

    u = jax.random.normal(k_u, (B, S, C), dtype=jnp.float32)
    z_line = jax.random.normal(k_z, (B, S, C), dtype=jnp.float32)

    # Deterministic parameter init (shapes match the PyTorch module).
    wp = 0.05 * jax.random.normal(k_wp, (S, S), dtype=jnp.float32)   # projection.weight
    bp = 0.05 * jax.random.normal(k_bp, (S,), dtype=jnp.float32)     # projection.bias
    wz = 0.05 * jax.random.normal(k_wz, (S, C), dtype=jnp.float32)   # Z.weight
    bz = 0.05 * jax.random.normal(k_bz, (S,), dtype=jnp.float32)     # Z.bias
    conv_w = 0.1 * jax.random.normal(k_cw, (2,), dtype=jnp.float32)  # Conv1d(2,1,1).weight
    conv_b = 0.1 * jax.random.normal(k_cb, (1,), dtype=jnp.float32)  # Conv1d(2,1,1).bias

    # One-time weight prep (transposes / reshapes hoisted out of forward).
    params = prepare_token_fuser_params(wp, bp, wz, bz, conv_w, conv_b)
    conv_bn = params[-1]

    # f32 MXU operands by default (strict check); pass matmul_dtype=jnp.bfloat16
    # in production on v6e/v7x for ~2-4x MXU time with f32 accumulate.
    out = token_fuser_forward(u, z_line, params)
    out = jax.block_until_ready(out)

    ref = token_fuser_reference(u, z_line, wp, bp, wz, bz, conv_bn)
    assert out.shape == (B, S, C)
    max_err = float(jnp.max(jnp.abs(out - ref)))
    assert jnp.allclose(out, ref, rtol=1e-3, atol=1e-3), (
        f"mismatch vs reference (max abs err {max_err})")

    print("KERNEL_OK")
</pallas_src>

<mosaic_0001>
module attributes {stable_mosaic.version = 11 : i64} {
  func.func @_token_fuser_kernel(%arg0: i32, %arg1: memref<4x128x128xf32, #tpu.memory_space<vmem>>, %arg2: memref<4x128x128xf32, #tpu.memory_space<vmem>>, %arg3: memref<128x128xf32, #tpu.memory_space<vmem>>, %arg4: memref<1x128xf32, #tpu.memory_space<vmem>>, %arg5: memref<128x128xf32, #tpu.memory_space<vmem>>, %arg6: memref<1x128xf32, #tpu.memory_space<vmem>>, %arg7: memref<8xf32, #tpu.memory_space<smem>>, %arg8: memref<4x128x128xf32, #tpu.memory_space<vmem>>, %arg9: memref<4x128x128xf32, #tpu.memory_space<vmem>>, %arg10: memref<4x128x128xf32, #tpu.memory_space<vmem>>, %arg11: memref<4x128x128xf32, #tpu.memory_space<vmem>>) attributes {dimension_semantics = [#tpu.dimension_semantics<parallel>], iteration_bounds = array<i64: 1>, scalar_prefetch = 0 : i64, scratch_operands = 3 : i64, tpu.core_type = #tpu.core_type<tc>, window_params = [{transform_indices = @transform_0, window_bounds = array<i64: 4, 128, 128>}, {transform_indices = @transform_1, window_bounds = array<i64: 4, 128, 128>}, {pipeline_mode = #tpu.pipeline_mode<synchronous>, transform_indices = @transform_2, window_bounds = array<i64: 128, 128>}, {pipeline_mode = #tpu.pipeline_mode<synchronous>, transform_indices = @transform_3, window_bounds = array<i64: 1, 128>}, {pipeline_mode = #tpu.pipeline_mode<synchronous>, transform_indices = @transform_4, window_bounds = array<i64: 128, 128>}, {pipeline_mode = #tpu.pipeline_mode<synchronous>, transform_indices = @transform_5, window_bounds = array<i64: 1, 128>}, {transform_indices = @transform_6, window_bounds = array<i64: 8>}, {transform_indices = @transform_7, window_bounds = array<i64: 4, 128, 128>}]} {
    %c0 = arith.constant 0 : index
    %c0_0 = arith.constant 0 : index
    %c0_1 = arith.constant 0 : index
    %0 = vector.load %arg1[%c0, %c0_0, %c0_1] : memref<4x128x128xf32, #tpu.memory_space<vmem>>, vector<4x128x128xf32>
    %1 = vector.shape_cast %0 : vector<4x128x128xf32> to vector<512x128xf32>
    %c0_2 = arith.constant 0 : index
    %c0_3 = arith.constant 0 : index
    %2 = vector.load %arg3[%c0_2, %c0_3] : memref<128x128xf32, #tpu.memory_space<vmem>>, vector<128x128xf32>
    %cst = arith.constant dense<0.000000e+00> : vector<512x128xf32>
    %3 = tpu.matmul %1, %2, %cst {dimension_numbers = #tpu.dot_dimension_numbers<[1], [0], [0], [1], [0, 0, 1, 1], [], []>} : vector<512x128xf32>, vector<128x128xf32>, vector<512x128xf32> -> vector<512x128xf32>
    %c0_4 = arith.constant 0 : index
    %c0_5 = arith.constant 0 : index
    %4 = vector.load %arg4[%c0_4, %c0_5] : memref<1x128xf32, #tpu.memory_space<vmem>>, vector<1x128xf32>
    %5 = vector.broadcast %4 : vector<1x128xf32> to vector<512x128xf32>
    %6 = arith.addf %3, %5 : vector<512x128xf32>
    %7 = vector.shape_cast %6 : vector<512x128xf32> to vector<4x128x128xf32>
    %c0_6 = arith.constant 0 : index
    %c0_7 = arith.constant 0 : index
    %c0_8 = arith.constant 0 : index
    %8 = vector.load %arg9[%c0_6, %c0_7, %c0_8] : memref<4x128x128xf32, #tpu.memory_space<vmem>>, vector<4x128x128xf32>
    tpu.vector_store %arg9[%c0_6, %c0_7, %c0_8], %7 {strides = array<i32>} : memref<4x128x128xf32, #tpu.memory_space<vmem>>, vector<4x128x128xf32>,
    %c0_9 = arith.constant 0 : index
    %c0_10 = arith.constant 0 : index
    %c0_11 = arith.constant 0 : index
    %9 = vector.load %arg2[%c0_9, %c0_10, %c0_11] : memref<4x128x128xf32, #tpu.memory_space<vmem>>, vector<4x128x128xf32>
    %10 = vector.shape_cast %9 : vector<4x128x128xf32> to vector<512x128xf32>
    %c0_12 = arith.constant 0 : index
    %c0_13 = arith.constant 0 : index
    %11 = vector.load %arg5[%c0_12, %c0_13] : memref<128x128xf32, #tpu.memory_space<vmem>>, vector<128x128xf32>
    %cst_14 = arith.constant dense<0.000000e+00> : vector<512x128xf32>
    %12 = tpu.matmul %10, %11, %cst_14 {dimension_numbers = #tpu.dot_dimension_numbers<[1], [0], [0], [1], [0, 0, 1, 1], [], []>} : vector<512x128xf32>, vector<128x128xf32>, vector<512x128xf32> -> vector<512x128xf32>
    %c0_15 = arith.constant 0 : index
    %c0_16 = arith.constant 0 : index
    %13 = vector.load %arg6[%c0_15, %c0_16] : memref<1x128xf32, #tpu.memory_space<vmem>>, vector<1x128xf32>
    %14 = vector.broadcast %13 : vector<1x128xf32> to vector<512x128xf32>
    %15 = arith.addf %12, %14 : vector<512x128xf32>
    %16 = arith.negf %15 : vector<512x128xf32>
    %17 = math.exp %16 : vector<512x128xf32>
    %cst_17 = arith.constant 1.000000e+00 : f32
    %18 = vector.broadcast %cst_17 : f32 to vector<512x128xf32>
    %19 = arith.addf %18, %17 : vector<512x128xf32>
    %20 = arith.divf %18, %19 : vector<512x128xf32>
    %21 = vector.shape_cast %20 : vector<512x128xf32> to vector<4x128x128xf32>
    %c0_18 = arith.constant 0 : index
    %c0_19 = arith.constant 0 : index
    %c0_20 = arith.constant 0 : index
    %22 = vector.load %arg10[%c0_18, %c0_19, %c0_20] : memref<4x128x128xf32, #tpu.memory_space<vmem>>, vector<4x128x128xf32>
    tpu.vector_store %arg10[%c0_18, %c0_19, %c0_20], %21 {strides = array<i32>} : memref<4x128x128xf32, #tpu.memory_space<vmem>>, vector<4x128x128xf32>,
    %c0_21 = arith.constant 0 : index
    %23 = memref.load %arg7[%c0_21] : memref<8xf32, #tpu.memory_space<smem>>
    %c1 = arith.constant 1 : index
    %24 = memref.load %arg7[%c1] : memref<8xf32, #tpu.memory_space<smem>>
    %c2 = arith.constant 2 : index
    %25 = memref.load %arg7[%c2] : memref<8xf32, #tpu.memory_space<smem>>
    %c3 = arith.constant 3 : index
    %26 = memref.load %arg7[%c3] : memref<8xf32, #tpu.memory_space<smem>>
    %c4 = arith.constant 4 : index
    %27 = memref.load %arg7[%c4] : memref<8xf32, #tpu.memory_space<smem>>
    %c5 = arith.constant 5 : index
    %28 = memref.load %arg7[%c5] : memref<8xf32, #tpu.memory_space<smem>>
    %c6 = arith.constant 6 : index
    %29 = memref.load %arg7[%c6] : memref<8xf32, #tpu.memory_space<smem>>
    %c7 = arith.constant 7 : index
    %30 = memref.load %arg7[%c7] : memref<8xf32, #tpu.memory_space<smem>>
    %31 = arith.addf %29, %30 : f32
    %32 = math.rsqrt %31 : f32
    %33 = arith.mulf %26, %32 : f32
    %c0_22 = arith.constant 0 : index
    %c0_23 = arith.constant 0 : index
    %c0_24 = arith.constant 0 : index
    %34 = vector.load %arg2[%c0_22, %c0_23, %c0_24] : memref<4x128x128xf32, #tpu.memory_space<vmem>>, vector<1x128x128xf32>
    %35 = vector.shape_cast %34 : vector<1x128x128xf32> to vector<128x128xf32>
    %cst_25 = arith.constant dense<0xFF800000> : vector<128xf32>
    %36 = vector.multi_reduction <maximumf>, %35, %cst_25 [1] : vector<128x128xf32> to vector<128xf32>
    %37 = vector.shape_cast %36 : vector<128xf32> to vector<128x1xf32>
    %cst_26 = arith.constant dense<0.000000e+00> : vector<128xf32>
    %38 = vector.multi_reduction <add>, %35, %cst_26 [1] : vector<128x128xf32> to vector<128xf32>
    %39 = vector.shape_cast %38 : vector<128xf32> to vector<128x1xf32>
    %cst_27 = arith.constant 1.280000e+02 : f32
    %40 = vector.broadcast %cst_27 : f32 to vector<128x1xf32>
    %41 = arith.divf %39, %40 : vector<128x1xf32>
    %42 = vector.broadcast %23 : f32 to vector<128x1xf32>
    %43 = arith.mulf %42, %37 : vector<128x1xf32>
    %44 = vector.broadcast %24 : f32 to vector<128x1xf32>
    %45 = arith.mulf %44, %41 : vector<128x1xf32>
    %46 = arith.addf %43, %45 : vector<128x1xf32>
    %47 = vector.broadcast %25 : f32 to vector<128x1xf32>
    %48 = arith.addf %46, %47 : vector<128x1xf32>
    %49 = vector.broadcast %28 : f32 to vector<128x1xf32>
    %50 = arith.subf %48, %49 : vector<128x1xf32>
    %51 = vector.broadcast %33 : f32 to vector<128x1xf32>
    %52 = arith.mulf %50, %51 : vector<128x1xf32>
    %53 = vector.broadcast %27 : f32 to vector<128x1xf32>
    %54 = arith.addf %52, %53 : vector<128x1xf32>
    %cst_28 = arith.constant 0.000000e+00 : f32
    %55 = vector.broadcast %cst_28 : f32 to vector<128x1xf32>
    %56 = arith.maximumf %54, %55 : vector<128x1xf32>
    %57 = arith.negf %56 : vector<128x1xf32>
    %58 = math.exp %57 : vector<128x1xf32>
    %cst_29 = arith.constant 1.000000e+00 : f32
    %59 = vector.broadcast %cst_29 : f32 to vector<128x1xf32>
    %60 = arith.addf %59, %58 : vector<128x1xf32>
    %61 = arith.divf %59, %60 : vector<128x1xf32>
    %62 = vector.broadcast %61 : vector<128x1xf32> to vector<128x128xf32>
    %63 = arith.mulf %35, %62 : vector<128x128xf32>
    %64 = tpu.transpose %63, [1, 0] : vector<128x128xf32> -> vector<128x128xf32>
    %c0_30 = arith.constant 0 : index
    %c0_31 = arith.constant 0 : index
    %c0_32 = arith.constant 0 : index
    %65 = vector.load %arg11[%c0_30, %c0_31, %c0_32] : memref<4x128x128xf32, #tpu.memory_space<vmem>>, vector<1x128x128xf32>
    %66 = vector.shape_cast %65 : vector<1x128x128xf32> to vector<128x128xf32>
    %67 = vector.shape_cast %64 : vector<128x128xf32> to vector<1x128x128xf32>
    tpu.vector_store %arg11[%c0_30, %c0_31, %c0_32], %67 {strides = array<i32>} : memref<4x128x128xf32, #tpu.memory_space<vmem>>, vector<1x128x128xf32>,
    %c1_33 = arith.constant 1 : index
    %c0_34 = arith.constant 0 : index
    %c0_35 = arith.constant 0 : index
    %68 = vector.load %arg2[%c1_33, %c0_34, %c0_35] : memref<4x128x128xf32, #tpu.memory_space<vmem>>, vector<1x128x128xf32>
    %69 = vector.shape_cast %68 : vector<1x128x128xf32> to vector<128x128xf32>
    %cst_36 = arith.constant dense<0xFF800000> : vector<128xf32>
    %70 = vector.multi_reduction <maximumf>, %69, %cst_36 [1] : vector<128x128xf32> to vector<128xf32>
    %71 = vector.shape_cast %70 : vector<128xf32> to vector<128x1xf32>
    %cst_37 = arith.constant dense<0.000000e+00> : vector<128xf32>
    %72 = vector.multi_reduction <add>, %69, %cst_37 [1] : vector<128x128xf32> to vector<128xf32>
    %73 = vector.shape_cast %72 : vector<128xf32> to vector<128x1xf32>
    %cst_38 = arith.constant 1.280000e+02 : f32
    %74 = vector.broadcast %cst_38 : f32 to vector<128x1xf32>
    %75 = arith.divf %73, %74 : vector<128x1xf32>
    %76 = vector.broadcast %23 : f32 to vector<128x1xf32>
    %77 = arith.mulf %76, %71 : vector<128x1xf32>
    %78 = vector.broadcast %24 : f32 to vector<128x1xf32>
    %79 = arith.mulf %78, %75 : vector<128x1xf32>
    %80 = arith.addf %77, %79 : vector<128x1xf32>
    %81 = vector.broadcast %25 : f32 to vector<128x1xf32>
    %82 = arith.addf %80, %81 : vector<128x1xf32>
    %83 = vector.broadcast %28 : f32 to vector<128x1xf32>
    %84 = arith.subf %82, %83 : vector<128x1xf32>
    %85 = vector.broadcast %33 : f32 to vector<128x1xf32>
    %86 = arith.mulf %84, %85 : vector<128x1xf32>
    %87 = vector.broadcast %27 : f32 to vector<128x1xf32>
    %88 = arith.addf %86, %87 : vector<128x1xf32>
    %cst_39 = arith.constant 0.000000e+00 : f32
    %89 = vector.broadcast %cst_39 : f32 to vector<128x1xf32>
    %90 = arith.maximumf %88, %89 : vector<128x1xf32>
    %91 = arith.negf %90 : vector<128x1xf32>
    %92 = math.exp %91 : vector<128x1xf32>
    %cst_40 = arith.constant 1.000000e+00 : f32
    %93 = vector.broadcast %cst_40 : f32 to vector<128x1xf32>
    %94 = arith.addf %93, %92 : vector<128x1xf32>
    %95 = arith.divf %93, %94 : vector<128x1xf32>
    %96 = vector.broadcast %95 : vector<128x1xf32> to vector<128x128xf32>
    %97 = arith.mulf %69, %96 : vector<128x128xf32>
    %98 = tpu.transpose %97, [1, 0] : vector<128x128xf32> -> vector<128x128xf32>
    %c1_41 = arith.constant 1 : index
    %c0_42 = arith.constant 0 : index
    %c0_43 = arith.constant 0 : index
    %99 = vector.load %arg11[%c1_41, %c0_42, %c0_43] : memref<4x128x128xf32, #tpu.memory_space<vmem>>, vector<1x128x128xf32>
    %100 = vector.shape_cast %99 : vector<1x128x128xf32> to vector<128x128xf32>
    %101 = vector.shape_cast %98 : vector<128x128xf32> to vector<1x128x128xf32>
    tpu.vector_store %arg11[%c1_41, %c0_42, %c0_43], %101 {strides = array<i32>} : memref<4x128x128xf32, #tpu.memory_space<vmem>>, vector<1x128x128xf32>,
    %c2_44 = arith.constant 2 : index
    %c0_45 = arith.constant 0 : index
    %c0_46 = arith.constant 0 : index
    %102 = vector.load %arg2[%c2_44, %c0_45, %c0_46] : memref<4x128x128xf32, #tpu.memory_space<vmem>>, vector<1x128x128xf32>
    %103 = vector.shape_cast %102 : vector<1x128x128xf32> to vector<128x128xf32>
    %cst_47 = arith.constant dense<0xFF800000> : vector<128xf32>
    %104 = vector.multi_reduction <maximumf>, %103, %cst_47 [1] : vector<128x128xf32> to vector<128xf32>
    %105 = vector.shape_cast %104 : vector<128xf32> to vector<128x1xf32>
    %cst_48 = arith.constant dense<0.000000e+00> : vector<128xf32>
    %106 = vector.multi_reduction <add>, %103, %cst_48 [1] : vector<128x128xf32> to vector<128xf32>
    %107 = vector.shape_cast %106 : vector<128xf32> to vector<128x1xf32>
    %cst_49 = arith.constant 1.280000e+02 : f32
    %108 = vector.broadcast %cst_49 : f32 to vector<128x1xf32>
    %109 = arith.divf %107, %108 : vector<128x1xf32>
    %110 = vector.broadcast %23 : f32 to vector<128x1xf32>
    %111 = arith.mulf %110, %105 : vector<128x1xf32>
    %112 = vector.broadcast %24 : f32 to vector<128x1xf32>
    %113 = arith.mulf %112, %109 : vector<128x1xf32>
    %114 = arith.addf %111, %113 : vector<128x1xf32>
    %115 = vector.broadcast %25 : f32 to vector<128x1xf32>
    %116 = arith.addf %114, %115 : vector<128x1xf32>
    %117 = vector.broadcast %28 : f32 to vector<128x1xf32>
    %118 = arith.subf %116, %117 : vector<128x1xf32>
    %119 = vector.broadcast %33 : f32 to vector<128x1xf32>
    %120 = arith.mulf %118, %119 : vector<128x1xf32>
    %121 = vector.broadcast %27 : f32 to vector<128x1xf32>
    %122 = arith.addf %120, %121 : vector<128x1xf32>
    %cst_50 = arith.constant 0.000000e+00 : f32
    %123 = vector.broadcast %cst_50 : f32 to vector<128x1xf32>
    %124 = arith.maximumf %122, %123 : vector<128x1xf32>
    %125 = arith.negf %124 : vector<128x1xf32>
    %126 = math.exp %125 : vector<128x1xf32>
    %cst_51 = arith.constant 1.000000e+00 : f32
    %127 = vector.broadcast %cst_51 : f32 to vector<128x1xf32>
    %128 = arith.addf %127, %126 : vector<128x1xf32>
    %129 = arith.divf %127, %128 : vector<128x1xf32>
    %130 = vector.broadcast %129 : vector<128x1xf32> to vector<128x128xf32>
    %131 = arith.mulf %103, %130 : vector<128x128xf32>
    %132 = tpu.transpose %131, [1, 0] : vector<128x128xf32> -> vector<128x128xf32>
    %c2_52 = arith.constant 2 : index
    %c0_53 = arith.constant 0 : index
    %c0_54 = arith.constant 0 : index
    %133 = vector.load %arg11[%c2_52, %c0_53, %c0_54] : memref<4x128x128xf32, #tpu.memory_space<vmem>>, vector<1x128x128xf32>
    %134 = vector.shape_cast %133 : vector<1x128x128xf32> to vector<128x128xf32>
    %135 = vector.shape_cast %132 : vector<128x128xf32> to vector<1x128x128xf32>
    tpu.vector_store %arg11[%c2_52, %c0_53, %c0_54], %135 {strides = array<i32>} : memref<4x128x128xf32, #tpu.memory_space<vmem>>, vector<1x128x128xf32>,
    %c3_55 = arith.constant 3 : index
    %c0_56 = arith.constant 0 : index
    %c0_57 = arith.constant 0 : index
    %136 = vector.load %arg2[%c3_55, %c0_56, %c0_57] : memref<4x128x128xf32, #tpu.memory_space<vmem>>, vector<1x128x128xf32>
    %137 = vector.shape_cast %136 : vector<1x128x128xf32> to vector<128x128xf32>
    %cst_58 = arith.constant dense<0xFF800000> : vector<128xf32>
    %138 = vector.multi_reduction <maximumf>, %137, %cst_58 [1] : vector<128x128xf32> to vector<128xf32>
    %139 = vector.shape_cast %138 : vector<128xf32> to vector<128x1xf32>
    %cst_59 = arith.constant dense<0.000000e+00> : vector<128xf32>
    %140 = vector.multi_reduction <add>, %137, %cst_59 [1] : vector<128x128xf32> to vector<128xf32>
    %141 = vector.shape_cast %140 : vector<128xf32> to vector<128x1xf32>
    %cst_60 = arith.constant 1.280000e+02 : f32
    %142 = vector.broadcast %cst_60 : f32 to vector<128x1xf32>
    %143 = arith.divf %141, %142 : vector<128x1xf32>
    %144 = vector.broadcast %23 : f32 to vector<128x1xf32>
    %145 = arith.mulf %144, %139 : vector<128x1xf32>
    %146 = vector.broadcast %24 : f32 to vector<128x1xf32>
    %147 = arith.mulf %146, %143 : vector<128x1xf32>
    %148 = arith.addf %145, %147 : vector<128x1xf32>
    %149 = vector.broadcast %25 : f32 to vector<128x1xf32>
    %150 = arith.addf %148, %149 : vector<128x1xf32>
    %151 = vector.broadcast %28 : f32 to vector<128x1xf32>
    %152 = arith.subf %150, %151 : vector<128x1xf32>
    %153 = vector.broadcast %33 : f32 to vector<128x1xf32>
    %154 = arith.mulf %152, %153 : vector<128x1xf32>
    %155 = vector.broadcast %27 : f32 to vector<128x1xf32>
    %156 = arith.addf %154, %155 : vector<128x1xf32>
    %cst_61 = arith.constant 0.000000e+00 : f32
    %157 = vector.broadcast %cst_61 : f32 to vector<128x1xf32>
    %158 = arith.maximumf %156, %157 : vector<128x1xf32>
    %159 = arith.negf %158 : vector<128x1xf32>
    %160 = math.exp %159 : vector<128x1xf32>
    %cst_62 = arith.constant 1.000000e+00 : f32
    %161 = vector.broadcast %cst_62 : f32 to vector<128x1xf32>
    %162 = arith.addf %161, %160 : vector<128x1xf32>
    %163 = arith.divf %161, %162 : vector<128x1xf32>
    %164 = vector.broadcast %163 : vector<128x1xf32> to vector<128x128xf32>
    %165 = arith.mulf %137, %164 : vector<128x128xf32>
    %166 = tpu.transpose %165, [1, 0] : vector<128x128xf32> -> vector<128x128xf32>
    %c3_63 = arith.constant 3 : index
    %c0_64 = arith.constant 0 : index
    %c0_65 = arith.constant 0 : index
    %167 = vector.load %arg11[%c3_63, %c0_64, %c0_65] : memref<4x128x128xf32, #tpu.memory_space<vmem>>, vector<1x128x128xf32>
    %168 = vector.shape_cast %167 : vector<1x128x128xf32> to vector<128x128xf32>
    %169 = vector.shape_cast %166 : vector<128x128xf32> to vector<1x128x128xf32>
    tpu.vector_store %arg11[%c3_63, %c0_64, %c0_65], %169 {strides = array<i32>} : memref<4x128x128xf32, #tpu.memory_space<vmem>>, vector<1x128x128xf32>,
    %c0_66 = arith.constant 0 : index
    %c0_67 = arith.constant 0 : index
    %c0_68 = arith.constant 0 : index
    %170 = vector.load %arg10[%c0_66, %c0_67, %c0_68] : memref<4x128x128xf32, #tpu.memory_space<vmem>>, vector<1x128x128xf32>
    %171 = vector.shape_cast %170 : vector<1x128x128xf32> to vector<128x128xf32>
    %c0_69 = arith.constant 0 : index
    %c0_70 = arith.constant 0 : index
    %c0_71 = arith.constant 0 : index
    %172 = vector.load %arg9[%c0_69, %c0_70, %c0_71] : memref<4x128x128xf32, #tpu.memory_space<vmem>>, vector<1x128x128xf32>
    %173 = vector.shape_cast %172 : vector<1x128x128xf32> to vector<128x128xf32>
    %cst_72 = arith.constant dense<0.000000e+00> : vector<128x128xf32>
    %174 = tpu.matmul %171, %173, %cst_72 {dimension_numbers = #tpu.dot_dimension_numbers<[1], [0], [0], [1], [0, 0, 1, 1], [], []>} : vector<128x128xf32>, vector<128x128xf32>, vector<128x128xf32> -> vector<128x128xf32>
    %c0_73 = arith.constant 0 : index
    %c0_74 = arith.constant 0 : index
    %c0_75 = arith.constant 0 : index
    %175 = vector.load %arg11[%c0_73, %c0_74, %c0_75] : memref<4x128x128xf32, #tpu.memory_space<vmem>>, vector<1x128x128xf32>
    %176 = vector.shape_cast %175 : vector<1x128x128xf32> to vector<128x128xf32>
    %177 = arith.addf %174, %176 : vector<128x128xf32>
    %c0_76 = arith.constant 0 : index
    %c0_77 = arith.constant 0 : index
    %c0_78 = arith.constant 0 : index
    %178 = vector.load %arg8[%c0_76, %c0_77, %c0_78] : memref<4x128x128xf32, #tpu.memory_space<vmem>>, vector<1x128x128xf32>
    %179 = vector.shape_cast %178 : vector<1x128x128xf32> to vector<128x128xf32>
    %180 = vector.shape_cast %177 : vector<128x128xf32> to vector<1x128x128xf32>
    tpu.vector_store %arg8[%c0_76, %c0_77, %c0_78], %180 {strides = array<i32>} : memref<4x128x128xf32, #tpu.memory_space<vmem>>, vector<1x128x128xf32>,
    %c1_79 = arith.constant 1 : index
    %c0_80 = arith.constant 0 : index
    %c0_81 = arith.constant 0 : index
    %181 = vector.load %arg10[%c1_79, %c0_80, %c0_81] : memref<4x128x128xf32, #tpu.memory_space<vmem>>, vector<1x128x128xf32>
    %182 = vector.shape_cast %181 : vector<1x128x128xf32> to vector<128x128xf32>
    %c1_82 = arith.constant 1 : index
    %c0_83 = arith.constant 0 : index
    %c0_84 = arith.constant 0 : index
    %183 = vector.load %arg9[%c1_82, %c0_83, %c0_84] : memref<4x128x128xf32, #tpu.memory_space<vmem>>, vector<1x128x128xf32>
    %184 = vector.shape_cast %183 : vector<1x128x128xf32> to vector<128x128xf32>
    %cst_85 = arith.constant dense<0.000000e+00> : vector<128x128xf32>
    %185 = tpu.matmul %182, %184, %cst_85 {dimension_numbers = #tpu.dot_dimension_numbers<[1], [0], [0], [1], [0, 0, 1, 1], [], []>} : vector<128x128xf32>, vector<128x128xf32>, vector<128x128xf32> -> vector<128x128xf32>
    %c1_86 = arith.constant 1 : index
    %c0_87 = arith.constant 0 : index
    %c0_88 = arith.constant 0 : index
    %186 = vector.load %arg11[%c1_86, %c0_87, %c0_88] : memref<4x128x128xf32, #tpu.memory_space<vmem>>, vector<1x128x128xf32>
    %187 = vector.shape_cast %186 : vector<1x128x128xf32> to vector<128x128xf32>
    %188 = arith.addf %185, %187 : vector<128x128xf32>
    %c1_89 = arith.constant 1 : index
    %c0_90 = arith.constant 0 : index
    %c0_91 = arith.constant 0 : index
    %189 = vector.load %arg8[%c1_89, %c0_90, %c0_91] : memref<4x128x128xf32, #tpu.memory_space<vmem>>, vector<1x128x128xf32>
    %190 = vector.shape_cast %189 : vector<1x128x128xf32> to vector<128x128xf32>
    %191 = vector.shape_cast %188 : vector<128x128xf32> to vector<1x128x128xf32>
    tpu.vector_store %arg8[%c1_89, %c0_90, %c0_91], %191 {strides = array<i32>} : memref<4x128x128xf32, #tpu.memory_space<vmem>>, vector<1x128x128xf32>,
    %c2_92 = arith.constant 2 : index
    %c0_93 = arith.constant 0 : index
    %c0_94 = arith.constant 0 : index
    %192 = vector.load %arg10[%c2_92, %c0_93, %c0_94] : memref<4x128x128xf32, #tpu.memory_space<vmem>>, vector<1x128x128xf32>
    %193 = vector.shape_cast %192 : vector<1x128x128xf32> to vector<128x128xf32>
    %c2_95 = arith.constant 2 : index
    %c0_96 = arith.constant 0 : index
    %c0_97 = arith.constant 0 : index
    %194 = vector.load %arg9[%c2_95, %c0_96, %c0_97] : memref<4x128x128xf32, #tpu.memory_space<vmem>>, vector<1x128x128xf32>
    %195 = vector.shape_cast %194 : vector<1x128x128xf32> to vector<128x128xf32>
    %cst_98 = arith.constant dense<0.000000e+00> : vector<128x128xf32>
    %196 = tpu.matmul %193, %195, %cst_98 {dimension_numbers = #tpu.dot_dimension_numbers<[1], [0], [0], [1], [0, 0, 1, 1], [], []>} : vector<128x128xf32>, vector<128x128xf32>, vector<128x128xf32> -> vector<128x128xf32>
    %c2_99 = arith.constant 2 : index
    %c0_100 = arith.constant 0 : index
    %c0_101 = arith.constant 0 : index
    %197 = vector.load %arg11[%c2_99, %c0_100, %c0_101] : memref<4x128x128xf32, #tpu.memory_space<vmem>>, vector<1x128x128xf32>
    %198 = vector.shape_cast %197 : vector<1x128x128xf32> to vector<128x128xf32>
    %199 = arith.addf %196, %198 : vector<128x128xf32>
    %c2_102 = arith.constant 2 : index
    %c0_103 = arith.constant 0 : index
    %c0_104 = arith.constant 0 : index
    %200 = vector.load %arg8[%c2_102, %c0_103, %c0_104] : memref<4x128x128xf32, #tpu.memory_space<vmem>>, vector<1x128x128xf32>
    %201 = vector.shape_cast %200 : vector<1x128x128xf32> to vector<128x128xf32>
    %202 = vector.shape_cast %199 : vector<128x128xf32> to vector<1x128x128xf32>
    tpu.vector_store %arg8[%c2_102, %c0_103, %c0_104], %202 {strides = array<i32>} : memref<4x128x128xf32, #tpu.memory_space<vmem>>, vector<1x128x128xf32>,
    %c3_105 = arith.constant 3 : index
    %c0_106 = arith.constant 0 : index
    %c0_107 = arith.constant 0 : index
    %203 = vector.load %arg10[%c3_105, %c0_106, %c0_107] : memref<4x128x128xf32, #tpu.memory_space<vmem>>, vector<1x128x128xf32>
    %204 = vector.shape_cast %203 : vector<1x128x128xf32> to vector<128x128xf32>
    %c3_108 = arith.constant 3 : index
    %c0_109 = arith.constant 0 : index
    %c0_110 = arith.constant 0 : index
    %205 = vector.load %arg9[%c3_108, %c0_109, %c0_110] : memref<4x128x128xf32, #tpu.memory_space<vmem>>, vector<1x128x128xf32>
    %206 = vector.shape_cast %205 : vector<1x128x128xf32> to vector<128x128xf32>
    %cst_111 = arith.constant dense<0.000000e+00> : vector<128x128xf32>
    %207 = tpu.matmul %204, %206, %cst_111 {dimension_numbers = #tpu.dot_dimension_numbers<[1], [0], [0], [1], [0, 0, 1, 1], [], []>} : vector<128x128xf32>, vector<128x128xf32>, vector<128x128xf32> -> vector<128x128xf32>
    %c3_112 = arith.constant 3 : index
    %c0_113 = arith.constant 0 : index
    %c0_114 = arith.constant 0 : index
    %208 = vector.load %arg11[%c3_112, %c0_113, %c0_114] : memref<4x128x128xf32, #tpu.memory_space<vmem>>, vector<1x128x128xf32>
    %209 = vector.shape_cast %208 : vector<1x128x128xf32> to vector<128x128xf32>
    %210 = arith.addf %207, %209 : vector<128x128xf32>
    %c3_115 = arith.constant 3 : index
    %c0_116 = arith.constant 0 : index
    %c0_117 = arith.constant 0 : index
    %211 = vector.load %arg8[%c3_115, %c0_116, %c0_117] : memref<4x128x128xf32, #tpu.memory_space<vmem>>, vector<1x128x128xf32>
    %212 = vector.shape_cast %211 : vector<1x128x128xf32> to vector<128x128xf32>
    %213 = vector.shape_cast %210 : vector<128x128xf32> to vector<1x128x128xf32>
    tpu.vector_store %arg8[%c3_115, %c0_116, %c0_117], %213 {strides = array<i32>} : memref<4x128x128xf32, #tpu.memory_space<vmem>>, vector<1x128x128xf32>,
    return
  }
  func.func @transform_0(%arg0: i32) -> (i32, i32, i32) {
    %c0_i32 = arith.constant 0 : i32
    %c0_i32_0 = arith.constant 0 : i32
    %c0_i32_1 = arith.constant 0 : i32
    return %arg0, %c0_i32, %c0_i32_0 : i32, i32, i32
  }
  func.func @transform_1(%arg0: i32) -> (i32, i32, i32) {
    %c0_i32 = arith.constant 0 : i32
    %c0_i32_0 = arith.constant 0 : i32
    %c0_i32_1 = arith.constant 0 : i32
    return %arg0, %c0_i32, %c0_i32_0 : i32, i32, i32
  }
  func.func @transform_2(%arg0: i32) -> (i32, i32) {
    %c0_i32 = arith.constant 0 : i32
    %c0_i32_0 = arith.constant 0 : i32
    %c0_i32_1 = arith.constant 0 : i32
    return %c0_i32, %c0_i32_0 : i32, i32
  }
  func.func @transform_3(%arg0: i32) -> (i32, i32) {
    %c0_i32 = arith.constant 0 : i32
    %c0_i32_0 = arith.constant 0 : i32
    %c0_i32_1 = arith.constant 0 : i32
    return %c0_i32, %c0_i32_0 : i32, i32
  }
  func.func @transform_4(%arg0: i32) -> (i32, i32) {
    %c0_i32 = arith.constant 0 : i32
    %c0_i32_0 = arith.constant 0 : i32
    %c0_i32_1 = arith.constant 0 : i32
    return %c0_i32, %c0_i32_0 : i32, i32
  }
  func.func @transform_5(%arg0: i32) -> (i32, i32) {
    %c0_i32 = arith.constant 0 : i32
    %c0_i32_0 = arith.constant 0 : i32
    %c0_i32_1 = arith.constant 0 : i32
    return %c0_i32, %c0_i32_0 : i32, i32
  }
  func.func @transform_6(%arg0: i32) -> i32 {
    %c0_i32 = arith.constant 0 : i32
    %c0_i32_0 = arith.constant 0 : i32
    return %c0_i32 : i32
  }
  func.func @transform_7(%arg0: i32) -> (i32, i32, i32) {
    %c0_i32 = arith.constant 0 : i32
    %c0_i32_0 = arith.constant 0 : i32
    %c0_i32_1 = arith.constant 0 : i32
    return %arg0, %c0_i32, %c0_i32_0 : i32, i32, i32
  }
}

</mosaic_0001>

<llo_original>
// kernel: tpu_custom_call.1
$region0: #{tpu_custom_call.1}
  #allocation0 [shape = 'u32[]', space=smem, size = 0x4, offset = 0x4, fixed_abs, tag = 'smem constant byte address 0x4 - core index']
  #allocation1 [shape = 'u32[144,128]{1,0:T(1,128)}', space=vmem, size = 0x12000, scoped, tag = 'internal scratch']
  #allocation2 [shape = 'f32[4,128,128]{2,1,0:T(8,128)}', space=vmem, size = 0x40000, scoped, tag = 'scratch operand']
  #allocation3 [shape = 'f32[4,128,128]{2,1,0:T(8,128)}', space=vmem, size = 0x40000, scoped, tag = 'scratch operand']
  #allocation4 [shape = 'f32[4,128,128]{2,1,0:T(8,128)}', space=vmem, size = 0x40000, scoped, tag = 'scratch operand']
  %s0 = inlined_call_operand.hbm [shape: f32[4,128,128], index: 0, kind: input, shape index: {}]
  %s1 = inlined_call_operand.hbm [shape: f32[4,128,128], index: 1, kind: input, shape index: {}]
  %s2 = inlined_call_operand.hbm [shape: f32[128,128], index: 2, kind: input, shape index: {}]
  %s3 = inlined_call_operand.vmem [shape: f32[1,128], index: 3, kind: input, shape index: {}]
  %s4 = inlined_call_operand.hbm [shape: f32[128,128], index: 4, kind: input, shape index: {}]
  %s5 = inlined_call_operand.vmem [shape: f32[1,128], index: 5, kind: input, shape index: {}]
  %s6 = inlined_call_operand.vmem [shape: f32[8], index: 6, kind: input, shape index: {}]
  %s7 = inlined_call_operand.hbm [shape: f32[4,128,128], index: 7, kind: output, shape index: {}]
  %s8 = sld [smem:[#allocation0]]
  $region58: #{tpu_custom_call.1} parent=0
    _
  %s10 = ssub.s32 1, %s8
  %s11 = scalar_select 0, %s10, %s8
  $region1: #{tpu_custom_call.1} parent=0
    #allocation5 [shape = 'u8[262144]{0}', space=vmem, size = 0x40000, scoped, tag = 'input window, operand 0, single buffered']
    #allocation6 [shape = 's32[1]{0}', space=sflag, size = 0x4, scoped, tag = 'scoped memory for tpu_custom_call.1']
    #allocation7 [shape = 's32[1]{0}', space=sflag, size = 0x4, scoped, tag = 'scoped memory for tpu_custom_call.1']
    #allocation8 [shape = 's32[1]{0}', space=sflag, size = 0x4, scoped, tag = 'scoped memory for tpu_custom_call.1']
    #allocation9 [shape = 'u8[262144]{0}', space=vmem, size = 0x40000, scoped, tag = 'input window, operand 1, single buffered']
    #allocation10 [shape = 's32[1]{0}', space=sflag, size = 0x4, scoped, tag = 'scoped memory for tpu_custom_call.1']
    #allocation11 [shape = 'u8[65536]{0}', space=vmem, size = 0x10000, scoped, tag = 'input window, operand 2, single buffered']
    #allocation12 [shape = 'u8[65536]{0}', space=vmem, size = 0x10000, scoped, tag = 'input window, operand 4, single buffered']
    #allocation13 [shape = 's32[1]{0}', space=sflag, size = 0x4, scoped, tag = 'scoped memory for tpu_custom_call.1']
    #allocation14 [shape = 'u8[512]{0}', space=smem, size = 0x200, scoped, tag = 'input window, operand 6, single buffered']
    #allocation15 [shape = 'u8[262144]{0}', space=vmem, size = 0x40000, scoped, tag = 'output window, operand 0, single buffered']
    %12 = vsyncpa [#allocation6], 0
    %13 = vsyncpa [#allocation10], 0
    %14 = vsyncpa [#allocation13], 0
    %15 = vsyncpa [#allocation8], 0
    %16 = vsyncpa [#allocation7], 0
    // Predicated region
    $region2: #{tpu_custom_call.1} parent=1 // pred_check
      _
    $region3: #{tpu_custom_call.1} parent=1 // pred_check_branch
      %18 = sbr.rel (0) target = $region5
    $region4: #{tpu_custom_call.1} parent=1 // pred_region
      %s20 = ssub.s32 8192, 8192
      %21 = vsyncadd [#allocation6], %s20
      %s22 = sshll.u32 [#allocation5], 4
      %s23 = int_to_ptr.vmem [resolvable:$true] %s22
      %28 = dma.hbm_to_vmem [thread:$0]  %s0, 8192, %s23, [#allocation6], 128, 128, 8
    $region5: #{tpu_custom_call.1} parent=1 // pred_fallthru
      _
    // Predicated region
    $region6: #{tpu_custom_call.1} parent=1 // pred_check
      _
    $region7: #{tpu_custom_call.1} parent=1 // pred_check_branch
      %30 = sbr.rel (0) target = $region9
    $region8: #{tpu_custom_call.1} parent=1 // pred_region
      %s32 = ssub.s32 8192, 8192
      %33 = vsyncadd [#allocation10], %s32
      %s34 = sshll.u32 [#allocation9], 4
      %s35 = int_to_ptr.vmem [resolvable:$true] %s34
      %40 = dma.hbm_to_vmem [thread:$0]  %s1, 8192, %s35, [#allocation10], 128, 128, 8
    $region9: #{tpu_custom_call.1} parent=1 // pred_fallthru
      _
    // Predicated region
    $region10: #{tpu_custom_call.1} parent=1 // pred_check
      _
    $region11: #{tpu_custom_call.1} parent=1 // pred_check_branch
      %42 = sbr.rel (0) target = $region13
    $region12: #{tpu_custom_call.1} parent=1 // pred_region
      %s44 = ssub.s32 2048, 2048
      %45 = vsyncadd [#allocation10], %s44
      %s46 = sshll.u32 [#allocation11], 4
      %s47 = int_to_ptr.vmem [resolvable:$true] %s46
      %52 = dma.hbm_to_vmem [thread:$0]  %s2, 2048, %s47, [#allocation10], 128, 128, 8
    $region13: #{tpu_custom_call.1} parent=1 // pred_fallthru
      _
    // Predicated region
    $region14: #{tpu_custom_call.1} parent=1 // pred_check
      _
    $region15: #{tpu_custom_call.1} parent=1 // pred_check_branch
      %54 = sbr.rel (0) target = $region17
    $region16: #{tpu_custom_call.1} parent=1 // pred_region
      _
    $region17: #{tpu_custom_call.1} parent=1 // pred_fallthru
      _
    // Predicated region
    $region18: #{tpu_custom_call.1} parent=1 // pred_check
      _
    $region19: #{tpu_custom_call.1} parent=1 // pred_check_branch
      %56 = sbr.rel (0) target = $region21
    $region20: #{tpu_custom_call.1} parent=1 // pred_region
      %s58 = ssub.s32 2048, 2048
      %59 = vsyncadd [#allocation13], %s58
      %s60 = sshll.u32 [#allocation12], 4
      %s61 = int_to_ptr.vmem [resolvable:$true] %s60
      %66 = dma.hbm_to_vmem [thread:$0]  %s4, 2048, %s61, [#allocation13], 128, 128, 8
    $region21: #{tpu_custom_call.1} parent=1 // pred_fallthru
      _
    // Predicated region
    $region22: #{tpu_custom_call.1} parent=1 // pred_check
      _
    $region23: #{tpu_custom_call.1} parent=1 // pred_check_branch
      %68 = sbr.rel (0) target = $region25
    $region24: #{tpu_custom_call.1} parent=1 // pred_region
      _
    $region25: #{tpu_custom_call.1} parent=1 // pred_fallthru
      _
    // Predicated region
    $region26: #{tpu_custom_call.1} parent=1 // pred_check
      _
    $region27: #{tpu_custom_call.1} parent=1 // pred_check_branch
      %70 = sbr.rel (0) target = $region29
    $region28: #{tpu_custom_call.1} parent=1 // pred_region
      %s72 = ssub.s32 16, 16
      %73 = vsyncadd [#allocation8], %s72
      %s75 = sshll.u32 %s6, 4
      %s76 = int_to_ptr.vmem [resolvable:$true] %s75
      %78 = dma.vmem_to_smem %s76, 16, [#allocation14], [#allocation8]
    $region29: #{tpu_custom_call.1} parent=1 // pred_fallthru
      _
    // Predicated region
    $region30: #{tpu_custom_call.1} parent=1 // pred_check
      _
    $region31: #{tpu_custom_call.1} parent=1 // pred_check_branch
      %80 = sbr.rel (0) target = $region33
    $region32: #{tpu_custom_call.1} parent=1 // pred_region
      %81 = dma.done [#allocation6], 8192
    $region33: #{tpu_custom_call.1} parent=1 // pred_fallthru
      _
    // Predicated region
    $region34: #{tpu_custom_call.1} parent=1 // pred_check
      _
    $region35: #{tpu_custom_call.1} parent=1 // pred_check_branch
      %83 = sbr.rel (0) target = $region37
    $region36: #{tpu_custom_call.1} parent=1 // pred_region
      %84 = dma.done [#allocation10], 8192
    $region37: #{tpu_custom_call.1} parent=1 // pred_fallthru
      _
    // Predicated region
    $region38: #{tpu_custom_call.1} parent=1 // pred_check
      _
    $region39: #{tpu_custom_call.1} parent=1 // pred_check_branch
      %86 = sbr.rel (0) target = $region41
    $region40: #{tpu_custom_call.1} parent=1 // pred_region
      %87 = dma.done [#allocation10], 2048
    $region41: #{tpu_custom_call.1} parent=1 // pred_fallthru
      _
    // Predicated region
    $region42: #{tpu_custom_call.1} parent=1 // pred_check
      _
    $region43: #{tpu_custom_call.1} parent=1 // pred_check_branch
      %89 = sbr.rel (0) target = $region45
    $region44: #{tpu_custom_call.1} parent=1 // pred_region
      %90 = dma.done [#allocation13], 2048
    $region45: #{tpu_custom_call.1} parent=1 // pred_fallthru
      _
    // Predicated region
    $region46: #{tpu_custom_call.1} parent=1 // pred_check
      _
    $region47: #{tpu_custom_call.1} parent=1 // pred_check_branch
      %92 = sbr.rel (0) target = $region49
    $region48: #{tpu_custom_call.1} parent=1 // pred_region
      %93 = dma.done [#allocation8], 16
    $region49: #{tpu_custom_call.1} parent=1 // pred_fallthru
      _
    %94 = sfence
    %v95 = vld [vmem:[#allocation5] sm:$0xff]
    %v96 = vld [vmem:[#allocation5 + $0x8] sm:$0xff]
    %v97 = vld [vmem:[#allocation5 + $0x10] sm:$0xff]
    %v98 = vld [vmem:[#allocation5 + $0x18] sm:$0xff]
    %v99 = vld [vmem:[#allocation5 + $0x20] sm:$0xff]
    %v100 = vld [vmem:[#allocation5 + $0x28] sm:$0xff]
    %v101 = vld [vmem:[#allocation5 + $0x30] sm:$0xff]
    %v102 = vld [vmem:[#allocation5 + $0x38] sm:$0xff]
    %v103 = vld [vmem:[#allocation5 + $0x40] sm:$0xff]
    %v104 = vld [vmem:[#allocation5 + $0x48] sm:$0xff]
    %v105 = vld [vmem:[#allocation5 + $0x50] sm:$0xff]
    %v106 = vld [vmem:[#allocation5 + $0x58] sm:$0xff]
    %v107 = vld [vmem:[#allocation5 + $0x60] sm:$0xff]
    %v108 = vld [vmem:[#allocation5 + $0x68] sm:$0xff]
    %v109 = vld [vmem:[#allocation5 + $0x70] sm:$0xff]
    %v110 = vld [vmem:[#allocation5 + $0x78] sm:$0xff]
    %v111 = vld [vmem:[#allocation5 + $0x80] sm:$0xff]
    %v112 = vld [vmem:[#allocation5 + $0x88] sm:$0xff]
    %v113 = vld [vmem:[#allocation5 + $0x90] sm:$0xff]
    %v114 = vld [vmem:[#allocation5 + $0x98] sm:$0xff]
    %v115 = vld [vmem:[#allocation5 + $0xa0] sm:$0xff]
    %v116 = vld [vmem:[#allocation5 + $0xa8] sm:$0xff]
    %v117 = vld [vmem:[#allocation5 + $0xb0] sm:$0xff]
    %v118 = vld [vmem:[#allocation5 + $0xb8] sm:$0xff]
    %v119 = vld [vmem:[#allocation5 + $0xc0] sm:$0xff]
    %v120 = vld [vmem:[#allocation5 + $0xc8] sm:$0xff]
    %v121 = vld [vmem:[#allocation5 + $0xd0] sm:$0xff]
    %v122 = vld [vmem:[#allocation5 + $0xd8] sm:$0xff]
    %v123 = vld [vmem:[#allocation5 + $0xe0] sm:$0xff]
    %v124 = vld [vmem:[#allocation5 + $0xe8] sm:$0xff]
    %v125 = vld [vmem:[#allocation5 + $0xf0] sm:$0xff]
    %v126 = vld [vmem:[#allocation5 + $0xf8] sm:$0xff]
    %v127 = vld [vmem:[#allocation5 + $0x100] sm:$0xff]
    %v128 = vld [vmem:[#allocation5 + $0x108] sm:$0xff]
    %v129 = vld [vmem:[#allocation5 + $0x110] sm:$0xff]
    %v130 = vld [vmem:[#allocation5 + $0x118] sm:$0xff]
    %v131 = vld [vmem:[#allocation5 + $0x120] sm:$0xff]
    %v132 = vld [vmem:[#allocation5 + $0x128] sm:$0xff]
    %v133 = vld [vmem:[#allocation5 + $0x130] sm:$0xff]
    %v134 = vld [vmem:[#allocation5 + $0x138] sm:$0xff]
    %v135 = vld [vmem:[#allocation5 + $0x140] sm:$0xff]
    %v136 = vld [vmem:[#allocation5 + $0x148] sm:$0xff]
    %v137 = vld [vmem:[#allocation5 + $0x150] sm:$0xff]
    %v138 = vld [vmem:[#allocation5 + $0x158] sm:$0xff]
    %v139 = vld [vmem:[#allocation5 + $0x160] sm:$0xff]
    %v140 = vld [vmem:[#allocation5 + $0x168] sm:$0xff]
    %v141 = vld [vmem:[#allocation5 + $0x170] sm:$0xff]
    %v142 = vld [vmem:[#allocation5 + $0x178] sm:$0xff]
    %v143 = vld [vmem:[#allocation5 + $0x180] sm:$0xff]
    %v144 = vld [vmem:[#allocation5 + $0x188] sm:$0xff]
    %v145 = vld [vmem:[#allocation5 + $0x190] sm:$0xff]
    %v146 = vld [vmem:[#allocation5 + $0x198] sm:$0xff]
    %v147 = vld [vmem:[#allocation5 + $0x1a0] sm:$0xff]
    %v148 = vld [vmem:[#allocation5 + $0x1a8] sm:$0xff]
    %v149 = vld [vmem:[#allocation5 + $0x1b0] sm:$0xff]
    %v150 = vld [vmem:[#allocation5 + $0x1b8] sm:$0xff]
    %v151 = vld [vmem:[#allocation5 + $0x1c0] sm:$0xff]
    %v152 = vld [vmem:[#allocation5 + $0x1c8] sm:$0xff]
    %v153 = vld [vmem:[#allocation5 + $0x1d0] sm:$0xff]
    %v154 = vld [vmem:[#allocation5 + $0x1d8] sm:$0xff]
    %v155 = vld [vmem:[#allocation5 + $0x1e0] sm:$0xff]
    %v156 = vld [vmem:[#allocation5 + $0x1e8] sm:$0xff]
    %v157 = vld [vmem:[#allocation5 + $0x1f0] sm:$0xff]
    %v158 = vld [vmem:[#allocation5 + $0x1f8] sm:$0xff]
    %v159 = vld [vmem:[#allocation11] sm:$0xff]
    %v160 = vld [vmem:[#allocation11 + $0x8] sm:$0xff]
    %v161 = vld [vmem:[#allocation11 + $0x10] sm:$0xff]
    %v162 = vld [vmem:[#allocation11 + $0x18] sm:$0xff]
    %v163 = vld [vmem:[#allocation11 + $0x20] sm:$0xff]
    %v164 = vld [vmem:[#allocation11 + $0x28] sm:$0xff]
    %v165 = vld [vmem:[#allocation11 + $0x30] sm:$0xff]
    %v166 = vld [vmem:[#allocation11 + $0x38] sm:$0xff]
    %v167 = vld [vmem:[#allocation11 + $0x40] sm:$0xff]
    %v168 = vld [vmem:[#allocation11 + $0x48] sm:$0xff]
    %v169 = vld [vmem:[#allocation11 + $0x50] sm:$0xff]
    %v170 = vld [vmem:[#allocation11 + $0x58] sm:$0xff]
    %v171 = vld [vmem:[#allocation11 + $0x60] sm:$0xff]
    %v172 = vld [vmem:[#allocation11 + $0x68] sm:$0xff]
    %v173 = vld [vmem:[#allocation11 + $0x70] sm:$0xff]
    %v174 = vld [vmem:[#allocation11 + $0x78] sm:$0xff]
    %v175 = vld [vmem:[%s3] sm:$0x1]
    %v177 = vlaneseq
    %v178 = vshrl.u32 %v177, 7
    %v179 = vsub.s32 0, %v178
    %v180 = vrot.slane %v175, %v179
    %182 = vmatprep.subr.mxu0 0.0
    %183 = vmatpush1.msra.mxu0 %v159
    %184 = vmatprep.subr.mxu0 0.0
    %185 = vmatpush1.msra.mxu0 %v160
    %186 = vmatprep.subr.mxu0 0.0
    %187 = vmatpush1.msra.mxu0 %v161
    %188 = vmatprep.subr.mxu0 0.0
    %189 = vmatpush1.msra.mxu0 %v162
    %190 = vmatprep.subr.mxu0 0.0
    %191 = vmatpush1.msra.mxu0 %v163
    %192 = vmatprep.subr.mxu0 0.0
    %193 = vmatpush1.msra.mxu0 %v164
    %194 = vmatprep.subr.mxu0 0.0
    %195 = vmatpush1.msra.mxu0 %v165
    %196 = vmatprep.subr.mxu0 0.0
    %197 = vmatpush1.msra.mxu0 %v166
    %198 = vmatprep.subr.mxu0 0.0
    %199 = vmatpush1.msra.mxu0 %v167
    %200 = vmatprep.subr.mxu0 0.0
    %201 = vmatpush1.msra.mxu0 %v168
    %202 = vmatprep.subr.mxu0 0.0
    %203 = vmatpush1.msra.mxu0 %v169
    %204 = vmatprep.subr.mxu0 0.0
    %205 = vmatpush1.msra.mxu0 %v170
    %206 = vmatprep.subr.mxu0 0.0
    %207 = vmatpush1.msra.mxu0 %v171
    %208 = vmatprep.subr.mxu0 0.0
    %209 = vmatpush1.msra.mxu0 %v172
    %210 = vmatprep.subr.mxu0 0.0
    %211 = vmatpush1.msra.mxu0 %v173
    %212 = vmatprep.subr.mxu0 0.0
    %213 = vmatpush1.msra.mxu0 %v174
    %214 = vmatprep.subr.mxu0 0.0
    %215 = vmatpush1.msra.mxu0 0.0
    %216 = vmatprep.subr.mxu0 0.0
    %217 = vmatpush1.msra.mxu0 0.0
    %218 = vmatprep.subr.mxu0 0.0
    %219 = vmatpush1.msra.mxu0 0.0
    %220 = vmatprep.subr.mxu0 0.0
    %221 = vmatpush1.msra.mxu0 0.0
    %222 = vmatprep.subr.mxu0 0.0
    %223 = vmatpush1.msra.mxu0 0.0
    %224 = vmatprep.subr.mxu0 0.0
    %225 = vmatpush1.msra.mxu0 0.0
    %226 = vmatprep.subr.mxu0 0.0
    %227 = vmatpush1.msra.mxu0 0.0
    %228 = vmatprep.subr.mxu0 0.0
    %229 = vmatpush1.msra.mxu0 0.0
    %230 = vmatprep.subr.mxu0 0.0
    %231 = vmatpush1.msra.mxu0 0.0
    %232 = vmatprep.subr.mxu0 0.0
    %233 = vmatpush1.msra.mxu0 0.0
    %234 = vmatprep.subr.mxu0 0.0
    %235 = vmatpush1.msra.mxu0 0.0
    %236 = vmatprep.subr.mxu0 0.0
    %237 = vmatpush1.msra.mxu0 0.0
    %238 = vmatprep.subr.mxu0 0.0
    %239 = vmatpush1.msra.mxu0 0.0
    %240 = vmatprep.subr.mxu0 0.0
    %241 = vmatpush1.msra.mxu0 0.0
    %242 = vmatprep.subr.mxu0 0.0
    %243 = vmatpush1.msra.mxu0 0.0
    %244 = vmatprep.subr.mxu0 0.0
    %245 = vmatpush1.msra.mxu0 0.0
    %246 = vmatprep.mubr.f32.mxu0 0.0
    %247 = vmatmul.mubr.f32.gmra.mrb[0].mxu0 %v95
    %v248 = vpop.f32.mrb[0].mxu0
    %v249 = vadd.f32 %v180, %v248
    %v250 = vpop.f32.mrb[0].mxu0
    %251 = vmatprep.mubr.f32.mxu0 0.0
    %252 = vmatmul.mubr.f32.gmra.mrb[0].mxu0 %v96
    %v253 = vpop.f32.mrb[0].mxu0
    %v254 = vadd.f32 %v180, %v253
    %v255 = vpop.f32.mrb[0].mxu0
    %256 = vmatprep.mubr.f32.mxu0 0.0
    %257 = vmatmul.mubr.f32.gmra.mrb[0].mxu0 %v97
    %v258 = vpop.f32.mrb[0].mxu0
    %v259 = vadd.f32 %v180, %v258
    %v260 = vpop.f32.mrb[0].mxu0
    %261 = vmatprep.mubr.f32.mxu0 0.0
    %262 = vmatmul.mubr.f32.gmra.mrb[0].mxu0 %v98
    %v263 = vpop.f32.mrb[0].mxu0
    %v264 = vadd.f32 %v180, %v263
    %v265 = vpop.f32.mrb[0].mxu0
    %266 = vmatprep.mubr.f32.mxu0 0.0
    %267 = vmatmul.mubr.f32.gmra.mrb[0].mxu0 %v99
    %v268 = vpop.f32.mrb[0].mxu0
    %v269 = vadd.f32 %v180, %v268
    %v270 = vpop.f32.mrb[0].mxu0
    %271 = vmatprep.mubr.f32.mxu0 0.0
    %272 = vmatmul.mubr.f32.gmra.mrb[0].mxu0 %v100
    %v273 = vpop.f32.mrb[0].mxu0
    %v274 = vadd.f32 %v180, %v273
    %v275 = vpop.f32.mrb[0].mxu0
    %276 = vmatprep.mubr.f32.mxu0 0.0
    %277 = vmatmul.mubr.f32.gmra.mrb[0].mxu0 %v101
    %v278 = vpop.f32.mrb[0].mxu0
    %v279 = vadd.f32 %v180, %v278
    %v280 = vpop.f32.mrb[0].mxu0
    %281 = vmatprep.mubr.f32.mxu0 0.0
    %282 = vmatmul.mubr.f32.gmra.mrb[0].mxu0 %v102
    %v283 = vpop.f32.mrb[0].mxu0
    %v284 = vadd.f32 %v180, %v283
    %v285 = vpop.f32.mrb[0].mxu0
    %286 = vmatprep.mubr.f32.mxu0 0.0
    %287 = vmatmul.mubr.f32.gmra.mrb[0].mxu0 %v103
    %v288 = vpop.f32.mrb[0].mxu0
    %v289 = vadd.f32 %v180, %v288
    %v290 = vpop.f32.mrb[0].mxu0
    %291 = vmatprep.mubr.f32.mxu0 0.0
    %292 = vmatmul.mubr.f32.gmra.mrb[0].mxu0 %v104
    %v293 = vpop.f32.mrb[0].mxu0
    %v294 = vadd.f32 %v180, %v293
    %v295 = vpop.f32.mrb[0].mxu0
    %296 = vmatprep.mubr.f32.mxu0 0.0
    %297 = vmatmul.mubr.f32.gmra.mrb[0].mxu0 %v105
    %v298 = vpop.f32.mrb[0].mxu0
    %v299 = vadd.f32 %v180, %v298
    %v300 = vpop.f32.mrb[0].mxu0
    %301 = vmatprep.mubr.f32.mxu0 0.0
    %302 = vmatmul.mubr.f32.gmra.mrb[0].mxu0 %v106
    %v303 = vpop.f32.mrb[0].mxu0
    %v304 = vadd.f32 %v180, %v303
    %v305 = vpop.f32.mrb[0].mxu0
    %306 = vmatprep.mubr.f32.mxu0 0.0
    %307 = vmatmul.mubr.f32.gmra.mrb[0].mxu0 %v107
    %v308 = vpop.f32.mrb[0].mxu0
    %v309 = vadd.f32 %v180, %v308
    %v310 = vpop.f32.mrb[0].mxu0
    %311 = vmatprep.mubr.f32.mxu0 0.0
    %312 = vmatmul.mubr.f32.gmra.mrb[0].mxu0 %v108
    %v313 = vpop.f32.mrb[0].mxu0
    %v314 = vadd.f32 %v180, %v313
    %v315 = vpop.f32.mrb[0].mxu0
    %316 = vmatprep.mubr.f32.mxu0 0.0
    %317 = vmatmul.mubr.f32.gmra.mrb[0].mxu0 %v109
    %v318 = vpop.f32.mrb[0].mxu0
    %v319 = vadd.f32 %v180, %v318
    %v320 = vpop.f32.mrb[0].mxu0
    %321 = vmatprep.mubr.f32.mxu0 0.0
    %322 = vmatmul.mubr.f32.gmra.mrb[0].mxu0 %v110
    %v323 = vpop.f32.mrb[0].mxu0
    %v324 = vadd.f32 %v180, %v323
    %v325 = vpop.f32.mrb[0].mxu0
    %326 = vmatprep.mubr.f32.mxu0 0.0
    %327 = vmatmul.mubr.f32.gmra.mrb[0].mxu0 %v111
    %v328 = vpop.f32.mrb[0].mxu0
    %v329 = vadd.f32 %v180, %v328
    %v330 = vpop.f32.mrb[0].mxu0
    %331 = vmatprep.mubr.f32.mxu0 0.0
    %332 = vmatmul.mubr.f32.gmra.mrb[0].mxu0 %v112
    %v333 = vpop.f32.mrb[0].mxu0
    %v334 = vadd.f32 %v180, %v333
    %v335 = vpop.f32.mrb[0].mxu0
    %336 = vmatprep.mubr.f32.mxu0 0.0
    %337 = vmatmul.mubr.f32.gmra.mrb[0].mxu0 %v113
    %v338 = vpop.f32.mrb[0].mxu0
    %v339 = vadd.f32 %v180, %v338
    %v340 = vpop.f32.mrb[0].mxu0
    %341 = vmatprep.mubr.f32.mxu0 0.0
    %342 = vmatmul.mubr.f32.gmra.mrb[0].mxu0 %v114
    %v343 = vpop.f32.mrb[0].mxu0
    %v344 = vadd.f32 %v180, %v343
    %v345 = vpop.f32.mrb[0].mxu0
    %346 = vmatprep.mubr.f32.mxu0 0.0
    %347 = vmatmul.mubr.f32.gmra.mrb[0].mxu0 %v115
    %v348 = vpop.f32.mrb[0].mxu0
    %v349 = vadd.f32 %v180, %v348
    %v350 = vpop.f32.mrb[0].mxu0
    %351 = vmatprep.mubr.f32.mxu0 0.0
    %352 = vmatmul.mubr.f32.gmra.mrb[0].mxu0 %v116
    %v353 = vpop.f32.mrb[0].mxu0
    %v354 = vadd.f32 %v180, %v353
    %v355 = vpop.f32.mrb[0].mxu0
    %356 = vmatprep.mubr.f32.mxu0 0.0
    %357 = vmatmul.mubr.f32.gmra.mrb[0].mxu0 %v117
    %v358 = vpop.f32.mrb[0].mxu0
    %v359 = vadd.f32 %v180, %v358
    %v360 = vpop.f32.mrb[0].mxu0
    %361 = vmatprep.mubr.f32.mxu0 0.0
    %362 = vmatmul.mubr.f32.gmra.mrb[0].mxu0 %v118
    %v363 = vpop.f32.mrb[0].mxu0
    %v364 = vadd.f32 %v180, %v363
    %v365 = vpop.f32.mrb[0].mxu0
    %366 = vmatprep.mubr.f32.mxu0 0.0
    %367 = vmatmul.mubr.f32.gmra.mrb[0].mxu0 %v119
    %v368 = vpop.f32.mrb[0].mxu0
    %v369 = vadd.f32 %v180, %v368
    %v370 = vpop.f32.mrb[0].mxu0
    %371 = vmatprep.mubr.f32.mxu0 0.0
    %372 = vmatmul.mubr.f32.gmra.mrb[0].mxu0 %v120
    %v373 = vpop.f32.mrb[0].mxu0
    %v374 = vadd.f32 %v180, %v373
    %v375 = vpop.f32.mrb[0].mxu0
    %376 = vmatprep.mubr.f32.mxu0 0.0
    %377 = vmatmul.mubr.f32.gmra.mrb[0].mxu0 %v121
    %v378 = vpop.f32.mrb[0].mxu0
    %v379 = vadd.f32 %v180, %v378
    %v380 = vpop.f32.mrb[0].mxu0
    %381 = vmatprep.mubr.f32.mxu0 0.0
    %382 = vmatmul.mubr.f32.gmra.mrb[0].mxu0 %v122
    %v383 = vpop.f32.mrb[0].mxu0
    %v384 = vadd.f32 %v180, %v383
    %v385 = vpop.f32.mrb[0].mxu0
    %386 = vmatprep.mubr.f32.mxu0 0.0
    %387 = vmatmul.mubr.f32.gmra.mrb[0].mxu0 %v123
    %v388 = vpop.f32.mrb[0].mxu0
    %v389 = vadd.f32 %v180, %v388
    %v390 = vpop.f32.mrb[0].mxu0
    %391 = vmatprep.mubr.f32.mxu0 0.0
    %392 = vmatmul.mubr.f32.gmra.mrb[0].mxu0 %v124
    %v393 = vpop.f32.mrb[0].mxu0
    %v394 = vadd.f32 %v180, %v393
    %v395 = vpop.f32.mrb[0].mxu0
    %396 = vmatprep.mubr.f32.mxu0 0.0
    %397 = vmatmul.mubr.f32.gmra.mrb[0].mxu0 %v125
    %v398 = vpop.f32.mrb[0].mxu0
    %v399 = vadd.f32 %v180, %v398
    %v400 = vpop.f32.mrb[0].mxu0
    %401 = vmatprep.mubr.f32.mxu0 0.0
    %402 = vmatmul.mubr.f32.gmra.mrb[0].mxu0 %v126
    %v403 = vpop.f32.mrb[0].mxu0
    %v404 = vadd.f32 %v180, %v403
    %v405 = vpop.f32.mrb[0].mxu0
    %406 = vmatprep.mubr.f32.mxu0 0.0
    %407 = vmatmul.mubr.f32.gmra.mrb[0].mxu0 %v127
    %v408 = vpop.f32.mrb[0].mxu0
    %v409 = vadd.f32 %v180, %v408
    %v410 = vpop.f32.mrb[0].mxu0
    %411 = vmatprep.mubr.f32.mxu0 0.0
    %412 = vmatmul.mubr.f32.gmra.mrb[0].mxu0 %v128
    %v413 = vpop.f32.mrb[0].mxu0
    %v414 = vadd.f32 %v180, %v413
    %v415 = vpop.f32.mrb[0].mxu0
    %416 = vmatprep.mubr.f32.mxu0 0.0
    %417 = vmatmul.mubr.f32.gmra.mrb[0].mxu0 %v129
    %v418 = vpop.f32.mrb[0].mxu0
    %v419 = vadd.f32 %v180, %v418
    %v420 = vpop.f32.mrb[0].mxu0
    %421 = vmatprep.mubr.f32.mxu0 0.0
    %422 = vmatmul.mubr.f32.gmra.mrb[0].mxu0 %v130
    %v423 = vpop.f32.mrb[0].mxu0
    %v424 = vadd.f32 %v180, %v423
    %v425 = vpop.f32.mrb[0].mxu0
    %426 = vmatprep.mubr.f32.mxu0 0.0
    %427 = vmatmul.mubr.f32.gmra.mrb[0].mxu0 %v131
    %v428 = vpop.f32.mrb[0].mxu0
    %v429 = vadd.f32 %v180, %v428
    %v430 = vpop.f32.mrb[0].mxu0
    %431 = vmatprep.mubr.f32.mxu0 0.0
    %432 = vmatmul.mubr.f32.gmra.mrb[0].mxu0 %v132
    %v433 = vpop.f32.mrb[0].mxu0
    %v434 = vadd.f32 %v180, %v433
    %v435 = vpop.f32.mrb[0].mxu0
    %436 = vmatprep.mubr.f32.mxu0 0.0
    %437 = vmatmul.mubr.f32.gmra.mrb[0].mxu0 %v133
    %v438 = vpop.f32.mrb[0].mxu0
    %v439 = vadd.f32 %v180, %v438
    %v440 = vpop.f32.mrb[0].mxu0
    %441 = vmatprep.mubr.f32.mxu0 0.0
    %442 = vmatmul.mubr.f32.gmra.mrb[0].mxu0 %v134
    %v443 = vpop.f32.mrb[0].mxu0
    %v444 = vadd.f32 %v180, %v443
    %v445 = vpop.f32.mrb[0].mxu0
    %446 = vmatprep.mubr.f32.mxu0 0.0
    %447 = vmatmul.mubr.f32.gmra.mrb[0].mxu0 %v135
    %v448 = vpop.f32.mrb[0].mxu0
    %v449 = vadd.f32 %v180, %v448
    %v450 = vpop.f32.mrb[0].mxu0
    %451 = vmatprep.mubr.f32.mxu0 0.0
    %452 = vmatmul.mubr.f32.gmra.mrb[0].mxu0 %v136
    %v453 = vpop.f32.mrb[0].mxu0
    %v454 = vadd.f32 %v180, %v453
    %v455 = vpop.f32.mrb[0].mxu0
    %456 = vmatprep.mubr.f32.mxu0 0.0
    %457 = vmatmul.mubr.f32.gmra.mrb[0].mxu0 %v137
    %v458 = vpop.f32.mrb[0].mxu0
    %v459 = vadd.f32 %v180, %v458
    %v460 = vpop.f32.mrb[0].mxu0
    %461 = vmatprep.mubr.f32.mxu0 0.0
    %462 = vmatmul.mubr.f32.gmra.mrb[0].mxu0 %v138
    %v463 = vpop.f32.mrb[0].mxu0
    %v464 = vadd.f32 %v180, %v463
    %v465 = vpop.f32.mrb[0].mxu0
    %466 = vmatprep.mubr.f32.mxu0 0.0
    %467 = vmatmul.mubr.f32.gmra.mrb[0].mxu0 %v139
    %v468 = vpop.f32.mrb[0].mxu0
    %v469 = vadd.f32 %v180, %v468
    %v470 = vpop.f32.mrb[0].mxu0
    %471 = vmatprep.mubr.f32.mxu0 0.0
    %472 = vmatmul.mubr.f32.gmra.mrb[0].mxu0 %v140
    %v473 = vpop.f32.mrb[0].mxu0
    %v474 = vadd.f32 %v180, %v473
    %v475 = vpop.f32.mrb[0].mxu0
    %476 = vmatprep.mubr.f32.mxu0 0.0
    %477 = vmatmul.mubr.f32.gmra.mrb[0].mxu0 %v141
    %v478 = vpop.f32.mrb[0].mxu0
    %v479 = vadd.f32 %v180, %v478
    %v480 = vpop.f32.mrb[0].mxu0
    %481 = vmatprep.mubr.f32.mxu0 0.0
    %482 = vmatmul.mubr.f32.gmra.mrb[0].mxu0 %v142
    %v483 = vpop.f32.mrb[0].mxu0
    %v484 = vadd.f32 %v180, %v483
    %v485 = vpop.f32.mrb[0].mxu0
    %486 = vmatprep.mubr.f32.mxu0 0.0
    %487 = vmatmul.mubr.f32.gmra.mrb[0].mxu0 %v143
    %v488 = vpop.f32.mrb[0].mxu0
    %v489 = vadd.f32 %v180, %v488
    %v490 = vpop.f32.mrb[0].mxu0
    %491 = vmatprep.mubr.f32.mxu0 0.0
    %492 = vmatmul.mubr.f32.gmra.mrb[0].mxu0 %v144
    %v493 = vpop.f32.mrb[0].mxu0
    %v494 = vadd.f32 %v180, %v493
    %v495 = vpop.f32.mrb[0].mxu0
    %496 = vmatprep.mubr.f32.mxu0 0.0
    %497 = vmatmul.mubr.f32.gmra.mrb[0].mxu0 %v145
    %v498 = vpop.f32.mrb[0].mxu0
    %v499 = vadd.f32 %v180, %v498
    %v500 = vpop.f32.mrb[0].mxu0
    %501 = vmatprep.mubr.f32.mxu0 0.0
    %502 = vmatmul.mubr.f32.gmra.mrb[0].mxu0 %v146
    %v503 = vpop.f32.mrb[0].mxu0
    %v504 = vadd.f32 %v180, %v503
    %v505 = vpop.f32.mrb[0].mxu0
    %506 = vmatprep.mubr.f32.mxu0 0.0
    %507 = vmatmul.mubr.f32.gmra.mrb[0].mxu0 %v147
    %v508 = vpop.f32.mrb[0].mxu0
    %v509 = vadd.f32 %v180, %v508
    %v510 = vpop.f32.mrb[0].mxu0
    %511 = vmatprep.mubr.f32.mxu0 0.0
    %512 = vmatmul.mubr.f32.gmra.mrb[0].mxu0 %v148
    %v513 = vpop.f32.mrb[0].mxu0
    %v514 = vadd.f32 %v180, %v513
    %v515 = vpop.f32.mrb[0].mxu0
    %516 = vmatprep.mubr.f32.mxu0 0.0
    %517 = vmatmul.mubr.f32.gmra.mrb[0].mxu0 %v149
    %v518 = vpop.f32.mrb[0].mxu0
    %v519 = vadd.f32 %v180, %v518
    %v520 = vpop.f32.mrb[0].mxu0
    %521 = vmatprep.mubr.f32.mxu0 0.0
    %522 = vmatmul.mubr.f32.gmra.mrb[0].mxu0 %v150
    %v523 = vpop.f32.mrb[0].mxu0
    %v524 = vadd.f32 %v180, %v523
    %v525 = vpop.f32.mrb[0].mxu0
    %526 = vmatprep.mubr.f32.mxu0 0.0
    %527 = vmatmul.mubr.f32.gmra.mrb[0].mxu0 %v151
    %v528 = vpop.f32.mrb[0].mxu0
    %v529 = vadd.f32 %v180, %v528
    %v530 = vpop.f32.mrb[0].mxu0
    %531 = vmatprep.mubr.f32.mxu0 0.0
    %532 = vmatmul.mubr.f32.gmra.mrb[0].mxu0 %v152
    %v533 = vpop.f32.mrb[0].mxu0
    %v534 = vadd.f32 %v180, %v533
    %v535 = vpop.f32.mrb[0].mxu0
    %536 = vmatprep.mubr.f32.mxu0 0.0
    %537 = vmatmul.mubr.f32.gmra.mrb[0].mxu0 %v153
    %v538 = vpop.f32.mrb[0].mxu0
    %v539 = vadd.f32 %v180, %v538
    %v540 = vpop.f32.mrb[0].mxu0
    %541 = vmatprep.mubr.f32.mxu0 0.0
    %542 = vmatmul.mubr.f32.gmra.mrb[0].mxu0 %v154
    %v543 = vpop.f32.mrb[0].mxu0
    %v544 = vadd.f32 %v180, %v543
    %v545 = vpop.f32.mrb[0].mxu0
    %546 = vmatprep.mubr.f32.mxu0 0.0
    %547 = vmatmul.mubr.f32.gmra.mrb[0].mxu0 %v155
    %v548 = vpop.f32.mrb[0].mxu0
    %v549 = vadd.f32 %v180, %v548
    %v550 = vpop.f32.mrb[0].mxu0
    %551 = vmatprep.mubr.f32.mxu0 0.0
    %552 = vmatmul.mubr.f32.gmra.mrb[0].mxu0 %v156
    %v553 = vpop.f32.mrb[0].mxu0
    %v554 = vadd.f32 %v180, %v553
    %v555 = vpop.f32.mrb[0].mxu0
    %556 = vmatprep.mubr.f32.mxu0 0.0
    %557 = vmatmul.mubr.f32.gmra.mrb[0].mxu0 %v157
    %v558 = vpop.f32.mrb[0].mxu0
    %v559 = vadd.f32 %v180, %v558
    %v560 = vpop.f32.mrb[0].mxu0
    %561 = vmatprep.mubr.f32.mxu0 0.0
    %562 = vmatmul.mubr.f32.gmra.mrb[0].mxu0 %v158
    %v563 = vpop.f32.mrb[0].mxu0
    %v564 = vadd.f32 %v180, %v563
    %v565 = vpop.f32.mrb[0].mxu0
    %566 = vdwg.mxu0
    %567 = vst [vmem:[#allocation2] sm:$0xff] %v249
    %568 = vst [vmem:[#allocation2 + $0x8] sm:$0xff] %v254
    %569 = vst [vmem:[#allocation2 + $0x10] sm:$0xff] %v259
    %570 = vst [vmem:[#allocation2 + $0x18] sm:$0xff] %v264
    %571 = vst [vmem:[#allocation2 + $0x20] sm:$0xff] %v269
    %572 = vst [vmem:[#allocation2 + $0x28] sm:$0xff] %v274
    %573 = vst [vmem:[#allocation2 + $0x30] sm:$0xff] %v279
    %574 = vst [vmem:[#allocation2 + $0x38] sm:$0xff] %v284
    %575 = vst [vmem:[#allocation2 + $0x40] sm:$0xff] %v289
    %576 = vst [vmem:[#allocation2 + $0x48] sm:$0xff] %v294
    %577 = vst [vmem:[#allocation2 + $0x50] sm:$0xff] %v299
    %578 = vst [vmem:[#allocation2 + $0x58] sm:$0xff] %v304
    %579 = vst [vmem:[#allocation2 + $0x60] sm:$0xff] %v309
    %580 = vst [vmem:[#allocation2 + $0x68] sm:$0xff] %v314
    %581 = vst [vmem:[#allocation2 + $0x70] sm:$0xff] %v319
    %582 = vst [vmem:[#allocation2 + $0x78] sm:$0xff] %v324
    %583 = vst [vmem:[#allocation2 + $0x80] sm:$0xff] %v329
    %584 = vst [vmem:[#allocation2 + $0x88] sm:$0xff] %v334
    %585 = vst [vmem:[#allocation2 + $0x90] sm:$0xff] %v339
    %586 = vst [vmem:[#allocation2 + $0x98] sm:$0xff] %v344
    %587 = vst [vmem:[#allocation2 + $0xa0] sm:$0xff] %v349
    %588 = vst [vmem:[#allocation2 + $0xa8] sm:$0xff] %v354
    %589 = vst [vmem:[#allocation2 + $0xb0] sm:$0xff] %v359
    %590 = vst [vmem:[#allocation2 + $0xb8] sm:$0xff] %v364
    %591 = vst [vmem:[#allocation2 + $0xc0] sm:$0xff] %v369
    %592 = vst [vmem:[#allocation2 + $0xc8] sm:$0xff] %v374
    %593 = vst [vmem:[#allocation2 + $0xd0] sm:$0xff] %v379
    %594 = vst [vmem:[#allocation2 + $0xd8] sm:$0xff] %v384
    %595 = vst [vmem:[#allocation2 + $0xe0] sm:$0xff] %v389
    %596 = vst [vmem:[#allocation2 + $0xe8] sm:$0xff] %v394
    %597 = vst [vmem:[#allocation2 + $0xf0] sm:$0xff] %v399
    %598 = vst [vmem:[#allocation2 + $0xf8] sm:$0xff] %v404
    %599 = vst [vmem:[#allocation2 + $0x100] sm:$0xff] %v409
    %600 = vst [vmem:[#allocation2 + $0x108] sm:$0xff] %v414
    %601 = vst [vmem:[#allocation2 + $0x110] sm:$0xff] %v419
    %602 = vst [vmem:[#allocation2 + $0x118] sm:$0xff] %v424
    %603 = vst [vmem:[#allocation2 + $0x120] sm:$0xff] %v429
    %604 = vst [vmem:[#allocation2 + $0x128] sm:$0xff] %v434
    %605 = vst [vmem:[#allocation2 + $0x130] sm:$0xff] %v439
    %606 = vst [vmem:[#allocation2 + $0x138] sm:$0xff] %v444
    %607 = vst [vmem:[#allocation2 + $0x140] sm:$0xff] %v449
    %608 = vst [vmem:[#allocation2 + $0x148] sm:$0xff] %v454
    %609 = vst [vmem:[#allocation2 + $0x150] sm:$0xff] %v459
    %610 = vst [vmem:[#allocation2 + $0x158] sm:$0xff] %v464
    %611 = vst [vmem:[#allocation2 + $0x160] sm:$0xff] %v469
    %612 = vst [vmem:[#allocation2 + $0x168] sm:$0xff] %v474
    %613 = vst [vmem:[#allocation2 + $0x170] sm:$0xff] %v479
    %614 = vst [vmem:[#allocation2 + $0x178] sm:$0xff] %v484
    %615 = vst [vmem:[#allocation2 + $0x180] sm:$0xff] %v489
    %616 = vst [vmem:[#allocation2 + $0x188] sm:$0xff] %v494
    %617 = vst [vmem:[#allocation2 + $0x190] sm:$0xff] %v499
    %618 = vst [vmem:[#allocation2 + $0x198] sm:$0xff] %v504
    %619 = vst [vmem:[#allocation2 + $0x1a0] sm:$0xff] %v509
    %620 = vst [vmem:[#allocation2 + $0x1a8] sm:$0xff] %v514
    %621 = vst [vmem:[#allocation2 + $0x1b0] sm:$0xff] %v519
    %622 = vst [vmem:[#allocation2 + $0x1b8] sm:$0xff] %v524
    %623 = vst [vmem:[#allocation2 + $0x1c0] sm:$0xff] %v529
    %624 = vst [vmem:[#allocation2 + $0x1c8] sm:$0xff] %v534
    %625 = vst [vmem:[#allocation2 + $0x1d0] sm:$0xff] %v539
    %626 = vst [vmem:[#allocation2 + $0x1d8] sm:$0xff] %v544
    %627 = vst [vmem:[#allocation2 + $0x1e0] sm:$0xff] %v549
    %628 = vst [vmem:[#allocation2 + $0x1e8] sm:$0xff] %v554
    %629 = vst [vmem:[#allocation2 + $0x1f0] sm:$0xff] %v559
    %630 = vst [vmem:[#allocation2 + $0x1f8] sm:$0xff] %v564
    %v631 = vld [vmem:[#allocation9] sm:$0xff]
    %v632 = vld [vmem:[#allocation9 + $0x8] sm:$0xff]
    %v633 = vld [vmem:[#allocation9 + $0x10] sm:$0xff]
    %v634 = vld [vmem:[#allocation9 + $0x18] sm:$0xff]
    %v635 = vld [vmem:[#allocation9 + $0x20] sm:$0xff]
    %v636 = vld [vmem:[#allocation9 + $0x28] sm:$0xff]
    %v637 = vld [vmem:[#allocation9 + $0x30] sm:$0xff]
    %v638 = vld [vmem:[#allocation9 + $0x38] sm:$0xff]
    %v639 = vld [vmem:[#allocation9 + $0x40] sm:$0xff]
    %v640 = vld [vmem:[#allocation9 + $0x48] sm:$0xff]
    %v641 = vld [vmem:[#allocation9 + $0x50] sm:$0xff]
    %v642 = vld [vmem:[#allocation9 + $0x58] sm:$0xff]
    %v643 = vld [vmem:[#allocation9 + $0x60] sm:$0xff]
    %v644 = vld [vmem:[#allocation9 + $0x68] sm:$0xff]
    %v645 = vld [vmem:[#allocation9 + $0x70] sm:$0xff]
    %v646 = vld [vmem:[#allocation9 + $0x78] sm:$0xff]
    %v647 = vld [vmem:[#allocation9 + $0x80] sm:$0xff]
    %v648 = vld [vmem:[#allocation9 + $0x88] sm:$0xff]
    %v649 = vld [vmem:[#allocation9 + $0x90] sm:$0xff]
    %v650 = vld [vmem:[#allocation9 + $0x98] sm:$0xff]
    %v651 = vld [vmem:[#allocation9 + $0xa0] sm:$0xff]
    %v652 = vld [vmem:[#allocation9 + $0xa8] sm:$0xff]
    %v653 = vld [vmem:[#allocation9 + $0xb0] sm:$0xff]
    %v654 = vld [vmem:[#allocation9 + $0xb8] sm:$0xff]
    %v655 = vld [vmem:[#allocation9 + $0xc0] sm:$0xff]
    %v656 = vld [vmem:[#allocation9 + $0xc8] sm:$0xff]
    %v657 = vld [vmem:[#allocation9 + $0xd0] sm:$0xff]
    %v658 = vld [vmem:[#allocation9 + $0xd8] sm:$0xff]
    %v659 = vld [vmem:[#allocation9 + $0xe0] sm:$0xff]
    %v660 = vld [vmem:[#allocation9 + $0xe8] sm:$0xff]
    %v661 = vld [vmem:[#allocation9 + $0xf0] sm:$0xff]
    %v662 = vld [vmem:[#allocation9 + $0xf8] sm:$0xff]
    %v663 = vld [vmem:[#allocation9 + $0x100] sm:$0xff]
    %v664 = vld [vmem:[#allocation9 + $0x108] sm:$0xff]
    %v665 = vld [vmem:[#allocation9 + $0x110] sm:$0xff]
    %v666 = vld [vmem:[#allocation9 + $0x118] sm:$0xff]
    %v667 = vld [vmem:[#allocation9 + $0x120] sm:$0xff]
    %v668 = vld [vmem:[#allocation9 + $0x128] sm:$0xff]
    %v669 = vld [vmem:[#allocation9 + $0x130] sm:$0xff]
    %v670 = vld [vmem:[#allocation9 + $0x138] sm:$0xff]
    %v671 = vld [vmem:[#allocation9 + $0x140] sm:$0xff]
    %v672 = vld [vmem:[#allocation9 + $0x148] sm:$0xff]
    %v673 = vld [vmem:[#allocation9 + $0x150] sm:$0xff]
    %v674 = vld [vmem:[#allocation9 + $0x158] sm:$0xff]
    %v675 = vld [vmem:[#allocation9 + $0x160] sm:$0xff]
    %v676 = vld [vmem:[#allocation9 + $0x168] sm:$0xff]
    %v677 = vld [vmem:[#allocation9 + $0x170] sm:$0xff]
    %v678 = vld [vmem:[#allocation9 + $0x178] sm:$0xff]
    %v679 = vld [vmem:[#allocation9 + $0x180] sm:$0xff]
    %v680 = vld [vmem:[#allocation9 + $0x188] sm:$0xff]
    %v681 = vld [vmem:[#allocation9 + $0x190] sm:$0xff]
    %v682 = vld [vmem:[#allocation9 + $0x198] sm:$0xff]
    %v683 = vld [vmem:[#allocation9 + $0x1a0] sm:$0xff]
    %v684 = vld [vmem:[#allocation9 + $0x1a8] sm:$0xff]
    %v685 = vld [vmem:[#allocation9 + $0x1b0] sm:$0xff]
    %v686 = vld [vmem:[#allocation9 + $0x1b8] sm:$0xff]
    %v687 = vld [vmem:[#allocation9 + $0x1c0] sm:$0xff]
    %v688 = vld [vmem:[#allocation9 + $0x1c8] sm:$0xff]
    %v689 = vld [vmem:[#allocation9 + $0x1d0] sm:$0xff]
    %v690 = vld [vmem:[#allocation9 + $0x1d8] sm:$0xff]
    %v691 = vld [vmem:[#allocation9 + $0x1e0] sm:$0xff]
    %v692 = vld [vmem:[#allocation9 + $0x1e8] sm:$0xff]
    %v693 = vld [vmem:[#allocation9 + $0x1f0] sm:$0xff]
    %v694 = vld [vmem:[#allocation9 + $0x1f8] sm:$0xff]
    %v695 = vld [vmem:[#allocation12] sm:$0xff]
    %v696 = vld [vmem:[#allocation12 + $0x8] sm:$0xff]
    %v697 = vld [vmem:[#allocation12 + $0x10] sm:$0xff]
    %v698 = vld [vmem:[#allocation12 + $0x18] sm:$0xff]
    %v699 = vld [vmem:[#allocation12 + $0x20] sm:$0xff]
    %v700 = vld [vmem:[#allocation12 + $0x28] sm:$0xff]
    %v701 = vld [vmem:[#allocation12 + $0x30] sm:$0xff]
    %v702 = vld [vmem:[#allocation12 + $0x38] sm:$0xff]
    %v703 = vld [vmem:[#allocation12 + $0x40] sm:$0xff]
    %v704 = vld [vmem:[#allocation12 + $0x48] sm:$0xff]
    %v705 = vld [vmem:[#allocation12 + $0x50] sm:$0xff]
    %v706 = vld [vmem:[#allocation12 + $0x58] sm:$0xff]
    %v707 = vld [vmem:[#allocation12 + $0x60] sm:$0xff]
    %v708 = vld [vmem:[#allocation12 + $0x68] sm:$0xff]
    %v709 = vld [vmem:[#allocation12 + $0x70] sm:$0xff]
    %v710 = vld [vmem:[#allocation12 + $0x78] sm:$0xff]
    %v711 = vld [vmem:[%s5] sm:$0x1]
    %v713 = vlaneseq
    %v714 = vshrl.u32 %v713, 7
    %v715 = vsub.s32 0, %v714
    %v716 = vrot.slane %v711, %v715
    %718 = vmatprep.subr.mxu0 0.0
    %719 = vmatpush1.msra.mxu0 %v695
    %720 = vmatprep.subr.mxu0 0.0
    %721 = vmatpush1.msra.mxu0 %v696
    %722 = vmatprep.subr.mxu0 0.0
    %723 = vmatpush1.msra.mxu0 %v697
    %724 = vmatprep.subr.mxu0 0.0
    %725 = vmatpush1.msra.mxu0 %v698
    %726 = vmatprep.subr.mxu0 0.0
    %727 = vmatpush1.msra.mxu0 %v699
    %728 = vmatprep.subr.mxu0 0.0
    %729 = vmatpush1.msra.mxu0 %v700
    %730 = vmatprep.subr.mxu0 0.0
    %731 = vmatpush1.msra.mxu0 %v701
    %732 = vmatprep.subr.mxu0 0.0
    %733 = vmatpush1.msra.mxu0 %v702
    %734 = vmatprep.subr.mxu0 0.0
    %735 = vmatpush1.msra.mxu0 %v703
    %736 = vmatprep.subr.mxu0 0.0
    %737 = vmatpush1.msra.mxu0 %v704
    %738 = vmatprep.subr.mxu0 0.0
    %739 = vmatpush1.msra.mxu0 %v705
    %740 = vmatprep.subr.mxu0 0.0
    %741 = vmatpush1.msra.mxu0 %v706
    %742 = vmatprep.subr.mxu0 0.0
    %743 = vmatpush1.msra.mxu0 %v707
    %744 = vmatprep.subr.mxu0 0.0
    %745 = vmatpush1.msra.mxu0 %v708
    %746 = vmatprep.subr.mxu0 0.0
    %747 = vmatpush1.msra.mxu0 %v709
    %748 = vmatprep.subr.mxu0 0.0
    %749 = vmatpush1.msra.mxu0 %v710
    %750 = vmatprep.subr.mxu0 0.0
    %751 = vmatpush1.msra.mxu0 0.0
    %752 = vmatprep.subr.mxu0 0.0
    %753 = vmatpush1.msra.mxu0 0.0
    %754 = vmatprep.subr.mxu0 0.0
    %755 = vmatpush1.msra.mxu0 0.0
    %756 = vmatprep.subr.mxu0 0.0
    %757 = vmatpush1.msra.mxu0 0.0
    %758 = vmatprep.subr.mxu0 0.0
    %759 = vmatpush1.msra.mxu0 0.0
    %760 = vmatprep.subr.mxu0 0.0
    %761 = vmatpush1.msra.mxu0 0.0
    %762 = vmatprep.subr.mxu0 0.0
    %763 = vmatpush1.msra.mxu0 0.0
    %764 = vmatprep.subr.mxu0 0.0
    %765 = vmatpush1.msra.mxu0 0.0
    %766 = vmatprep.subr.mxu0 0.0
    %767 = vmatpush1.msra.mxu0 0.0
    %768 = vmatprep.subr.mxu0 0.0
    %769 = vmatpush1.msra.mxu0 0.0
    %770 = vmatprep.subr.mxu0 0.0
    %771 = vmatpush1.msra.mxu0 0.0
    %772 = vmatprep.subr.mxu0 0.0
    %773 = vmatpush1.msra.mxu0 0.0
    %774 = vmatprep.subr.mxu0 0.0
    %775 = vmatpush1.msra.mxu0 0.0
    %776 = vmatprep.subr.mxu0 0.0
    %777 = vmatpush1.msra.mxu0 0.0
    %778 = vmatprep.subr.mxu0 0.0
    %779 = vmatpush1.msra.mxu0 0.0
    %780 = vmatprep.subr.mxu0 0.0
    %781 = vmatpush1.msra.mxu0 0.0
    %782 = vmatprep.mubr.f32.mxu0 0.0
    %783 = vmatmul.mubr.f32.gmra.mrb[0].mxu0 %v631
    %v784 = vpop.f32.mrb[0].mxu0
    %v785 = vadd.f32 %v716, %v784
    %v786 = vpop.f32.mrb[0].mxu0
    %787 = vmatprep.mubr.f32.mxu0 0.0
    %788 = vmatmul.mubr.f32.gmra.mrb[0].mxu0 %v632
    %v789 = vpop.f32.mrb[0].mxu0
    %v790 = vadd.f32 %v716, %v789
    %v791 = vpop.f32.mrb[0].mxu0
    %792 = vmatprep.mubr.f32.mxu0 0.0
    %793 = vmatmul.mubr.f32.gmra.mrb[0].mxu0 %v633
    %v794 = vpop.f32.mrb[0].mxu0
    %v795 = vadd.f32 %v716, %v794
    %v796 = vpop.f32.mrb[0].mxu0
    %797 = vmatprep.mubr.f32.mxu0 0.0
    %798 = vmatmul.mubr.f32.gmra.mrb[0].mxu0 %v634
    %v799 = vpop.f32.mrb[0].mxu0
    %v800 = vadd.f32 %v716, %v799
    %v801 = vpop.f32.mrb[0].mxu0
    %802 = vmatprep.mubr.f32.mxu0 0.0
    %803 = vmatmul.mubr.f32.gmra.mrb[0].mxu0 %v635
    %v804 = vpop.f32.mrb[0].mxu0
    %v805 = vadd.f32 %v716, %v804
    %v806 = vpop.f32.mrb[0].mxu0
    %807 = vmatprep.mubr.f32.mxu0 0.0
    %808 = vmatmul.mubr.f32.gmra.mrb[0].mxu0 %v636
    %v809 = vpop.f32.mrb[0].mxu0
    %v810 = vadd.f32 %v716, %v809
    %v811 = vpop.f32.mrb[0].mxu0
    %812 = vmatprep.mubr.f32.mxu0 0.0
    %813 = vmatmul.mubr.f32.gmra.mrb[0].mxu0 %v637
    %v814 = vpop.f32.mrb[0].mxu0
    %v815 = vadd.f32 %v716, %v814
    %v816 = vpop.f32.mrb[0].mxu0
    %817 = vmatprep.mubr.f32.mxu0 0.0
    %818 = vmatmul.mubr.f32.gmra.mrb[0].mxu0 %v638
    %v819 = vpop.f32.mrb[0].mxu0
    %v820 = vadd.f32 %v716, %v819
    %v821 = vpop.f32.mrb[0].mxu0
    %822 = vmatprep.mubr.f32.mxu0 0.0
    %823 = vmatmul.mubr.f32.gmra.mrb[0].mxu0 %v639
    %v824 = vpop.f32.mrb[0].mxu0
    %v825 = vadd.f32 %v716, %v824
    %v826 = vpop.f32.mrb[0].mxu0
    %827 = vmatprep.mubr.f32.mxu0 0.0
    %828 = vmatmul.mubr.f32.gmra.mrb[0].mxu0 %v640
    %v829 = vpop.f32.mrb[0].mxu0
    %v830 = vadd.f32 %v716, %v829
    %v831 = vpop.f32.mrb[0].mxu0
    %832 = vmatprep.mubr.f32.mxu0 0.0
    %833 = vmatmul.mubr.f32.gmra.mrb[0].mxu0 %v641
    %v834 = vpop.f32.mrb[0].mxu0
    %v835 = vadd.f32 %v716, %v834
    %v836 = vpop.f32.mrb[0].mxu0
    %837 = vmatprep.mubr.f32.mxu0 0.0
    %838 = vmatmul.mubr.f32.gmra.mrb[0].mxu0 %v642
    %v839 = vpop.f32.mrb[0].mxu0
    %v840 = vadd.f32 %v716, %v839
    %v841 = vpop.f32.mrb[0].mxu0
    %842 = vmatprep.mubr.f32.mxu0 0.0
    %843 = vmatmul.mubr.f32.gmra.mrb[0].mxu0 %v643
    %v844 = vpop.f32.mrb[0].mxu0
    %v845 = vadd.f32 %v716, %v844
    %v846 = vpop.f32.mrb[0].mxu0
    %847 = vmatprep.mubr.f32.mxu0 0.0
    %848 = vmatmul.mubr.f32.gmra.mrb[0].mxu0 %v644
    %v849 = vpop.f32.mrb[0].mxu0
    %v850 = vadd.f32 %v716, %v849
    %v851 = vpop.f32.mrb[0].mxu0
    %852 = vmatprep.mubr.f32.mxu0 0.0
    %853 = vmatmul.mubr.f32.gmra.mrb[0].mxu0 %v645
    %v854 = vpop.f32.mrb[0].mxu0
    %v855 = vadd.f32 %v716, %v854
    %v856 = vpop.f32.mrb[0].mxu0
    %857 = vmatprep.mubr.f32.mxu0 0.0
    %858 = vmatmul.mubr.f32.gmra.mrb[0].mxu0 %v646
    %v859 = vpop.f32.mrb[0].mxu0
    %v860 = vadd.f32 %v716, %v859
    %v861 = vpop.f32.mrb[0].mxu0
    %862 = vmatprep.mubr.f32.mxu0 0.0
    %863 = vmatmul.mubr.f32.gmra.mrb[0].mxu0 %v647
    %v864 = vpop.f32.mrb[0].mxu0
    %v865 = vadd.f32 %v716, %v864
    %v866 = vpop.f32.mrb[0].mxu0
    %867 = vmatprep.mubr.f32.mxu0 0.0
    %868 = vmatmul.mubr.f32.gmra.mrb[0].mxu0 %v648
    %v869 = vpop.f32.mrb[0].mxu0
    %v870 = vadd.f32 %v716, %v869
    %v871 = vpop.f32.mrb[0].mxu0
    %872 = vmatprep.mubr.f32.mxu0 0.0
    %873 = vmatmul.mubr.f32.gmra.mrb[0].mxu0 %v649
    %v874 = vpop.f32.mrb[0].mxu0
    %v875 = vadd.f32 %v716, %v874
    %v876 = vpop.f32.mrb[0].mxu0
    %877 = vmatprep.mubr.f32.mxu0 0.0
    %878 = vmatmul.mubr.f32.gmra.mrb[0].mxu0 %v650
    %v879 = vpop.f32.mrb[0].mxu0
    %v880 = vadd.f32 %v716, %v879
    %v881 = vpop.f32.mrb[0].mxu0
    %882 = vmatprep.mubr.f32.mxu0 0.0
    %883 = vmatmul.mubr.f32.gmra.mrb[0].mxu0 %v651
    %v884 = vpop.f32.mrb[0].mxu0
    %v885 = vadd.f32 %v716, %v884
    %v886 = vpop.f32.mrb[0].mxu0
    %887 = vmatprep.mubr.f32.mxu0 0.0
    %888 = vmatmul.mubr.f32.gmra.mrb[0].mxu0 %v652
    %v889 = vpop.f32.mrb[0].mxu0
    %v890 = vadd.f32 %v716, %v889
    %v891 = vpop.f32.mrb[0].mxu0
    %892 = vmatprep.mubr.f32.mxu0 0.0
    %893 = vmatmul.mubr.f32.gmra.mrb[0].mxu0 %v653
    %v894 = vpop.f32.mrb[0].mxu0
    %v895 = vadd.f32 %v716, %v894
    %v896 = vpop.f32.mrb[0].mxu0
    %897 = vmatprep.mubr.f32.mxu0 0.0
    %898 = vmatmul.mubr.f32.gmra.mrb[0].mxu0 %v654
    %v899 = vpop.f32.mrb[0].mxu0
    %v900 = vadd.f32 %v716, %v899
    %v901 = vpop.f32.mrb[0].mxu0
    %902 = vmatprep.mubr.f32.mxu0 0.0
    %903 = vmatmul.mubr.f32.gmra.mrb[0].mxu0 %v655
    %v904 = vpop.f32.mrb[0].mxu0
    %v905 = vadd.f32 %v716, %v904
    %v906 = vpop.f32.mrb[0].mxu0
    %907 = vmatprep.mubr.f32.mxu0 0.0
    %908 = vmatmul.mubr.f32.gmra.mrb[0].mxu0 %v656
    %v909 = vpop.f32.mrb[0].mxu0
    %v910 = vadd.f32 %v716, %v909
    %v911 = vpop.f32.mrb[0].mxu0
    %912 = vmatprep.mubr.f32.mxu0 0.0
    %913 = vmatmul.mubr.f32.gmra.mrb[0].mxu0 %v657
    %v914 = vpop.f32.mrb[0].mxu0
    %v915 = vadd.f32 %v716, %v914
    %v916 = vpop.f32.mrb[0].mxu0
    %917 = vmatprep.mubr.f32.mxu0 0.0
    %918 = vmatmul.mubr.f32.gmra.mrb[0].mxu0 %v658
    %v919 = vpop.f32.mrb[0].mxu0
    %v920 = vadd.f32 %v716, %v919
    %v921 = vpop.f32.mrb[0].mxu0
    %922 = vmatprep.mubr.f32.mxu0 0.0
    %923 = vmatmul.mubr.f32.gmra.mrb[0].mxu0 %v659
    %v924 = vpop.f32.mrb[0].mxu0
    %v925 = vadd.f32 %v716, %v924
    %v926 = vpop.f32.mrb[0].mxu0
    %927 = vmatprep.mubr.f32.mxu0 0.0
    %928 = vmatmul.mubr.f32.gmra.mrb[0].mxu0 %v660
    %v929 = vpop.f32.mrb[0].mxu0
    %v930 = vadd.f32 %v716, %v929
    %v931 = vpop.f32.mrb[0].mxu0
    %932 = vmatprep.mubr.f32.mxu0 0.0
    %933 = vmatmul.mubr.f32.gmra.mrb[0].mxu0 %v661
    %v934 = vpop.f32.mrb[0].mxu0
    %v935 = vadd.f32 %v716, %v934
    %v936 = vpop.f32.mrb[0].mxu0
    %937 = vmatprep.mubr.f32.mxu0 0.0
    %938 = vmatmul.mubr.f32.gmra.mrb[0].mxu0 %v662
    %v939 = vpop.f32.mrb[0].mxu0
    %v940 = vadd.f32 %v716, %v939
    %v941 = vpop.f32.mrb[0].mxu0
    %942 = vmatprep.mubr.f32.mxu0 0.0
    %943 = vmatmul.mubr.f32.gmra.mrb[0].mxu0 %v663
    %v944 = vpop.f32.mrb[0].mxu0
    %v945 = vadd.f32 %v716, %v944
    %v946 = vpop.f32.mrb[0].mxu0
    %947 = vmatprep.mubr.f32.mxu0 0.0
    %948 = vmatmul.mubr.f32.gmra.mrb[0].mxu0 %v664
    %v949 = vpop.f32.mrb[0].mxu0
    %v950 = vadd.f32 %v716, %v949
    %v951 = vpop.f32.mrb[0].mxu0
    %952 = vmatprep.mubr.f32.mxu0 0.0
    %953 = vmatmul.mubr.f32.gmra.mrb[0].mxu0 %v665
    %v954 = vpop.f32.mrb[0].mxu0
    %v955 = vadd.f32 %v716, %v954
    %v956 = vpop.f32.mrb[0].mxu0
    %957 = vmatprep.mubr.f32.mxu0 0.0
    %958 = vmatmul.mubr.f32.gmra.mrb[0].mxu0 %v666
    %v959 = vpop.f32.mrb[0].mxu0
    %v960 = vadd.f32 %v716, %v959
    %v961 = vpop.f32.mrb[0].mxu0
    %962 = vmatprep.mubr.f32.mxu0 0.0
    %963 = vmatmul.mubr.f32.gmra.mrb[0].mxu0 %v667
    %v964 = vpop.f32.mrb[0].mxu0
    %v965 = vadd.f32 %v716, %v964
    %v966 = vpop.f32.mrb[0].mxu0
    %967 = vmatprep.mubr.f32.mxu0 0.0
    %968 = vmatmul.mubr.f32.gmra.mrb[0].mxu0 %v668
    %v969 = vpop.f32.mrb[0].mxu0
    %v970 = vadd.f32 %v716, %v969
    %v971 = vpop.f32.mrb[0].mxu0
    %972 = vmatprep.mubr.f32.mxu0 0.0
    %973 = vmatmul.mubr.f32.gmra.mrb[0].mxu0 %v669
    %v974 = vpop.f32.mrb[0].mxu0
    %v975 = vadd.f32 %v716, %v974
    %v976 = vpop.f32.mrb[0].mxu0
    %977 = vmatprep.mubr.f32.mxu0 0.0
    %978 = vmatmul.mubr.f32.gmra.mrb[0].mxu0 %v670
    %v979 = vpop.f32.mrb[0].mxu0
    %v980 = vadd.f32 %v716, %v979
    %v981 = vpop.f32.mrb[0].mxu0
    %982 = vmatprep.mubr.f32.mxu0 0.0
    %983 = vmatmul.mubr.f32.gmra.mrb[0].mxu0 %v671
    %v984 = vpop.f32.mrb[0].mxu0
    %v985 = vadd.f32 %v716, %v984
    %v986 = vpop.f32.mrb[0].mxu0
    %987 = vmatprep.mubr.f32.mxu0 0.0
    %988 = vmatmul.mubr.f32.gmra.mrb[0].mxu0 %v672
    %v989 = vpop.f32.mrb[0].mxu0
    %v990 = vadd.f32 %v716, %v989
    %v991 = vpop.f32.mrb[0].mxu0
    %992 = vmatprep.mubr.f32.mxu0 0.0
    %993 = vmatmul.mubr.f32.gmra.mrb[0].mxu0 %v673
    %v994 = vpop.f32.mrb[0].mxu0
    %v995 = vadd.f32 %v716, %v994
    %v996 = vpop.f32.mrb[0].mxu0
    %997 = vmatprep.mubr.f32.mxu0 0.0
    %998 = vmatmul.mubr.f32.gmra.mrb[0].mxu0 %v674
    %v999 = vpop.f32.mrb[0].mxu0
    %v1000 = vadd.f32 %v716, %v999
    %v1001 = vpop.f32.mrb[0].mxu0
    %1002 = vmatprep.mubr.f32.mxu0 0.0
    %1003 = vmatmul.mubr.f32.gmra.mrb[0].mxu0 %v675
    %v1004 = vpop.f32.mrb[0].mxu0
    %v1005 = vadd.f32 %v716, %v1004
    %v1006 = vpop.f32.mrb[0].mxu0
    %1007 = vmatprep.mubr.f32.mxu0 0.0
    %1008 = vmatmul.mubr.f32.gmra.mrb[0].mxu0 %v676
    %v1009 = vpop.f32.mrb[0].mxu0
    %v1010 = vadd.f32 %v716, %v1009
    %v1011 = vpop.f32.mrb[0].mxu0
    %1012 = vmatprep.mubr.f32.mxu0 0.0
    %1013 = vmatmul.mubr.f32.gmra.mrb[0].mxu0 %v677
    %v1014 = vpop.f32.mrb[0].mxu0
    %v1015 = vadd.f32 %v716, %v1014
    %v1016 = vpop.f32.mrb[0].mxu0
    %1017 = vmatprep.mubr.f32.mxu0 0.0
    %1018 = vmatmul.mubr.f32.gmra.mrb[0].mxu0 %v678
    %v1019 = vpop.f32.mrb[0].mxu0
    %v1020 = vadd.f32 %v716, %v1019
    %v1021 = vpop.f32.mrb[0].mxu0
    %1022 = vmatprep.mubr.f32.mxu0 0.0
    %1023 = vmatmul.mubr.f32.gmra.mrb[0].mxu0 %v679
    %v1024 = vpop.f32.mrb[0].mxu0
    %v1025 = vadd.f32 %v716, %v1024
    %v1026 = vpop.f32.mrb[0].mxu0
    %1027 = vmatprep.mubr.f32.mxu0 0.0
    %1028 = vmatmul.mubr.f32.gmra.mrb[0].mxu0 %v680
    %v1029 = vpop.f32.mrb[0].mxu0
    %v1030 = vadd.f32 %v716, %v1029
    %v1031 = vpop.f32.mrb[0].mxu0
    %1032 = vmatprep.mubr.f32.mxu0 0.0
    %1033 = vmatmul.mubr.f32.gmra.mrb[0].mxu0 %v681
    %v1034 = vpop.f32.mrb[0].mxu0
    %v1035 = vadd.f32 %v716, %v1034
    %v1036 = vpop.f32.mrb[0].mxu0
    %1037 = vmatprep.mubr.f32.mxu0 0.0
    %1038 = vmatmul.mubr.f32.gmra.mrb[0].mxu0 %v682
    %v1039 = vpop.f32.mrb[0].mxu0
    %v1040 = vadd.f32 %v716, %v1039
    %v1041 = vpop.f32.mrb[0].mxu0
    %1042 = vmatprep.mubr.f32.mxu0 0.0
    %1043 = vmatmul.mubr.f32.gmra.mrb[0].mxu0 %v683
    %v1044 = vpop.f32.mrb[0].mxu0
    %v1045 = vadd.f32 %v716, %v1044
    %v1046 = vpop.f32.mrb[0].mxu0
    %1047 = vmatprep.mubr.f32.mxu0 0.0
    %1048 = vmatmul.mubr.f32.gmra.mrb[0].mxu0 %v684
    %v1049 = vpop.f32.mrb[0].mxu0
    %v1050 = vadd.f32 %v716, %v1049
    %v1051 = vpop.f32.mrb[0].mxu0
    %1052 = vmatprep.mubr.f32.mxu0 0.0
    %1053 = vmatmul.mubr.f32.gmra.mrb[0].mxu0 %v685
    %v1054 = vpop.f32.mrb[0].mxu0
    %v1055 = vadd.f32 %v716, %v1054
    %v1056 = vpop.f32.mrb[0].mxu0
    %1057 = vmatprep.mubr.f32.mxu0 0.0
    %1058 = vmatmul.mubr.f32.gmra.mrb[0].mxu0 %v686
    %v1059 = vpop.f32.mrb[0].mxu0
    %v1060 = vadd.f32 %v716, %v1059
    %v1061 = vpop.f32.mrb[0].mxu0
    %1062 = vmatprep.mubr.f32.mxu0 0.0
    %1063 = vmatmul.mubr.f32.gmra.mrb[0].mxu0 %v687
    %v1064 = vpop.f32.mrb[0].mxu0
    %v1065 = vadd.f32 %v716, %v1064
    %v1066 = vpop.f32.mrb[0].mxu0
    %1067 = vmatprep.mubr.f32.mxu0 0.0
    %1068 = vmatmul.mubr.f32.gmra.mrb[0].mxu0 %v688
    %v1069 = vpop.f32.mrb[0].mxu0
    %v1070 = vadd.f32 %v716, %v1069
    %v1071 = vpop.f32.mrb[0].mxu0
    %1072 = vmatprep.mubr.f32.mxu0 0.0
    %1073 = vmatmul.mubr.f32.gmra.mrb[0].mxu0 %v689
    %v1074 = vpop.f32.mrb[0].mxu0
    %v1075 = vadd.f32 %v716, %v1074
    %v1076 = vpop.f32.mrb[0].mxu0
    %1077 = vmatprep.mubr.f32.mxu0 0.0
    %1078 = vmatmul.mubr.f32.gmra.mrb[0].mxu0 %v690
    %v1079 = vpop.f32.mrb[0].mxu0
    %v1080 = vadd.f32 %v716, %v1079
    %v1081 = vpop.f32.mrb[0].mxu0
    %1082 = vmatprep.mubr.f32.mxu0 0.0
    %1083 = vmatmul.mubr.f32.gmra.mrb[0].mxu0 %v691
    %v1084 = vpop.f32.mrb[0].mxu0
    %v1085 = vadd.f32 %v716, %v1084
    %v1086 = vpop.f32.mrb[0].mxu0
    %1087 = vmatprep.mubr.f32.mxu0 0.0
    %1088 = vmatmul.mubr.f32.gmra.mrb[0].mxu0 %v692
    %v1089 = vpop.f32.mrb[0].mxu0
    %v1090 = vadd.f32 %v716, %v1089
    %v1091 = vpop.f32.mrb[0].mxu0
    %1092 = vmatprep.mubr.f32.mxu0 0.0
    %1093 = vmatmul.mubr.f32.gmra.mrb[0].mxu0 %v693
    %v1094 = vpop.f32.mrb[0].mxu0
    %v1095 = vadd.f32 %v716, %v1094
    %v1096 = vpop.f32.mrb[0].mxu0
    %1097 = vmatprep.mubr.f32.mxu0 0.0
    %1098 = vmatmul.mubr.f32.gmra.mrb[0].mxu0 %v694
    %v1099 = vpop.f32.mrb[0].mxu0
    %v1100 = vadd.f32 %v716, %v1099
    %v1101 = vpop.f32.mrb[0].mxu0
    %1102 = vdwg.mxu0
    %v1103 = vxor.u32 %v785, 2147483648
    %v1104 = vxor.u32 %v790, 2147483648
    %v1105 = vxor.u32 %v795, 2147483648
    %v1106 = vxor.u32 %v800, 2147483648
    %v1107 = vxor.u32 %v805, 2147483648
    %v1108 = vxor.u32 %v810, 2147483648
    %v1109 = vxor.u32 %v815, 2147483648
    %v1110 = vxor.u32 %v820, 2147483648
    %v1111 = vxor.u32 %v825, 2147483648
    %v1112 = vxor.u32 %v830, 2147483648
    %v1113 = vxor.u32 %v835, 2147483648
    %v1114 = vxor.u32 %v840, 2147483648
    %v1115 = vxor.u32 %v845, 2147483648
    %v1116 = vxor.u32 %v850, 2147483648
    %v1117 = vxor.u32 %v855, 2147483648
    %v1118 = vxor.u32 %v860, 2147483648
    %v1119 = vxor.u32 %v865, 2147483648
    %v1120 = vxor.u32 %v870, 2147483648
    %v1121 = vxor.u32 %v875, 2147483648
    %v1122 = vxor.u32 %v880, 2147483648
    %v1123 = vxor.u32 %v885, 2147483648
    %v1124 = vxor.u32 %v890, 2147483648
    %v1125 = vxor.u32 %v895, 2147483648
    %v1126 = vxor.u32 %v900, 2147483648
    %v1127 = vxor.u32 %v905, 2147483648
    %v1128 = vxor.u32 %v910, 2147483648
    %v1129 = vxor.u32 %v915, 2147483648
    %v1130 = vxor.u32 %v920, 2147483648
    %v1131 = vxor.u32 %v925, 2147483648
    %v1132 = vxor.u32 %v930, 2147483648
    %v1133 = vxor.u32 %v935, 2147483648
    %v1134 = vxor.u32 %v940, 2147483648
    %v1135 = vxor.u32 %v945, 2147483648
    %v1136 = vxor.u32 %v950, 2147483648
    %v1137 = vxor.u32 %v955, 2147483648
    %v1138 = vxor.u32 %v960, 2147483648
    %v1139 = vxor.u32 %v965, 2147483648
    %v1140 = vxor.u32 %v970, 2147483648
    %v1141 = vxor.u32 %v975, 2147483648
    %v1142 = vxor.u32 %v980, 2147483648
    %v1143 = vxor.u32 %v985, 2147483648
    %v1144 = vxor.u32 %v990, 2147483648
    %v1145 = vxor.u32 %v995, 2147483648
    %v1146 = vxor.u32 %v1000, 2147483648
    %v1147 = vxor.u32 %v1005, 2147483648
    %v1148 = vxor.u32 %v1010, 2147483648
    %v1149 = vxor.u32 %v1015, 2147483648
    %v1150 = vxor.u32 %v1020, 2147483648
    %v1151 = vxor.u32 %v1025, 2147483648
    %v1152 = vxor.u32 %v1030, 2147483648
    %v1153 = vxor.u32 %v1035, 2147483648
    %v1154 = vxor.u32 %v1040, 2147483648
    %v1155 = vxor.u32 %v1045, 2147483648
    %v1156 = vxor.u32 %v1050, 2147483648
    %v1157 = vxor.u32 %v1055, 2147483648
    %v1158 = vxor.u32 %v1060, 2147483648
    %v1159 = vxor.u32 %v1065, 2147483648
    %v1160 = vxor.u32 %v1070, 2147483648
    %v1161 = vxor.u32 %v1075, 2147483648
    %v1162 = vxor.u32 %v1080, 2147483648
    %v1163 = vxor.u32 %v1085, 2147483648
    %v1164 = vxor.u32 %v1090, 2147483648
    %v1165 = vxor.u32 %v1095, 2147483648
    %v1166 = vxor.u32 %v1100, 2147483648
    %v1167 = vmul.f32 %v1103, 1.442695
    %v1168 = vpow.pop %v1167
    %v1169 = vmul.f32 %v1104, 1.442695
    %v1170 = vpow.pop %v1169
    %v1171 = vmul.f32 %v1105, 1.442695
    %v1172 = vpow.pop %v1171
    %v1173 = vmul.f32 %v1106, 1.442695
    %v1174 = vpow.pop %v1173
    %v1175 = vmul.f32 %v1107, 1.442695
    %v1176 = vpow.pop %v1175
    %v1177 = vmul.f32 %v1108, 1.442695
    %v1178 = vpow.pop %v1177
    %v1179 = vmul.f32 %v1109, 1.442695
    %v1180 = vpow.pop %v1179
    %v1181 = vmul.f32 %v1110, 1.442695
    %v1182 = vpow.pop %v1181
    %v1183 = vmul.f32 %v1111, 1.442695
    %v1184 = vpow.pop %v1183
    %v1185 = vmul.f32 %v1112, 1.442695
    %v1186 = vpow.pop %v1185
    %v1187 = vmul.f32 %v1113, 1.442695
    %v1188 = vpow.pop %v1187
    %v1189 = vmul.f32 %v1114, 1.442695
    %v1190 = vpow.pop %v1189
    %v1191 = vmul.f32 %v1115, 1.442695
    %v1192 = vpow.pop %v1191
    %v1193 = vmul.f32 %v1116, 1.442695
    %v1194 = vpow.pop %v1193
    %v1195 = vmul.f32 %v1117, 1.442695
    %v1196 = vpow.pop %v1195
    %v1197 = vmul.f32 %v1118, 1.442695
    %v1198 = vpow.pop %v1197
    %v1199 = vmul.f32 %v1119, 1.442695
    %v1200 = vpow.pop %v1199
    %v1201 = vmul.f32 %v1120, 1.442695
    %v1202 = vpow.pop %v1201
    %v1203 = vmul.f32 %v1121, 1.442695
    %v1204 = vpow.pop %v1203
    %v1205 = vmul.f32 %v1122, 1.442695
    %v1206 = vpow.pop %v1205
    %v1207 = vmul.f32 %v1123, 1.442695
    %v1208 = vpow.pop %v1207
    %v1209 = vmul.f32 %v1124, 1.442695
    %v1210 = vpow.pop %v1209
    %v1211 = vmul.f32 %v1125, 1.442695
    %v1212 = vpow.pop %v1211
    %v1213 = vmul.f32 %v1126, 1.442695
    %v1214 = vpow.pop %v1213
    %v1215 = vmul.f32 %v1127, 1.442695
    %v1216 = vpow.pop %v1215
    %v1217 = vmul.f32 %v1128, 1.442695
    %v1218 = vpow.pop %v1217
    %v1219 = vmul.f32 %v1129, 1.442695
    %v1220 = vpow.pop %v1219
    %v1221 = vmul.f32 %v1130, 1.442695
    %v1222 = vpow.pop %v1221
    %v1223 = vmul.f32 %v1131, 1.442695
    %v1224 = vpow.pop %v1223
    %v1225 = vmul.f32 %v1132, 1.442695
    %v1226 = vpow.pop %v1225
    %v1227 = vmul.f32 %v1133, 1.442695
    %v1228 = vpow.pop %v1227
    %v1229 = vmul.f32 %v1134, 1.442695
    %v1230 = vpow.pop %v1229
    %v1231 = vmul.f32 %v1135, 1.442695
    %v1232 = vpow.pop %v1231
    %v1233 = vmul.f32 %v1136, 1.442695
    %v1234 = vpow.pop %v1233
    %v1235 = vmul.f32 %v1137, 1.442695
    %v1236 = vpow.pop %v1235
    %v1237 = vmul.f32 %v1138, 1.442695
    %v1238 = vpow.pop %v1237
    %v1239 = vmul.f32 %v1139, 1.442695
    %v1240 = vpow.pop %v1239
    %v1241 = vmul.f32 %v1140, 1.442695
    %v1242 = vpow.pop %v1241
    %v1243 = vmul.f32 %v1141, 1.442695
    %v1244 = vpow.pop %v1243
    %v1245 = vmul.f32 %v1142, 1.442695
    %v1246 = vpow.pop %v1245
    %v1247 = vmul.f32 %v1143, 1.442695
    %v1248 = vpow.pop %v1247
    %v1249 = vmul.f32 %v1144, 1.442695
    %v1250 = vpow.pop %v1249
    %v1251 = vmul.f32 %v1145, 1.442695
    %v1252 = vpow.pop %v1251
    %v1253 = vmul.f32 %v1146, 1.442695
    %v1254 = vpow.pop %v1253
    %v1255 = vmul.f32 %v1147, 1.442695
    %v1256 = vpow.pop %v1255
    %v1257 = vmul.f32 %v1148, 1.442695
    %v1258 = vpow.pop %v1257
    %v1259 = vmul.f32 %v1149, 1.442695
    %v1260 = vpow.pop %v1259
    %v1261 = vmul.f32 %v1150, 1.442695
    %v1262 = vpow.pop %v1261
    %v1263 = vmul.f32 %v1151, 1.442695
    %v1264 = vpow.pop %v1263
    %v1265 = vmul.f32 %v1152, 1.442695
    %v1266 = vpow.pop %v1265
    %v1267 = vmul.f32 %v1153, 1.442695
    %v1268 = vpow.pop %v1267
    %v1269 = vmul.f32 %v1154, 1.442695
    %v1270 = vpow.pop %v1269
    %v1271 = vmul.f32 %v1155, 1.442695
    %v1272 = vpow.pop %v1271
    %v1273 = vmul.f32 %v1156, 1.442695
    %v1274 = vpow.pop %v1273
    %v1275 = vmul.f32 %v1157, 1.442695
    %v1276 = vpow.pop %v1275
    %v1277 = vmul.f32 %v1158, 1.442695
    %v1278 = vpow.pop %v1277
    %v1279 = vmul.f32 %v1159, 1.442695
    %v1280 = vpow.pop %v1279
    %v1281 = vmul.f32 %v1160, 1.442695
    %v1282 = vpow.pop %v1281
    %v1283 = vmul.f32 %v1161, 1.442695
    %v1284 = vpow.pop %v1283
    %v1285 = vmul.f32 %v1162, 1.442695
    %v1286 = vpow.pop %v1285
    %v1287 = vmul.f32 %v1163, 1.442695
    %v1288 = vpow.pop %v1287
    %v1289 = vmul.f32 %v1164, 1.442695
    %v1290 = vpow.pop %v1289
    %v1291 = vmul.f32 %v1165, 1.442695
    %v1292 = vpow.pop %v1291
    %v1293 = vmul.f32 %v1166, 1.442695
    %v1294 = vpow.pop %v1293
    %v1295 = vadd.f32 %v1168, 1.0
    %v1296 = vadd.f32 %v1170, 1.0
    %v1297 = vadd.f32 %v1172, 1.0
    %v1298 = vadd.f32 %v1174, 1.0
    %v1299 = vadd.f32 %v1176, 1.0
    %v1300 = vadd.f32 %v1178, 1.0
    %v1301 = vadd.f32 %v1180, 1.0
    %v1302 = vadd.f32 %v1182, 1.0
    %v1303 = vadd.f32 %v1184, 1.0
    %v1304 = vadd.f32 %v1186, 1.0
    %v1305 = vadd.f32 %v1188, 1.0
    %v1306 = vadd.f32 %v1190, 1.0
    %v1307 = vadd.f32 %v1192, 1.0
    %v1308 = vadd.f32 %v1194, 1.0
    %v1309 = vadd.f32 %v1196, 1.0
    %v1310 = vadd.f32 %v1198, 1.0
    %v1311 = vadd.f32 %v1200, 1.0
    %v1312 = vadd.f32 %v1202, 1.0
    %v1313 = vadd.f32 %v1204, 1.0
    %v1314 = vadd.f32 %v1206, 1.0
    %v1315 = vadd.f32 %v1208, 1.0
    %v1316 = vadd.f32 %v1210, 1.0
    %v1317 = vadd.f32 %v1212, 1.0
    %v1318 = vadd.f32 %v1214, 1.0
    %v1319 = vadd.f32 %v1216, 1.0
    %v1320 = vadd.f32 %v1218, 1.0
    %v1321 = vadd.f32 %v1220, 1.0
    %v1322 = vadd.f32 %v1222, 1.0
    %v1323 = vadd.f32 %v1224, 1.0
    %v1324 = vadd.f32 %v1226, 1.0
    %v1325 = vadd.f32 %v1228, 1.0
    %v1326 = vadd.f32 %v1230, 1.0
    %v1327 = vadd.f32 %v1232, 1.0
    %v1328 = vadd.f32 %v1234, 1.0
    %v1329 = vadd.f32 %v1236, 1.0
    %v1330 = vadd.f32 %v1238, 1.0
    %v1331 = vadd.f32 %v1240, 1.0
    %v1332 = vadd.f32 %v1242, 1.0
    %v1333 = vadd.f32 %v1244, 1.0
    %v1334 = vadd.f32 %v1246, 1.0
    %v1335 = vadd.f32 %v1248, 1.0
    %v1336 = vadd.f32 %v1250, 1.0
    %v1337 = vadd.f32 %v1252, 1.0
    %v1338 = vadd.f32 %v1254, 1.0
    %v1339 = vadd.f32 %v1256, 1.0
    %v1340 = vadd.f32 %v1258, 1.0
    %v1341 = vadd.f32 %v1260, 1.0
    %v1342 = vadd.f32 %v1262, 1.0
    %v1343 = vadd.f32 %v1264, 1.0
    %v1344 = vadd.f32 %v1266, 1.0
    %v1345 = vadd.f32 %v1268, 1.0
    %v1346 = vadd.f32 %v1270, 1.0
    %v1347 = vadd.f32 %v1272, 1.0
    %v1348 = vadd.f32 %v1274, 1.0
    %v1349 = vadd.f32 %v1276, 1.0
    %v1350 = vadd.f32 %v1278, 1.0
    %v1351 = vadd.f32 %v1280, 1.0
    %v1352 = vadd.f32 %v1282, 1.0
    %v1353 = vadd.f32 %v1284, 1.0
    %v1354 = vadd.f32 %v1286, 1.0
    %v1355 = vadd.f32 %v1288, 1.0
    %v1356 = vadd.f32 %v1290, 1.0
    %v1357 = vadd.f32 %v1292, 1.0
    %v1358 = vadd.f32 %v1294, 1.0
    %v1359 = vrcp.pop %v1295
    %v1360 = vmul.f32 1.0, %v1359
    %v1361 = vrcp.pop %v1296
    %v1362 = vmul.f32 1.0, %v1361
    %v1363 = vrcp.pop %v1297
    %v1364 = vmul.f32 1.0, %v1363
    %v1365 = vrcp.pop %v1298
    %v1366 = vmul.f32 1.0, %v1365
    %v1367 = vrcp.pop %v1299
    %v1368 = vmul.f32 1.0, %v1367
    %v1369 = vrcp.pop %v1300
    %v1370 = vmul.f32 1.0, %v1369
    %v1371 = vrcp.pop %v1301
    %v1372 = vmul.f32 1.0, %v1371
    %v1373 = vrcp.pop %v1302
    %v1374 = vmul.f32 1.0, %v1373
    %v1375 = vrcp.pop %v1303
    %v1376 = vmul.f32 1.0, %v1375
    %v1377 = vrcp.pop %v1304
    %v1378 = vmul.f32 1.0, %v1377
    %v1379 = vrcp.pop %v1305
    %v1380 = vmul.f32 1.0, %v1379
    %v1381 = vrcp.pop %v1306
    %v1382 = vmul.f32 1.0, %v1381
    %v1383 = vrcp.pop %v1307
    %v1384 = vmul.f32 1.0, %v1383
    %v1385 = vrcp.pop %v1308
    %v1386 = vmul.f32 1.0, %v1385
    %v1387 = vrcp.pop %v1309
    %v1388 = vmul.f32 1.0, %v1387
    %v1389 = vrcp.pop %v1310
    %v1390 = vmul.f32 1.0, %v1389
    %v1391 = vrcp.pop %v1311
    %v1392 = vmul.f32 1.0, %v1391
    %v1393 = vrcp.pop %v1312
    %v1394 = vmul.f32 1.0, %v1393
    %v1395 = vrcp.pop %v1313
    %v1396 = vmul.f32 1.0, %v1395
    %v1397 = vrcp.pop %v1314
    %v1398 = vmul.f32 1.0, %v1397
    %v1399 = vrcp.pop %v1315
    %v1400 = vmul.f32 1.0, %v1399
    %v1401 = vrcp.pop %v1316
    %v1402 = vmul.f32 1.0, %v1401
    %v1403 = vrcp.pop %v1317
    %v1404 = vmul.f32 1.0, %v1403
    %v1405 = vrcp.pop %v1318
    %v1406 = vmul.f32 1.0, %v1405
    %v1407 = vrcp.pop %v1319
    %v1408 = vmul.f32 1.0, %v1407
    %v1409 = vrcp.pop %v1320
    %v1410 = vmul.f32 1.0, %v1409
    %v1411 = vrcp.pop %v1321
    %v1412 = vmul.f32 1.0, %v1411
    %v1413 = vrcp.pop %v1322
    %v1414 = vmul.f32 1.0, %v1413
    %v1415 = vrcp.pop %v1323
    %v1416 = vmul.f32 1.0, %v1415
    %v1417 = vrcp.pop %v1324
    %v1418 = vmul.f32 1.0, %v1417
    %v1419 = vrcp.pop %v1325
    %v1420 = vmul.f32 1.0, %v1419
    %v1421 = vrcp.pop %v1326
    %v1422 = vmul.f32 1.0, %v1421
    %v1423 = vrcp.pop %v1327
    %v1424 = vmul.f32 1.0, %v1423
    %v1425 = vrcp.pop %v1328
    %v1426 = vmul.f32 1.0, %v1425
    %v1427 = vrcp.pop %v1329
    %v1428 = vmul.f32 1.0, %v1427
    %v1429 = vrcp.pop %v1330
    %v1430 = vmul.f32 1.0, %v1429
    %v1431 = vrcp.pop %v1331
    %v1432 = vmul.f32 1.0, %v1431
    %v1433 = vrcp.pop %v1332
    %v1434 = vmul.f32 1.0, %v1433
    %v1435 = vrcp.pop %v1333
    %v1436 = vmul.f32 1.0, %v1435
    %v1437 = vrcp.pop %v1334
    %v1438 = vmul.f32 1.0, %v1437
    %v1439 = vrcp.pop %v1335
    %v1440 = vmul.f32 1.0, %v1439
    %v1441 = vrcp.pop %v1336
    %v1442 = vmul.f32 1.0, %v1441
    %v1443 = vrcp.pop %v1337
    %v1444 = vmul.f32 1.0, %v1443
    %v1445 = vrcp.pop %v1338
    %v1446 = vmul.f32 1.0, %v1445
    %v1447 = vrcp.pop %v1339
    %v1448 = vmul.f32 1.0, %v1447
    %v1449 = vrcp.pop %v1340
    %v1450 = vmul.f32 1.0, %v1449
    %v1451 = vrcp.pop %v1341
    %v1452 = vmul.f32 1.0, %v1451
    %v1453 = vrcp.pop %v1342
    %v1454 = vmul.f32 1.0, %v1453
    %v1455 = vrcp.pop %v1343
    %v1456 = vmul.f32 1.0, %v1455
    %v1457 = vrcp.pop %v1344
    %v1458 = vmul.f32 1.0, %v1457
    %v1459 = vrcp.pop %v1345
    %v1460 = vmul.f32 1.0, %v1459
    %v1461 = vrcp.pop %v1346
    %v1462 = vmul.f32 1.0, %v1461
    %v1463 = vrcp.pop %v1347
    %v1464 = vmul.f32 1.0, %v1463
    %v1465 = vrcp.pop %v1348
    %v1466 = vmul.f32 1.0, %v1465
    %v1467 = vrcp.pop %v1349
    %v1468 = vmul.f32 1.0, %v1467
    %v1469 = vrcp.pop %v1350
    %v1470 = vmul.f32 1.0, %v1469
    %v1471 = vrcp.pop %v1351
    %v1472 = vmul.f32 1.0, %v1471
    %v1473 = vrcp.pop %v1352
    %v1474 = vmul.f32 1.0, %v1473
    %v1475 = vrcp.pop %v1353
    %v1476 = vmul.f32 1.0, %v1475
    %v1477 = vrcp.pop %v1354
    %v1478 = vmul.f32 1.0, %v1477
    %v1479 = vrcp.pop %v1355
    %v1480 = vmul.f32 1.0, %v1479
    %v1481 = vrcp.pop %v1356
    %v1482 = vmul.f32 1.0, %v1481
    %v1483 = vrcp.pop %v1357
    %v1484 = vmul.f32 1.0, %v1483
    %v1485 = vrcp.pop %v1358
    %v1486 = vmul.f32 1.0, %v1485
    %1487 = vst [vmem:[#allocation3] sm:$0xff] %v1360
    %1488 = vst [vmem:[#allocation3 + $0x8] sm:$0xff] %v1362
    %1489 = vst [vmem:[#allocation3 + $0x10] sm:$0xff] %v1364
    %1490 = vst [vmem:[#allocation3 + $0x18] sm:$0xff] %v1366
    %1491 = vst [vmem:[#allocation3 + $0x20] sm:$0xff] %v1368
    %1492 = vst [vmem:[#allocation3 + $0x28] sm:$0xff] %v1370
    %1493 = vst [vmem:[#allocation3 + $0x30] sm:$0xff] %v1372
    %1494 = vst [vmem:[#allocation3 + $0x38] sm:$0xff] %v1374
    %1495 = vst [vmem:[#allocation3 + $0x40] sm:$0xff] %v1376
    %1496 = vst [vmem:[#allocation3 + $0x48] sm:$0xff] %v1378
    %1497 = vst [vmem:[#allocation3 + $0x50] sm:$0xff] %v1380
    %1498 = vst [vmem:[#allocation3 + $0x58] sm:$0xff] %v1382
    %1499 = vst [vmem:[#allocation3 + $0x60] sm:$0xff] %v1384
    %1500 = vst [vmem:[#allocation3 + $0x68] sm:$0xff] %v1386
    %1501 = vst [vmem:[#allocation3 + $0x70] sm:$0xff] %v1388
    %1502 = vst [vmem:[#allocation3 + $0x78] sm:$0xff] %v1390
    %1503 = vst [vmem:[#allocation3 + $0x80] sm:$0xff] %v1392
    %1504 = vst [vmem:[#allocation3 + $0x88] sm:$0xff] %v1394
    %1505 = vst [vmem:[#allocation3 + $0x90] sm:$0xff] %v1396
    %1506 = vst [vmem:[#allocation3 + $0x98] sm:$0xff] %v1398
    %1507 = vst [vmem:[#allocation3 + $0xa0] sm:$0xff] %v1400
    %1508 = vst [vmem:[#allocation3 + $0xa8] sm:$0xff] %v1402
    %1509 = vst [vmem:[#allocation3 + $0xb0] sm:$0xff] %v1404
    %1510 = vst [vmem:[#allocation3 + $0xb8] sm:$0xff] %v1406
    %1511 = vst [vmem:[#allocation3 + $0xc0] sm:$0xff] %v1408
    %1512 = vst [vmem:[#allocation3 + $0xc8] sm:$0xff] %v1410
    %1513 = vst [vmem:[#allocation3 + $0xd0] sm:$0xff] %v1412
    %1514 = vst [vmem:[#allocation3 + $0xd8] sm:$0xff] %v1414
    %1515 = vst [vmem:[#allocation3 + $0xe0] sm:$0xff] %v1416
    %1516 = vst [vmem:[#allocation3 + $0xe8] sm:$0xff] %v1418
    %1517 = vst [vmem:[#allocation3 + $0xf0] sm:$0xff] %v1420
    %1518 = vst [vmem:[#allocation3 + $0xf8] sm:$0xff] %v1422
    %1519 = vst [vmem:[#allocation3 + $0x100] sm:$0xff] %v1424
    %1520 = vst [vmem:[#allocation3 + $0x108] sm:$0xff] %v1426
    %1521 = vst [vmem:[#allocation3 + $0x110] sm:$0xff] %v1428
    %1522 = vst [vmem:[#allocation3 + $0x118] sm:$0xff] %v1430
    %1523 = vst [vmem:[#allocation3 + $0x120] sm:$0xff] %v1432
    %1524 = vst [vmem:[#allocation3 + $0x128] sm:$0xff] %v1434
    %1525 = vst [vmem:[#allocation3 + $0x130] sm:$0xff] %v1436
    %1526 = vst [vmem:[#allocation3 + $0x138] sm:$0xff] %v1438
    %1527 = vst [vmem:[#allocation3 + $0x140] sm:$0xff] %v1440
    %1528 = vst [vmem:[#allocation3 + $0x148] sm:$0xff] %v1442
    %1529 = vst [vmem:[#allocation3 + $0x150] sm:$0xff] %v1444
    %1530 = vst [vmem:[#allocation3 + $0x158] sm:$0xff] %v1446
    %1531 = vst [vmem:[#allocation3 + $0x160] sm:$0xff] %v1448
    %1532 = vst [vmem:[#allocation3 + $0x168] sm:$0xff] %v1450
    %1533 = vst [vmem:[#allocation3 + $0x170] sm:$0xff] %v1452
    %1534 = vst [vmem:[#allocation3 + $0x178] sm:$0xff] %v1454
    %1535 = vst [vmem:[#allocation3 + $0x180] sm:$0xff] %v1456
    %1536 = vst [vmem:[#allocation3 + $0x188] sm:$0xff] %v1458
    %1537 = vst [vmem:[#allocation3 + $0x190] sm:$0xff] %v1460
    %1538 = vst [vmem:[#allocation3 + $0x198] sm:$0xff] %v1462
    %1539 = vst [vmem:[#allocation3 + $0x1a0] sm:$0xff] %v1464
    %1540 = vst [vmem:[#allocation3 + $0x1a8] sm:$0xff] %v1466
    %1541 = vst [vmem:[#allocation3 + $0x1b0] sm:$0xff] %v1468
    %1542 = vst [vmem:[#allocation3 + $0x1b8] sm:$0xff] %v1470
    %1543 = vst [vmem:[#allocation3 + $0x1c0] sm:$0xff] %v1472
    %1544 = vst [vmem:[#allocation3 + $0x1c8] sm:$0xff] %v1474
    %1545 = vst [vmem:[#allocation3 + $0x1d0] sm:$0xff] %v1476
    %1546 = vst [vmem:[#allocation3 + $0x1d8] sm:$0xff] %v1478
    %1547 = vst [vmem:[#allocation3 + $0x1e0] sm:$0xff] %v1480
    %1548 = vst [vmem:[#allocation3 + $0x1e8] sm:$0xff] %v1482
    %1549 = vst [vmem:[#allocation3 + $0x1f0] sm:$0xff] %v1484
    %1550 = vst [vmem:[#allocation3 + $0x1f8] sm:$0xff] %v1486
    %s1551 = sld [smem:[#allocation14]]
    %s1552 = sld [smem:[#allocation14 + $0x1]]
    %s1553 = sld [smem:[#allocation14 + $0x2]]
    %s1554 = sld [smem:[#allocation14 + $0x3]]
    %s1555 = sld [smem:[#allocation14 + $0x4]]
    %s1556 = sld [smem:[#allocation14 + $0x5]]
    %s1557 = sld [smem:[#allocation14 + $0x6]]
    %s1558 = sld [smem:[#allocation14 + $0x7]]
    %s1559 = sadd.f32 %s1557, %s1558
    %v1560 = vstv %s1559
    %v1561 = vrsqrt.pop %v1560
    %s1562 = vtos %v1561
    %s1563 = smul.f32 %s1554, %s1562
    %v1564 = vld [vmem:[#allocation9] sm:$0xff]
    %v1565 = vld [vmem:[#allocation9 + $0x8] sm:$0xff]
    %v1566 = vld [vmem:[#allocation9 + $0x10] sm:$0xff]
    %v1567 = vld [vmem:[#allocation9 + $0x18] sm:$0xff]
    %v1568 = vld [vmem:[#allocation9 + $0x20] sm:$0xff]
    %v1569 = vld [vmem:[#allocation9 + $0x28] sm:$0xff]
    %v1570 = vld [vmem:[#allocation9 + $0x30] sm:$0xff]
    %v1571 = vld [vmem:[#allocation9 + $0x38] sm:$0xff]
    %v1572 = vld [vmem:[#allocation9 + $0x40] sm:$0xff]
    %v1573 = vld [vmem:[#allocation9 + $0x48] sm:$0xff]
    %v1574 = vld [vmem:[#allocation9 + $0x50] sm:$0xff]
    %v1575 = vld [vmem:[#allocation9 + $0x58] sm:$0xff]
    %v1576 = vld [vmem:[#allocation9 + $0x60] sm:$0xff]
    %v1577 = vld [vmem:[#allocation9 + $0x68] sm:$0xff]
    %v1578 = vld [vmem:[#allocation9 + $0x70] sm:$0xff]
    %v1579 = vld [vmem:[#allocation9 + $0x78] sm:$0xff]
    %1580 = vmax.xlane.f32.xlu0 %v1564
    %v1581 = vpop.xlane.xlu0 %1580
    %1582 = vmax.xlane.f32.xlu0 %v1565
    %v1583 = vpop.xlane.xlu0 %1582
    %1584 = vmax.xlane.f32.xlu0 %v1566
    %v1585 = vpop.xlane.xlu0 %1584
    %1586 = vmax.xlane.f32.xlu0 %v1567
    %v1587 = vpop.xlane.xlu0 %1586
    %1588 = vmax.xlane.f32.xlu0 %v1568
    %v1589 = vpop.xlane.xlu0 %1588
    %1590 = vmax.xlane.f32.xlu0 %v1569
    %v1591 = vpop.xlane.xlu0 %1590
    %1592 = vmax.xlane.f32.xlu0 %v1570
    %v1593 = vpop.xlane.xlu0 %1592
    %1594 = vmax.xlane.f32.xlu0 %v1571
    %v1595 = vpop.xlane.xlu0 %1594
    %1596 = vmax.xlane.f32.xlu0 %v1572
    %v1597 = vpop.xlane.xlu0 %1596
    %1598 = vmax.xlane.f32.xlu0 %v1573
    %v1599 = vpop.xlane.xlu0 %1598
    %1600 = vmax.xlane.f32.xlu0 %v1574
    %v1601 = vpop.xlane.xlu0 %1600
    %1602 = vmax.xlane.f32.xlu0 %v1575
    %v1603 = vpop.xlane.xlu0 %1602
    %1604 = vmax.xlane.f32.xlu0 %v1576
    %v1605 = vpop.xlane.xlu0 %1604
    %1606 = vmax.xlane.f32.xlu0 %v1577
    %v1607 = vpop.xlane.xlu0 %1606
    %1608 = vmax.xlane.f32.xlu0 %v1578
    %v1609 = vpop.xlane.xlu0 %1608
    %1610 = vmax.xlane.f32.xlu0 %v1579
    %v1611 = vpop.xlane.xlu0 %1610
    %1612 = vadd.xlane.f32.xlu0 %v1564
    %v1613 = vpop.xlane.xlu0 %1612
    %1614 = vadd.xlane.f32.xlu0 %v1565
    %v1615 = vpop.xlane.xlu0 %1614
    %1616 = vadd.xlane.f32.xlu0 %v1566
    %v1617 = vpop.xlane.xlu0 %1616
    %1618 = vadd.xlane.f32.xlu0 %v1567
    %v1619 = vpop.xlane.xlu0 %1618
    %1620 = vadd.xlane.f32.xlu0 %v1568
    %v1621 = vpop.xlane.xlu0 %1620
    %1622 = vadd.xlane.f32.xlu0 %v1569
    %v1623 = vpop.xlane.xlu0 %1622
    %1624 = vadd.xlane.f32.xlu0 %v1570
    %v1625 = vpop.xlane.xlu0 %1624
    %1626 = vadd.xlane.f32.xlu0 %v1571
    %v1627 = vpop.xlane.xlu0 %1626
    %1628 = vadd.xlane.f32.xlu0 %v1572
    %v1629 = vpop.xlane.xlu0 %1628
    %1630 = vadd.xlane.f32.xlu0 %v1573
    %v1631 = vpop.xlane.xlu0 %1630
    %1632 = vadd.xlane.f32.xlu0 %v1574
    %v1633 = vpop.xlane.xlu0 %1632
    %1634 = vadd.xlane.f32.xlu0 %v1575
    %v1635 = vpop.xlane.xlu0 %1634
    %1636 = vadd.xlane.f32.xlu0 %v1576
    %v1637 = vpop.xlane.xlu0 %1636
    %1638 = vadd.xlane.f32.xlu0 %v1577
    %v1639 = vpop.xlane.xlu0 %1638
    %1640 = vadd.xlane.f32.xlu0 %v1578
    %v1641 = vpop.xlane.xlu0 %1640
    %1642 = vadd.xlane.f32.xlu0 %v1579
    %v1643 = vpop.xlane.xlu0 %1642
    %v1644 = vrcp.pop 128.0
    %v1645 = vmul.f32 %v1613, %v1644
    %v1646 = vmul.f32 %v1615, %v1644
    %v1647 = vmul.f32 %v1617, %v1644
    %v1648 = vmul.f32 %v1619, %v1644
    %v1649 = vmul.f32 %v1621, %v1644
    %v1650 = vmul.f32 %v1623, %v1644
    %v1651 = vmul.f32 %v1625, %v1644
    %v1652 = vmul.f32 %v1627, %v1644
    %v1653 = vmul.f32 %v1629, %v1644
    %v1654 = vmul.f32 %v1631, %v1644
    %v1655 = vmul.f32 %v1633, %v1644
    %v1656 = vmul.f32 %v1635, %v1644
    %v1657 = vmul.f32 %v1637, %v1644
    %v1658 = vmul.f32 %v1639, %v1644
    %v1659 = vmul.f32 %v1641, %v1644
    %v1660 = vmul.f32 %v1643, %v1644
    %v1661 = vstv %s1551
    %v1662 = vmul.f32 %v1661, %v1581
    %v1663 = vmul.f32 %v1661, %v1583
    %v1664 = vmul.f32 %v1661, %v1585
    %v1665 = vmul.f32 %v1661, %v1587
    %v1666 = vmul.f32 %v1661, %v1589
    %v1667 = vmul.f32 %v1661, %v1591
    %v1668 = vmul.f32 %v1661, %v1593
    %v1669 = vmul.f32 %v1661, %v1595
    %v1670 = vmul.f32 %v1661, %v1597
    %v1671 = vmul.f32 %v1661, %v1599
    %v1672 = vmul.f32 %v1661, %v1601
    %v1673 = vmul.f32 %v1661, %v1603
    %v1674 = vmul.f32 %v1661, %v1605
    %v1675 = vmul.f32 %v1661, %v1607
    %v1676 = vmul.f32 %v1661, %v1609
    %v1677 = vmul.f32 %v1661, %v1611
    %v1678 = vstv %s1552
    %v1679 = vmul.f32 %v1678, %v1645
    %v1680 = vmul.f32 %v1678, %v1646
    %v1681 = vmul.f32 %v1678, %v1647
    %v1682 = vmul.f32 %v1678, %v1648
    %v1683 = vmul.f32 %v1678, %v1649
    %v1684 = vmul.f32 %v1678, %v1650
    %v1685 = vmul.f32 %v1678, %v1651
    %v1686 = vmul.f32 %v1678, %v1652
    %v1687 = vmul.f32 %v1678, %v1653
    %v1688 = vmul.f32 %v1678, %v1654
    %v1689 = vmul.f32 %v1678, %v1655
    %v1690 = vmul.f32 %v1678, %v1656
    %v1691 = vmul.f32 %v1678, %v1657
    %v1692 = vmul.f32 %v1678, %v1658
    %v1693 = vmul.f32 %v1678, %v1659
    %v1694 = vmul.f32 %v1678, %v1660
    %v1695 = vadd.f32 %v1662, %v1679
    %v1696 = vadd.f32 %v1663, %v1680
    %v1697 = vadd.f32 %v1664, %v1681
    %v1698 = vadd.f32 %v1665, %v1682
    %v1699 = vadd.f32 %v1666, %v1683
    %v1700 = vadd.f32 %v1667, %v1684
    %v1701 = vadd.f32 %v1668, %v1685
    %v1702 = vadd.f32 %v1669, %v1686
    %v1703 = vadd.f32 %v1670, %v1687
    %v1704 = vadd.f32 %v1671, %v1688
    %v1705 = vadd.f32 %v1672, %v1689
    %v1706 = vadd.f32 %v1673, %v1690
    %v1707 = vadd.f32 %v1674, %v1691
    %v1708 = vadd.f32 %v1675, %v1692
    %v1709 = vadd.f32 %v1676, %v1693
    %v1710 = vadd.f32 %v1677, %v1694
    %v1711 = vstv %s1553
    %v1712 = vadd.f32 %v1695, %v1711
    %v1713 = vadd.f32 %v1696, %v1711
    %v1714 = vadd.f32 %v1697, %v1711
    %v1715 = vadd.f32 %v1698, %v1711
    %v1716 = vadd.f32 %v1699, %v1711
    %v1717 = vadd.f32 %v1700, %v1711
    %v1718 = vadd.f32 %v1701, %v1711
    %v1719 = vadd.f32 %v1702, %v1711
    %v1720 = vadd.f32 %v1703, %v1711
    %v1721 = vadd.f32 %v1704, %v1711
    %v1722 = vadd.f32 %v1705, %v1711
    %v1723 = vadd.f32 %v1706, %v1711
    %v1724 = vadd.f32 %v1707, %v1711
    %v1725 = vadd.f32 %v1708, %v1711
    %v1726 = vadd.f32 %v1709, %v1711
    %v1727 = vadd.f32 %v1710, %v1711
    %v1728 = vstv %s1556
    %v1729 = vsub.f32 %v1712, %v1728
    %v1730 = vsub.f32 %v1713, %v1728
    %v1731 = vsub.f32 %v1714, %v1728
    %v1732 = vsub.f32 %v1715, %v1728
    %v1733 = vsub.f32 %v1716, %v1728
    %v1734 = vsub.f32 %v1717, %v1728
    %v1735 = vsub.f32 %v1718, %v1728
    %v1736 = vsub.f32 %v1719, %v1728
    %v1737 = vsub.f32 %v1720, %v1728
    %v1738 = vsub.f32 %v1721, %v1728
    %v1739 = vsub.f32 %v1722, %v1728
    %v1740 = vsub.f32 %v1723, %v1728
    %v1741 = vsub.f32 %v1724, %v1728
    %v1742 = vsub.f32 %v1725, %v1728
    %v1743 = vsub.f32 %v1726, %v1728
    %v1744 = vsub.f32 %v1727, %v1728
    %v1745 = vstv %s1563
    %v1746 = vmul.f32 %v1729, %v1745
    %v1747 = vmul.f32 %v1730, %v1745
    %v1748 = vmul.f32 %v1731, %v1745
    %v1749 = vmul.f32 %v1732, %v1745
    %v1750 = vmul.f32 %v1733, %v1745
    %v1751 = vmul.f32 %v1734, %v1745
    %v1752 = vmul.f32 %v1735, %v1745
    %v1753 = vmul.f32 %v1736, %v1745
    %v1754 = vmul.f32 %v1737, %v1745
    %v1755 = vmul.f32 %v1738, %v1745
    %v1756 = vmul.f32 %v1739, %v1745
    %v1757 = vmul.f32 %v1740, %v1745
    %v1758 = vmul.f32 %v1741, %v1745
    %v1759 = vmul.f32 %v1742, %v1745
    %v1760 = vmul.f32 %v1743, %v1745
    %v1761 = vmul.f32 %v1744, %v1745
    %v1762 = vstv %s1555
    %v1763 = vadd.f32 %v1746, %v1762
    %v1764 = vadd.f32 %v1747, %v1762
    %v1765 = vadd.f32 %v1748, %v1762
    %v1766 = vadd.f32 %v1749, %v1762
    %v1767 = vadd.f32 %v1750, %v1762
    %v1768 = vadd.f32 %v1751, %v1762
    %v1769 = vadd.f32 %v1752, %v1762
    %v1770 = vadd.f32 %v1753, %v1762
    %v1771 = vadd.f32 %v1754, %v1762
    %v1772 = vadd.f32 %v1755, %v1762
    %v1773 = vadd.f32 %v1756, %v1762
    %v1774 = vadd.f32 %v1757, %v1762
    %v1775 = vadd.f32 %v1758, %v1762
    %v1776 = vadd.f32 %v1759, %v1762
    %v1777 = vadd.f32 %v1760, %v1762
    %v1778 = vadd.f32 %v1761, %v1762
    %v1779 = vmax.f32 %v1763, 0.0
    %v1780 = vmax.f32 %v1764, 0.0
    %v1781 = vmax.f32 %v1765, 0.0
    %v1782 = vmax.f32 %v1766, 0.0
    %v1783 = vmax.f32 %v1767, 0.0
    %v1784 = vmax.f32 %v1768, 0.0
    %v1785 = vmax.f32 %v1769, 0.0
    %v1786 = vmax.f32 %v1770, 0.0
    %v1787 = vmax.f32 %v1771, 0.0
    %v1788 = vmax.f32 %v1772, 0.0
    %v1789 = vmax.f32 %v1773, 0.0
    %v1790 = vmax.f32 %v1774, 0.0
    %v1791 = vmax.f32 %v1775, 0.0
    %v1792 = vmax.f32 %v1776, 0.0
    %v1793 = vmax.f32 %v1777, 0.0
    %v1794 = vmax.f32 %v1778, 0.0
    %v1795 = vxor.u32 %v1779, 2147483648
    %v1796 = vxor.u32 %v1780, 2147483648
    %v1797 = vxor.u32 %v1781, 2147483648
    %v1798 = vxor.u32 %v1782, 2147483648
    %v1799 = vxor.u32 %v1783, 2147483648
    %v1800 = vxor.u32 %v1784, 2147483648
    %v1801 = vxor.u32 %v1785, 2147483648
    %v1802 = vxor.u32 %v1786, 2147483648
    %v1803 = vxor.u32 %v1787, 2147483648
    %v1804 = vxor.u32 %v1788, 2147483648
    %v1805 = vxor.u32 %v1789, 2147483648
    %v1806 = vxor.u32 %v1790, 2147483648
    %v1807 = vxor.u32 %v1791, 2147483648
    %v1808 = vxor.u32 %v1792, 2147483648
    %v1809 = vxor.u32 %v1793, 2147483648
    %v1810 = vxor.u32 %v1794, 2147483648
    %v1811 = vmul.f32 %v1795, 1.442695
    %v1812 = vpow.pop %v1811
    %v1813 = vmul.f32 %v1796, 1.442695
    %v1814 = vpow.pop %v1813
    %v1815 = vmul.f32 %v1797, 1.442695
    %v1816 = vpow.pop %v1815
    %v1817 = vmul.f32 %v1798, 1.442695
    %v1818 = vpow.pop %v1817
    %v1819 = vmul.f32 %v1799, 1.442695
    %v1820 = vpow.pop %v1819
    %v1821 = vmul.f32 %v1800, 1.442695
    %v1822 = vpow.pop %v1821
    %v1823 = vmul.f32 %v1801, 1.442695
    %v1824 = vpow.pop %v1823
    %v1825 = vmul.f32 %v1802, 1.442695
    %v1826 = vpow.pop %v1825
    %v1827 = vmul.f32 %v1803, 1.442695
    %v1828 = vpow.pop %v1827
    %v1829 = vmul.f32 %v1804, 1.442695
    %v1830 = vpow.pop %v1829
    %v1831 = vmul.f32 %v1805, 1.442695
    %v1832 = vpow.pop %v1831
    %v1833 = vmul.f32 %v1806, 1.442695
    %v1834 = vpow.pop %v1833
    %v1835 = vmul.f32 %v1807, 1.442695
    %v1836 = vpow.pop %v1835
    %v1837 = vmul.f32 %v1808, 1.442695
    %v1838 = vpow.pop %v1837
    %v1839 = vmul.f32 %v1809, 1.442695
    %v1840 = vpow.pop %v1839
    %v1841 = vmul.f32 %v1810, 1.442695
    %v1842 = vpow.pop %v1841
    %v1843 = vadd.f32 %v1812, 1.0
    %v1844 = vadd.f32 %v1814, 1.0
    %v1845 = vadd.f32 %v1816, 1.0
    %v1846 = vadd.f32 %v1818, 1.0
    %v1847 = vadd.f32 %v1820, 1.0
    %v1848 = vadd.f32 %v1822, 1.0
    %v1849 = vadd.f32 %v1824, 1.0
    %v1850 = vadd.f32 %v1826, 1.0
    %v1851 = vadd.f32 %v1828, 1.0
    %v1852 = vadd.f32 %v1830, 1.0
    %v1853 = vadd.f32 %v1832, 1.0
    %v1854 = vadd.f32 %v1834, 1.0
    %v1855 = vadd.f32 %v1836, 1.0
    %v1856 = vadd.f32 %v1838, 1.0
    %v1857 = vadd.f32 %v1840, 1.0
    %v1858 = vadd.f32 %v1842, 1.0
    %v1859 = vrcp.pop %v1843
    %v1860 = vmul.f32 1.0, %v1859
    %v1861 = vrcp.pop %v1844
    %v1862 = vmul.f32 1.0, %v1861
    %v1863 = vrcp.pop %v1845
    %v1864 = vmul.f32 1.0, %v1863
    %v1865 = vrcp.pop %v1846
    %v1866 = vmul.f32 1.0, %v1865
    %v1867 = vrcp.pop %v1847
    %v1868 = vmul.f32 1.0, %v1867
    %v1869 = vrcp.pop %v1848
    %v1870 = vmul.f32 1.0, %v1869
    %v1871 = vrcp.pop %v1849
    %v1872 = vmul.f32 1.0, %v1871
    %v1873 = vrcp.pop %v1850
    %v1874 = vmul.f32 1.0, %v1873
    %v1875 = vrcp.pop %v1851
    %v1876 = vmul.f32 1.0, %v1875
    %v1877 = vrcp.pop %v1852
    %v1878 = vmul.f32 1.0, %v1877
    %v1879 = vrcp.pop %v1853
    %v1880 = vmul.f32 1.0, %v1879
    %v1881 = vrcp.pop %v1854
    %v1882 = vmul.f32 1.0, %v1881
    %v1883 = vrcp.pop %v1855
    %v1884 = vmul.f32 1.0, %v1883
    %v1885 = vrcp.pop %v1856
    %v1886 = vmul.f32 1.0, %v1885
    %v1887 = vrcp.pop %v1857
    %v1888 = vmul.f32 1.0, %v1887
    %v1889 = vrcp.pop %v1858
    %v1890 = vmul.f32 1.0, %v1889
    %v1891 = vmul.f32 %v1564, %v1860
    %v1892 = vmul.f32 %v1565, %v1862
    %v1893 = vmul.f32 %v1566, %v1864
    %v1894 = vmul.f32 %v1567, %v1866
    %v1895 = vmul.f32 %v1568, %v1868
    %v1896 = vmul.f32 %v1569, %v1870
    %v1897 = vmul.f32 %v1570, %v1872
    %v1898 = vmul.f32 %v1571, %v1874
    %v1899 = vmul.f32 %v1572, %v1876
    %v1900 = vmul.f32 %v1573, %v1878
    %v1901 = vmul.f32 %v1574, %v1880
    %v1902 = vmul.f32 %v1575, %v1882
    %v1903 = vmul.f32 %v1576, %v1884
    %v1904 = vmul.f32 %v1577, %v1886
    %v1905 = vmul.f32 %v1578, %v1888
    %v1906 = vmul.f32 %v1579, %v1890
    %1907 = vxpose.xlu0.b32.start [1/16] %v1891, 128
    %1908 = vxpose.xlu0.b32.cont [2/16] %v1892, 128
    %1909 = vxpose.xlu0.b32.cont [3/16] %v1893, 128
    %1910 = vxpose.xlu0.b32.cont [4/16] %v1894, 128
    %1911 = vxpose.xlu0.b32.cont [5/16] %v1895, 128
    %1912 = vxpose.xlu0.b32.cont [6/16] %v1896, 128
    %1913 = vxpose.xlu0.b32.cont [7/16] %v1897, 128
    %1914 = vxpose.xlu0.b32.cont [8/16] %v1898, 128
    %1915 = vxpose.xlu0.b32.cont [9/16] %v1899, 128
    %1916 = vxpose.xlu0.b32.cont [10/16] %v1900, 128
    %1917 = vxpose.xlu0.b32.cont [11/16] %v1901, 128
    %1918 = vxpose.xlu0.b32.cont [12/16] %v1902, 128
    %1919 = vxpose.xlu0.b32.cont [13/16] %v1903, 128
    %1920 = vxpose.xlu0.b32.cont [14/16] %v1904, 128
    %1921 = vxpose.xlu0.b32.cont [15/16] %v1905, 128
    %1922 = vxpose.xlu0.b32.end [16/16] %v1906, 128
    %v1923 = vpop.trf.xlu0
    %v1924 = vpop.trf.xlu0
    %v1925 = vpop.trf.xlu0
    %v1926 = vpop.trf.xlu0
    %v1927 = vpop.trf.xlu0
    %v1928 = vpop.trf.xlu0
    %v1929 = vpop.trf.xlu0
    %v1930 = vpop.trf.xlu0
    %v1931 = vpop.trf.xlu0
    %v1932 = vpop.trf.xlu0
    %v1933 = vpop.trf.xlu0
    %v1934 = vpop.trf.xlu0
    %v1935 = vpop.trf.xlu0
    %v1936 = vpop.trf.xlu0
    %v1937 = vpop.trf.xlu0
    %v1938 = vpop.trf.xlu0
    %1939 = vst [vmem:[#allocation4] sm:$0xff] %v1923
    %1940 = vst [vmem:[#allocation4 + $0x8] sm:$0xff] %v1924
    %1941 = vst [vmem:[#allocation4 + $0x10] sm:$0xff] %v1925
    %1942 = vst [vmem:[#allocation4 + $0x18] sm:$0xff] %v1926
    %1943 = vst [vmem:[#allocation4 + $0x20] sm:$0xff] %v1927
    %1944 = vst [vmem:[#allocation4 + $0x28] sm:$0xff] %v1928
    %1945 = vst [vmem:[#allocation4 + $0x30] sm:$0xff] %v1929
    %1946 = vst [vmem:[#allocation4 + $0x38] sm:$0xff] %v1930
    %1947 = vst [vmem:[#allocation4 + $0x40] sm:$0xff] %v1931
    %1948 = vst [vmem:[#allocation4 + $0x48] sm:$0xff] %v1932
    %1949 = vst [vmem:[#allocation4 + $0x50] sm:$0xff] %v1933
    %1950 = vst [vmem:[#allocation4 + $0x58] sm:$0xff] %v1934
    %1951 = vst [vmem:[#allocation4 + $0x60] sm:$0xff] %v1935
    %1952 = vst [vmem:[#allocation4 + $0x68] sm:$0xff] %v1936
    %1953 = vst [vmem:[#allocation4 + $0x70] sm:$0xff] %v1937
    %1954 = vst [vmem:[#allocation4 + $0x78] sm:$0xff] %v1938
    %s1955 = scalar_lea.vmem [#allocation9], 128
    %v1956 = vld [vmem:[%s1955] sm:$0xff]
    %v1957 = vld [vmem:[%s1955 + $0x8] sm:$0xff]
    %v1958 = vld [vmem:[%s1955 + $0x10] sm:$0xff]
    %v1959 = vld [vmem:[%s1955 + $0x18] sm:$0xff]
    %v1960 = vld [vmem:[%s1955 + $0x20] sm:$0xff]
    %v1961 = vld [vmem:[%s1955 + $0x28] sm:$0xff]
    %v1962 = vld [vmem:[%s1955 + $0x30] sm:$0xff]
    %v1963 = vld [vmem:[%s1955 + $0x38] sm:$0xff]
    %v1964 = vld [vmem:[%s1955 + $0x40] sm:$0xff]
    %v1965 = vld [vmem:[%s1955 + $0x48] sm:$0xff]
    %v1966 = vld [vmem:[%s1955 + $0x50] sm:$0xff]
    %v1967 = vld [vmem:[%s1955 + $0x58] sm:$0xff]
    %v1968 = vld [vmem:[%s1955 + $0x60] sm:$0xff]
    %v1969 = vld [vmem:[%s1955 + $0x68] sm:$0xff]
    %v1970 = vld [vmem:[%s1955 + $0x70] sm:$0xff]
    %v1971 = vld [vmem:[%s1955 + $0x78] sm:$0xff]
    %1972 = vmax.xlane.f32.xlu0 %v1956
    %v1973 = vpop.xlane.xlu0 %1972
    %1974 = vmax.xlane.f32.xlu0 %v1957
    %v1975 = vpop.xlane.xlu0 %1974
    %1976 = vmax.xlane.f32.xlu0 %v1958
    %v1977 = vpop.xlane.xlu0 %1976
    %1978 = vmax.xlane.f32.xlu0 %v1959
    %v1979 = vpop.xlane.xlu0 %1978
    %1980 = vmax.xlane.f32.xlu0 %v1960
    %v1981 = vpop.xlane.xlu0 %1980
    %1982 = vmax.xlane.f32.xlu0 %v1961
    %v1983 = vpop.xlane.xlu0 %1982
    %1984 = vmax.xlane.f32.xlu0 %v1962
    %v1985 = vpop.xlane.xlu0 %1984
    %1986 = vmax.xlane.f32.xlu0 %v1963
    %v1987 = vpop.xlane.xlu0 %1986
    %1988 = vmax.xlane.f32.xlu0 %v1964
    %v1989 = vpop.xlane.xlu0 %1988
    %1990 = vmax.xlane.f32.xlu0 %v1965
    %v1991 = vpop.xlane.xlu0 %1990
    %1992 = vmax.xlane.f32.xlu0 %v1966
    %v1993 = vpop.xlane.xlu0 %1992
    %1994 = vmax.xlane.f32.xlu0 %v1967
    %v1995 = vpop.xlane.xlu0 %1994
    %1996 = vmax.xlane.f32.xlu0 %v1968
    %v1997 = vpop.xlane.xlu0 %1996
    %1998 = vmax.xlane.f32.xlu0 %v1969
    %v1999 = vpop.xlane.xlu0 %1998
    %2000 = vmax.xlane.f32.xlu0 %v1970
    %v2001 = vpop.xlane.xlu0 %2000
    %2002 = vmax.xlane.f32.xlu0 %v1971
    %v2003 = vpop.xlane.xlu0 %2002
    %2004 = vadd.xlane.f32.xlu0 %v1956
    %v2005 = vpop.xlane.xlu0 %2004
    %2006 = vadd.xlane.f32.xlu0 %v1957
    %v2007 = vpop.xlane.xlu0 %2006
    %2008 = vadd.xlane.f32.xlu0 %v1958
    %v2009 = vpop.xlane.xlu0 %2008
    %2010 = vadd.xlane.f32.xlu0 %v1959
    %v2011 = vpop.xlane.xlu0 %2010
    %2012 = vadd.xlane.f32.xlu0 %v1960
    %v2013 = vpop.xlane.xlu0 %2012
    %2014 = vadd.xlane.f32.xlu0 %v1961
    %v2015 = vpop.xlane.xlu0 %2014
    %2016 = vadd.xlane.f32.xlu0 %v1962
    %v2017 = vpop.xlane.xlu0 %2016
    %2018 = vadd.xlane.f32.xlu0 %v1963
    %v2019 = vpop.xlane.xlu0 %2018
    %2020 = vadd.xlane.f32.xlu0 %v1964
    %v2021 = vpop.xlane.xlu0 %2020
    %2022 = vadd.xlane.f32.xlu0 %v1965
    %v2023 = vpop.xlane.xlu0 %2022
    %2024 = vadd.xlane.f32.xlu0 %v1966
    %v2025 = vpop.xlane.xlu0 %2024
    %2026 = vadd.xlane.f32.xlu0 %v1967
    %v2027 = vpop.xlane.xlu0 %2026
    %2028 = vadd.xlane.f32.xlu0 %v1968
    %v2029 = vpop.xlane.xlu0 %2028
    %2030 = vadd.xlane.f32.xlu0 %v1969
    %v2031 = vpop.xlane.xlu0 %2030
    %2032 = vadd.xlane.f32.xlu0 %v1970
    %v2033 = vpop.xlane.xlu0 %2032
    %2034 = vadd.xlane.f32.xlu0 %v1971
    %v2035 = vpop.xlane.xlu0 %2034
    %v2036 = vmul.f32 %v2005, %v1644
    %v2037 = vmul.f32 %v2007, %v1644
    %v2038 = vmul.f32 %v2009, %v1644
    %v2039 = vmul.f32 %v2011, %v1644
    %v2040 = vmul.f32 %v2013, %v1644
    %v2041 = vmul.f32 %v2015, %v1644
    %v2042 = vmul.f32 %v2017, %v1644
    %v2043 = vmul.f32 %v2019, %v1644
    %v2044 = vmul.f32 %v2021, %v1644
    %v2045 = vmul.f32 %v2023, %v1644
    %v2046 = vmul.f32 %v2025, %v1644
    %v2047 = vmul.f32 %v2027, %v1644
    %v2048 = vmul.f32 %v2029, %v1644
    %v2049 = vmul.f32 %v2031, %v1644
    %v2050 = vmul.f32 %v2033, %v1644
    %v2051 = vmul.f32 %v2035, %v1644
    %v2052 = vmul.f32 %v1661, %v1973
    %v2053 = vmul.f32 %v1661, %v1975
    %v2054 = vmul.f32 %v1661, %v1977
    %v2055 = vmul.f32 %v1661, %v1979
    %v2056 = vmul.f32 %v1661, %v1981
    %v2057 = vmul.f32 %v1661, %v1983
    %v2058 = vmul.f32 %v1661, %v1985
    %v2059 = vmul.f32 %v1661, %v1987
    %v2060 = vmul.f32 %v1661, %v1989
    %v2061 = vmul.f32 %v1661, %v1991
    %v2062 = vmul.f32 %v1661, %v1993
    %v2063 = vmul.f32 %v1661, %v1995
    %v2064 = vmul.f32 %v1661, %v1997
    %v2065 = vmul.f32 %v1661, %v1999
    %v2066 = vmul.f32 %v1661, %v2001
    %v2067 = vmul.f32 %v1661, %v2003
    %v2068 = vmul.f32 %v1678, %v2036
    %v2069 = vmul.f32 %v1678, %v2037
    %v2070 = vmul.f32 %v1678, %v2038
    %v2071 = vmul.f32 %v1678, %v2039
    %v2072 = vmul.f32 %v1678, %v2040
    %v2073 = vmul.f32 %v1678, %v2041
    %v2074 = vmul.f32 %v1678, %v2042
    %v2075 = vmul.f32 %v1678, %v2043
    %v2076 = vmul.f32 %v1678, %v2044
    %v2077 = vmul.f32 %v1678, %v2045
    %v2078 = vmul.f32 %v1678, %v2046
    %v2079 = vmul.f32 %v1678, %v2047
    %v2080 = vmul.f32 %v1678, %v2048
    %v2081 = vmul.f32 %v1678, %v2049
    %v2082 = vmul.f32 %v1678, %v2050
    %v2083 = vmul.f32 %v1678, %v2051
    %v2084 = vadd.f32 %v2052, %v2068
    %v2085 = vadd.f32 %v2053, %v2069
    %v2086 = vadd.f32 %v2054, %v2070
    %v2087 = vadd.f32 %v2055, %v2071
    %v2088 = vadd.f32 %v2056, %v2072
    %v2089 = vadd.f32 %v2057, %v2073
    %v2090 = vadd.f32 %v2058, %v2074
    %v2091 = vadd.f32 %v2059, %v2075
    %v2092 = vadd.f32 %v2060, %v2076
    %v2093 = vadd.f32 %v2061, %v2077
    %v2094 = vadd.f32 %v2062, %v2078
    %v2095 = vadd.f32 %v2063, %v2079
    %v2096 = vadd.f32 %v2064, %v2080
    %v2097 = vadd.f32 %v2065, %v2081
    %v2098 = vadd.f32 %v2066, %v2082
    %v2099 = vadd.f32 %v2067, %v2083
    %v2100 = vadd.f32 %v2084, %v1711
    %v2101 = vadd.f32 %v2085, %v1711
    %v2102 = vadd.f32 %v2086, %v1711
    %v2103 = vadd.f32 %v2087, %v1711
    %v2104 = vadd.f32 %v2088, %v1711
    %v2105 = vadd.f32 %v2089, %v1711
    %v2106 = vadd.f32 %v2090, %v1711
    %v2107 = vadd.f32 %v2091, %v1711
    %v2108 = vadd.f32 %v2092, %v1711
    %v2109 = vadd.f32 %v2093, %v1711
    %v2110 = vadd.f32 %v2094, %v1711
    %v2111 = vadd.f32 %v2095, %v1711
    %v2112 = vadd.f32 %v2096, %v1711
    %v2113 = vadd.f32 %v2097, %v1711
    %v2114 = vadd.f32 %v2098, %v1711
    %v2115 = vadd.f32 %v2099, %v1711
    %v2116 = vsub.f32 %v2100, %v1728
    %v2117 = vsub.f32 %v2101, %v1728
    %v2118 = vsub.f32 %v2102, %v1728
    %v2119 = vsub.f32 %v2103, %v1728
    %v2120 = vsub.f32 %v2104, %v1728
    %v2121 = vsub.f32 %v2105, %v1728
    %v2122 = vsub.f32 %v2106, %v1728
    %v2123 = vsub.f32 %v2107, %v1728
    %v2124 = vsub.f32 %v2108, %v1728
    %v2125 = vsub.f32 %v2109, %v1728
    %v2126 = vsub.f32 %v2110, %v1728
    %v2127 = vsub.f32 %v2111, %v1728
    %v2128 = vsub.f32 %v2112, %v1728
    %v2129 = vsub.f32 %v2113, %v1728
    %v2130 = vsub.f32 %v2114, %v1728
    %v2131 = vsub.f32 %v2115, %v1728
    %v2132 = vmul.f32 %v2116, %v1745
    %v2133 = vmul.f32 %v2117, %v1745
    %v2134 = vmul.f32 %v2118, %v1745
    %v2135 = vmul.f32 %v2119, %v1745
    %v2136 = vmul.f32 %v2120, %v1745
    %v2137 = vmul.f32 %v2121, %v1745
    %v2138 = vmul.f32 %v2122, %v1745
    %v2139 = vmul.f32 %v2123, %v1745
    %v2140 = vmul.f32 %v2124, %v1745
    %v2141 = vmul.f32 %v2125, %v1745
    %v2142 = vmul.f32 %v2126, %v1745
    %v2143 = vmul.f32 %v2127, %v1745
    %v2144 = vmul.f32 %v2128, %v1745
    %v2145 = vmul.f32 %v2129, %v1745
    %v2146 = vmul.f32 %v2130, %v1745
    %v2147 = vmul.f32 %v2131, %v1745
    %v2148 = vadd.f32 %v2132, %v1762
    %v2149 = vadd.f32 %v2133, %v1762
    %v2150 = vadd.f32 %v2134, %v1762
    %v2151 = vadd.f32 %v2135, %v1762
    %v2152 = vadd.f32 %v2136, %v1762
    %v2153 = vadd.f32 %v2137, %v1762
    %v2154 = vadd.f32 %v2138, %v1762
    %v2155 = vadd.f32 %v2139, %v1762
    %v2156 = vadd.f32 %v2140, %v1762
    %v2157 = vadd.f32 %v2141, %v1762
    %v2158 = vadd.f32 %v2142, %v1762
    %v2159 = vadd.f32 %v2143, %v1762
    %v2160 = vadd.f32 %v2144, %v1762
    %v2161 = vadd.f32 %v2145, %v1762
    %v2162 = vadd.f32 %v2146, %v1762
    %v2163 = vadd.f32 %v2147, %v1762
    %v2164 = vmax.f32 %v2148, 0.0
    %v2165 = vmax.f32 %v2149, 0.0
    %v2166 = vmax.f32 %v2150, 0.0
    %v2167 = vmax.f32 %v2151, 0.0
    %v2168 = vmax.f32 %v2152, 0.0
    %v2169 = vmax.f32 %v2153, 0.0
    %v2170 = vmax.f32 %v2154, 0.0
    %v2171 = vmax.f32 %v2155, 0.0
    %v2172 = vmax.f32 %v2156, 0.0
    %v2173 = vmax.f32 %v2157, 0.0
    %v2174 = vmax.f32 %v2158, 0.0
    %v2175 = vmax.f32 %v2159, 0.0
    %v2176 = vmax.f32 %v2160, 0.0
    %v2177 = vmax.f32 %v2161, 0.0
    %v2178 = vmax.f32 %v2162, 0.0
    %v2179 = vmax.f32 %v2163, 0.0
    %v2180 = vxor.u32 %v2164, 2147483648
    %v2181 = vxor.u32 %v2165, 2147483648
    %v2182 = vxor.u32 %v2166, 2147483648
    %v2183 = vxor.u32 %v2167, 2147483648
    %v2184 = vxor.u32 %v2168, 2147483648
    %v2185 = vxor.u32 %v2169, 2147483648
    %v2186 = vxor.u32 %v2170, 2147483648
    %v2187 = vxor.u32 %v2171, 2147483648
    %v2188 = vxor.u32 %v2172, 2147483648
    %v2189 = vxor.u32 %v2173, 2147483648
    %v2190 = vxor.u32 %v2174, 2147483648
    %v2191 = vxor.u32 %v2175, 2147483648
    %v2192 = vxor.u32 %v2176, 2147483648
    %v2193 = vxor.u32 %v2177, 2147483648
    %v2194 = vxor.u32 %v2178, 2147483648
    %v2195 = vxor.u32 %v2179, 2147483648
    %v2196 = vmul.f32 %v2180, 1.442695
    %v2197 = vpow.pop %v2196
    %v2198 = vmul.f32 %v2181, 1.442695
    %v2199 = vpow.pop %v2198
    %v2200 = vmul.f32 %v2182, 1.442695
    %v2201 = vpow.pop %v2200
    %v2202 = vmul.f32 %v2183, 1.442695
    %v2203 = vpow.pop %v2202
    %v2204 = vmul.f32 %v2184, 1.442695
    %v2205 = vpow.pop %v2204
    %v2206 = vmul.f32 %v2185, 1.442695
    %v2207 = vpow.pop %v2206
    %v2208 = vmul.f32 %v2186, 1.442695
    %v2209 = vpow.pop %v2208
    %v2210 = vmul.f32 %v2187, 1.442695
    %v2211 = vpow.pop %v2210
    %v2212 = vmul.f32 %v2188, 1.442695
    %v2213 = vpow.pop %v2212
    %v2214 = vmul.f32 %v2189, 1.442695
    %v2215 = vpow.pop %v2214
    %v2216 = vmul.f32 %v2190, 1.442695
    %v2217 = vpow.pop %v2216
    %v2218 = vmul.f32 %v2191, 1.442695
    %v2219 = vpow.pop %v2218
    %v2220 = vmul.f32 %v2192, 1.442695
    %v2221 = vpow.pop %v2220
    %v2222 = vmul.f32 %v2193, 1.442695
    %v2223 = vpow.pop %v2222
    %v2224 = vmul.f32 %v2194, 1.442695
    %v2225 = vpow.pop %v2224
    %v2226 = vmul.f32 %v2195, 1.442695
    %v2227 = vpow.pop %v2226
    %v2228 = vadd.f32 %v2197, 1.0
    %v2229 = vadd.f32 %v2199, 1.0
    %v2230 = vadd.f32 %v2201, 1.0
    %v2231 = vadd.f32 %v2203, 1.0
    %v2232 = vadd.f32 %v2205, 1.0
    %v2233 = vadd.f32 %v2207, 1.0
    %v2234 = vadd.f32 %v2209, 1.0
    %v2235 = vadd.f32 %v2211, 1.0
    %v2236 = vadd.f32 %v2213, 1.0
    %v2237 = vadd.f32 %v2215, 1.0
    %v2238 = vadd.f32 %v2217, 1.0
    %v2239 = vadd.f32 %v2219, 1.0
    %v2240 = vadd.f32 %v2221, 1.0
    %v2241 = vadd.f32 %v2223, 1.0
    %v2242 = vadd.f32 %v2225, 1.0
    %v2243 = vadd.f32 %v2227, 1.0
    %v2244 = vrcp.pop %v2228
    %v2245 = vmul.f32 1.0, %v2244
    %v2246 = vrcp.pop %v2229
    %v2247 = vmul.f32 1.0, %v2246
    %v2248 = vrcp.pop %v2230
    %v2249 = vmul.f32 1.0, %v2248
    %v2250 = vrcp.pop %v2231
    %v2251 = vmul.f32 1.0, %v2250
    %v2252 = vrcp.pop %v2232
    %v2253 = vmul.f32 1.0, %v2252
    %v2254 = vrcp.pop %v2233
    %v2255 = vmul.f32 1.0, %v2254
    %v2256 = vrcp.pop %v2234
    %v2257 = vmul.f32 1.0, %v2256
    %v2258 = vrcp.pop %v2235
    %v2259 = vmul.f32 1.0, %v2258
    %v2260 = vrcp.pop %v2236
    %v2261 = vmul.f32 1.0, %v2260
    %v2262 = vrcp.pop %v2237
    %v2263 = vmul.f32 1.0, %v2262
    %v2264 = vrcp.pop %v2238
    %v2265 = vmul.f32 1.0, %v2264
    %v2266 = vrcp.pop %v2239
    %v2267 = vmul.f32 1.0, %v2266
    %v2268 = vrcp.pop %v2240
    %v2269 = vmul.f32 1.0, %v2268
    %v2270 = vrcp.pop %v2241
    %v2271 = vmul.f32 1.0, %v2270
    %v2272 = vrcp.pop %v2242
    %v2273 = vmul.f32 1.0, %v2272
    %v2274 = vrcp.pop %v2243
    %v2275 = vmul.f32 1.0, %v2274
    %v2276 = vmul.f32 %v1956, %v2245
    %v2277 = vmul.f32 %v1957, %v2247
    %v2278 = vmul.f32 %v1958, %v2249
    %v2279 = vmul.f32 %v1959, %v2251
    %v2280 = vmul.f32 %v1960, %v2253
    %v2281 = vmul.f32 %v1961, %v2255
    %v2282 = vmul.f32 %v1962, %v2257
    %v2283 = vmul.f32 %v1963, %v2259
    %v2284 = vmul.f32 %v1964, %v2261
    %v2285 = vmul.f32 %v1965, %v2263
    %v2286 = vmul.f32 %v1966, %v2265
    %v2287 = vmul.f32 %v1967, %v2267
    %v2288 = vmul.f32 %v1968, %v2269
    %v2289 = vmul.f32 %v1969, %v2271
    %v2290 = vmul.f32 %v1970, %v2273
    %v2291 = vmul.f32 %v1971, %v2275
    %2292 = vxpose.xlu0.b32.start [1/16] %v2276, 128
    %2293 = vxpose.xlu0.b32.cont [2/16] %v2277, 128
    %2294 = vxpose.xlu0.b32.cont [3/16] %v2278, 128
    %2295 = vxpose.xlu0.b32.cont [4/16] %v2279, 128
    %2296 = vxpose.xlu0.b32.cont [5/16] %v2280, 128
    %2297 = vxpose.xlu0.b32.cont [6/16] %v2281, 128
    %2298 = vxpose.xlu0.b32.cont [7/16] %v2282, 128
    %2299 = vxpose.xlu0.b32.cont [8/16] %v2283, 128
    %2300 = vxpose.xlu0.b32.cont [9/16] %v2284, 128
    %2301 = vxpose.xlu0.b32.cont [10/16] %v2285, 128
    %2302 = vxpose.xlu0.b32.cont [11/16] %v2286, 128
    %2303 = vxpose.xlu0.b32.cont [12/16] %v2287, 128
    %2304 = vxpose.xlu0.b32.cont [13/16] %v2288, 128
    %2305 = vxpose.xlu0.b32.cont [14/16] %v2289, 128
    %2306 = vxpose.xlu0.b32.cont [15/16] %v2290, 128
    %2307 = vxpose.xlu0.b32.end [16/16] %v2291, 128
    %v2308 = vpop.trf.xlu0
    %v2309 = vpop.trf.xlu0
    %v2310 = vpop.trf.xlu0
    %v2311 = vpop.trf.xlu0
    %v2312 = vpop.trf.xlu0
    %v2313 = vpop.trf.xlu0
    %v2314 = vpop.trf.xlu0
    %v2315 = vpop.trf.xlu0
    %v2316 = vpop.trf.xlu0
    %v2317 = vpop.trf.xlu0
    %v2318 = vpop.trf.xlu0
    %v2319 = vpop.trf.xlu0
    %v2320 = vpop.trf.xlu0
    %v2321 = vpop.trf.xlu0
    %v2322 = vpop.trf.xlu0
    %v2323 = vpop.trf.xlu0
    %s2324 = scalar_lea.vmem [#allocation4], 128
    %2325 = vst [vmem:[%s2324] sm:$0xff] %v2308
    %2326 = vst [vmem:[%s2324 + $0x8] sm:$0xff] %v2309
    %2327 = vst [vmem:[%s2324 + $0x10] sm:$0xff] %v2310
    %2328 = vst [vmem:[%s2324 + $0x18] sm:$0xff] %v2311
    %2329 = vst [vmem:[%s2324 + $0x20] sm:$0xff] %v2312
    %2330 = vst [vmem:[%s2324 + $0x28] sm:$0xff] %v2313
    %2331 = vst [vmem:[%s2324 + $0x30] sm:$0xff] %v2314
    %2332 = vst [vmem:[%s2324 + $0x38] sm:$0xff] %v2315
    %2333 = vst [vmem:[%s2324 + $0x40] sm:$0xff] %v2316
    %2334 = vst [vmem:[%s2324 + $0x48] sm:$0xff] %v2317
    %2335 = vst [vmem:[%s2324 + $0x50] sm:$0xff] %v2318
    %2336 = vst [vmem:[%s2324 + $0x58] sm:$0xff] %v2319
    %2337 = vst [vmem:[%s2324 + $0x60] sm:$0xff] %v2320
    %2338 = vst [vmem:[%s2324 + $0x68] sm:$0xff] %v2321
    %2339 = vst [vmem:[%s2324 + $0x70] sm:$0xff] %v2322
    %2340 = vst [vmem:[%s2324 + $0x78] sm:$0xff] %v2323
    %s2341 = scalar_lea.vmem [#allocation9], 256
    %v2342 = vld [vmem:[%s2341] sm:$0xff]
    %v2343 = vld [vmem:[%s2341 + $0x8] sm:$0xff]
    %v2344 = vld [vmem:[%s2341 + $0x10] sm:$0xff]
    %v2345 = vld [vmem:[%s2341 + $0x18] sm:$0xff]
    %v2346 = vld [vmem:[%s2341 + $0x20] sm:$0xff]
    %v2347 = vld [vmem:[%s2341 + $0x28] sm:$0xff]
    %v2348 = vld [vmem:[%s2341 + $0x30] sm:$0xff]
    %v2349 = vld [vmem:[%s2341 + $0x38] sm:$0xff]
    %v2350 = vld [vmem:[%s2341 + $0x40] sm:$0xff]
    %v2351 = vld [vmem:[%s2341 + $0x48] sm:$0xff]
    %v2352 = vld [vmem:[%s2341 + $0x50] sm:$0xff]
    %v2353 = vld [vmem:[%s2341 + $0x58] sm:$0xff]
    %v2354 = vld [vmem:[%s2341 + $0x60] sm:$0xff]
    %v2355 = vld [vmem:[%s2341 + $0x68] sm:$0xff]
    %v2356 = vld [vmem:[%s2341 + $0x70] sm:$0xff]
    %v2357 = vld [vmem:[%s2341 + $0x78] sm:$0xff]
    %2358 = vmax.xlane.f32.xlu0 %v2342
    %v2359 = vpop.xlane.xlu0 %2358
    %2360 = vmax.xlane.f32.xlu0 %v2343
    %v2361 = vpop.xlane.xlu0 %2360
    %2362 = vmax.xlane.f32.xlu0 %v2344
    %v2363 = vpop.xlane.xlu0 %2362
    %2364 = vmax.xlane.f32.xlu0 %v2345
    %v2365 = vpop.xlane.xlu0 %2364
    %2366 = vmax.xlane.f32.xlu0 %v2346
    %v2367 = vpop.xlane.xlu0 %2366
    %2368 = vmax.xlane.f32.xlu0 %v2347
    %v2369 = vpop.xlane.xlu0 %2368
    %2370 = vmax.xlane.f32.xlu0 %v2348
    %v2371 = vpop.xlane.xlu0 %2370
    %2372 = vmax.xlane.f32.xlu0 %v2349
    %v2373 = vpop.xlane.xlu0 %2372
    %2374 = vmax.xlane.f32.xlu0 %v2350
    %v2375 = vpop.xlane.xlu0 %2374
    %2376 = vmax.xlane.f32.xlu0 %v2351
    %v2377 = vpop.xlane.xlu0 %2376
    %2378 = vmax.xlane.f32.xlu0 %v2352
    %v2379 = vpop.xlane.xlu0 %2378
    %2380 = vmax.xlane.f32.xlu0 %v2353
    %v2381 = vpop.xlane.xlu0 %2380
    %2382 = vmax.xlane.f32.xlu0 %v2354
    %v2383 = vpop.xlane.xlu0 %2382
    %2384 = vmax.xlane.f32.xlu0 %v2355
    %v2385 = vpop.xlane.xlu0 %2384
    %2386 = vmax.xlane.f32.xlu0 %v2356
    %v2387 = vpop.xlane.xlu0 %2386
    %2388 = vmax.xlane.f32.xlu0 %v2357
    %v2389 = vpop.xlane.xlu0 %2388
    %2390 = vadd.xlane.f32.xlu0 %v2342
    %v2391 = vpop.xlane.xlu0 %2390
    %2392 = vadd.xlane.f32.xlu0 %v2343
    %v2393 = vpop.xlane.xlu0 %2392
    %2394 = vadd.xlane.f32.xlu0 %v2344
    %v2395 = vpop.xlane.xlu0 %2394
    %2396 = vadd.xlane.f32.xlu0 %v2345
    %v2397 = vpop.xlane.xlu0 %2396
    %2398 = vadd.xlane.f32.xlu0 %v2346
    %v2399 = vpop.xlane.xlu0 %2398
    %2400 = vadd.xlane.f32.xlu0 %v2347
    %v2401 = vpop.xlane.xlu0 %2400
    %2402 = vadd.xlane.f32.xlu0 %v2348
    %v2403 = vpop.xlane.xlu0 %2402
    %2404 = vadd.xlane.f32.xlu0 %v2349
    %v2405 = vpop.xlane.xlu0 %2404
    %2406 = vadd.xlane.f32.xlu0 %v2350
    %v2407 = vpop.xlane.xlu0 %2406
    %2408 = vadd.xlane.f32.xlu0 %v2351
    %v2409 = vpop.xlane.xlu0 %2408
    %2410 = vadd.xlane.f32.xlu0 %v2352
    %v2411 = vpop.xlane.xlu0 %2410
    %2412 = vadd.xlane.f32.xlu0 %v2353
    %v2413 = vpop.xlane.xlu0 %2412
    %2414 = vadd.xlane.f32.xlu0 %v2354
    %v2415 = vpop.xlane.xlu0 %2414
    %2416 = vadd.xlane.f32.xlu0 %v2355
    %v2417 = vpop.xlane.xlu0 %2416
    %2418 = vadd.xlane.f32.xlu0 %v2356
    %v2419 = vpop.xlane.xlu0 %2418
    %2420 = vadd.xlane.f32.xlu0 %v2357
    %v2421 = vpop.xlane.xlu0 %2420
    %v2422 = vmul.f32 %v2391, %v1644
    %v2423 = vmul.f32 %v2393, %v1644
    %v2424 = vmul.f32 %v2395, %v1644
    %v2425 = vmul.f32 %v2397, %v1644
    %v2426 = vmul.f32 %v2399, %v1644
    %v2427 = vmul.f32 %v2401, %v1644
    %v2428 = vmul.f32 %v2403, %v1644
    %v2429 = vmul.f32 %v2405, %v1644
    %v2430 = vmul.f32 %v2407, %v1644
    %v2431 = vmul.f32 %v2409, %v1644
    %v2432 = vmul.f32 %v2411, %v1644
    %v2433 = vmul.f32 %v2413, %v1644
    %v2434 = vmul.f32 %v2415, %v1644
    %v2435 = vmul.f32 %v2417, %v1644
    %v2436 = vmul.f32 %v2419, %v1644
    %v2437 = vmul.f32 %v2421, %v1644
    %v2438 = vmul.f32 %v1661, %v2359
    %v2439 = vmul.f32 %v1661, %v2361
    %v2440 = vmul.f32 %v1661, %v2363
    %v2441 = vmul.f32 %v1661, %v2365
    %v2442 = vmul.f32 %v1661, %v2367
    %v2443 = vmul.f32 %v1661, %v2369
    %v2444 = vmul.f32 %v1661, %v2371
    %v2445 = vmul.f32 %v1661, %v2373
    %v2446 = vmul.f32 %v1661, %v2375
    %v2447 = vmul.f32 %v1661, %v2377
    %v2448 = vmul.f32 %v1661, %v2379
    %v2449 = vmul.f32 %v1661, %v2381
    %v2450 = vmul.f32 %v1661, %v2383
    %v2451 = vmul.f32 %v1661, %v2385
    %v2452 = vmul.f32 %v1661, %v2387
    %v2453 = vmul.f32 %v1661, %v2389
    %v2454 = vmul.f32 %v1678, %v2422
    %v2455 = vmul.f32 %v1678, %v2423
    %v2456 = vmul.f32 %v1678, %v2424
    %v2457 = vmul.f32 %v1678, %v2425
    %v2458 = vmul.f32 %v1678, %v2426
    %v2459 = vmul.f32 %v1678, %v2427
    %v2460 = vmul.f32 %v1678, %v2428
    %v2461 = vmul.f32 %v1678, %v2429
    %v2462 = vmul.f32 %v1678, %v2430
    %v2463 = vmul.f32 %v1678, %v2431
    %v2464 = vmul.f32 %v1678, %v2432
    %v2465 = vmul.f32 %v1678, %v2433
    %v2466 = vmul.f32 %v1678, %v2434
    %v2467 = vmul.f32 %v1678, %v2435
    %v2468 = vmul.f32 %v1678, %v2436
    %v2469 = vmul.f32 %v1678, %v2437
    %v2470 = vadd.f32 %v2438, %v2454
    %v2471 = vadd.f32 %v2439, %v2455
    %v2472 = vadd.f32 %v2440, %v2456
    %v2473 = vadd.f32 %v2441, %v2457
    %v2474 = vadd.f32 %v2442, %v2458
    %v2475 = vadd.f32 %v2443, %v2459
    %v2476 = vadd.f32 %v2444, %v2460
    %v2477 = vadd.f32 %v2445, %v2461
    %v2478 = vadd.f32 %v2446, %v2462
    %v2479 = vadd.f32 %v2447, %v2463
    %v2480 = vadd.f32 %v2448, %v2464
    %v2481 = vadd.f32 %v2449, %v2465
    %v2482 = vadd.f32 %v2450, %v2466
    %v2483 = vadd.f32 %v2451, %v2467
    %v2484 = vadd.f32 %v2452, %v2468
    %v2485 = vadd.f32 %v2453, %v2469
    %v2486 = vadd.f32 %v2470, %v1711
    %v2487 = vadd.f32 %v2471, %v1711
    %v2488 = vadd.f32 %v2472, %v1711
    %v2489 = vadd.f32 %v2473, %v1711
    %v2490 = vadd.f32 %v2474, %v1711
    %v2491 = vadd.f32 %v2475, %v1711
    %v2492 = vadd.f32 %v2476, %v1711
    %v2493 = vadd.f32 %v2477, %v1711
    %v2494 = vadd.f32 %v2478, %v1711
    %v2495 = vadd.f32 %v2479, %v1711
    %v2496 = vadd.f32 %v2480, %v1711
    %v2497 = vadd.f32 %v2481, %v1711
    %v2498 = vadd.f32 %v2482, %v1711
    %v2499 = vadd.f32 %v2483, %v1711
    %v2500 = vadd.f32 %v2484, %v1711
    %v2501 = vadd.f32 %v2485, %v1711
    %v2502 = vsub.f32 %v2486, %v1728
    %v2503 = vsub.f32 %v2487, %v1728
    %v2504 = vsub.f32 %v2488, %v1728
    %v2505 = vsub.f32 %v2489, %v1728
    %v2506 = vsub.f32 %v2490, %v1728
    %v2507 = vsub.f32 %v2491, %v1728
    %v2508 = vsub.f32 %v2492, %v1728
    %v2509 = vsub.f32 %v2493, %v1728
    %v2510 = vsub.f32 %v2494, %v1728
    %v2511 = vsub.f32 %v2495, %v1728
    %v2512 = vsub.f32 %v2496, %v1728
    %v2513 = vsub.f32 %v2497, %v1728
    %v2514 = vsub.f32 %v2498, %v1728
    %v2515 = vsub.f32 %v2499, %v1728
    %v2516 = vsub.f32 %v2500, %v1728
    %v2517 = vsub.f32 %v2501, %v1728
    %v2518 = vmul.f32 %v2502, %v1745
    %v2519 = vmul.f32 %v2503, %v1745
    %v2520 = vmul.f32 %v2504, %v1745
    %v2521 = vmul.f32 %v2505, %v1745
    %v2522 = vmul.f32 %v2506, %v1745
    %v2523 = vmul.f32 %v2507, %v1745
    %v2524 = vmul.f32 %v2508, %v1745
    %v2525 = vmul.f32 %v2509, %v1745
    %v2526 = vmul.f32 %v2510, %v1745
    %v2527 = vmul.f32 %v2511, %v1745
    %v2528 = vmul.f32 %v2512, %v1745
    %v2529 = vmul.f32 %v2513, %v1745
    %v2530 = vmul.f32 %v2514, %v1745
    %v2531 = vmul.f32 %v2515, %v1745
    %v2532 = vmul.f32 %v2516, %v1745
    %v2533 = vmul.f32 %v2517, %v1745
    %v2534 = vadd.f32 %v2518, %v1762
    %v2535 = vadd.f32 %v2519, %v1762
    %v2536 = vadd.f32 %v2520, %v1762
    %v2537 = vadd.f32 %v2521, %v1762
    %v2538 = vadd.f32 %v2522, %v1762
    %v2539 = vadd.f32 %v2523, %v1762
    %v2540 = vadd.f32 %v2524, %v1762
    %v2541 = vadd.f32 %v2525, %v1762
    %v2542 = vadd.f32 %v2526, %v1762
    %v2543 = vadd.f32 %v2527, %v1762
    %v2544 = vadd.f32 %v2528, %v1762
    %v2545 = vadd.f32 %v2529, %v1762
    %v2546 = vadd.f32 %v2530, %v1762
    %v2547 = vadd.f32 %v2531, %v1762
    %v2548 = vadd.f32 %v2532, %v1762
    %v2549 = vadd.f32 %v2533, %v1762
    %v2550 = vmax.f32 %v2534, 0.0
    %v2551 = vmax.f32 %v2535, 0.0
    %v2552 = vmax.f32 %v2536, 0.0
    %v2553 = vmax.f32 %v2537, 0.0
    %v2554 = vmax.f32 %v2538, 0.0
    %v2555 = vmax.f32 %v2539, 0.0
    %v2556 = vmax.f32 %v2540, 0.0
    %v2557 = vmax.f32 %v2541, 0.0
    %v2558 = vmax.f32 %v2542, 0.0
    %v2559 = vmax.f32 %v2543, 0.0
    %v2560 = vmax.f32 %v2544, 0.0
    %v2561 = vmax.f32 %v2545, 0.0
    %v2562 = vmax.f32 %v2546, 0.0
    %v2563 = vmax.f32 %v2547, 0.0
    %v2564 = vmax.f32 %v2548, 0.0
    %v2565 = vmax.f32 %v2549, 0.0
    %v2566 = vxor.u32 %v2550, 2147483648
    %v2567 = vxor.u32 %v2551, 2147483648
    %v2568 = vxor.u32 %v2552, 2147483648
    %v2569 = vxor.u32 %v2553, 2147483648
    %v2570 = vxor.u32 %v2554, 2147483648
    %v2571 = vxor.u32 %v2555, 2147483648
    %v2572 = vxor.u32 %v2556, 2147483648
    %v2573 = vxor.u32 %v2557, 2147483648
    %v2574 = vxor.u32 %v2558, 2147483648
    %v2575 = vxor.u32 %v2559, 2147483648
    %v2576 = vxor.u32 %v2560, 2147483648
    %v2577 = vxor.u32 %v2561, 2147483648
    %v2578 = vxor.u32 %v2562, 2147483648
    %v2579 = vxor.u32 %v2563, 2147483648
    %v2580 = vxor.u32 %v2564, 2147483648
    %v2581 = vxor.u32 %v2565, 2147483648
    %v2582 = vmul.f32 %v2566, 1.442695
    %v2583 = vpow.pop %v2582
    %v2584 = vmul.f32 %v2567, 1.442695
    %v2585 = vpow.pop %v2584
    %v2586 = vmul.f32 %v2568, 1.442695
    %v2587 = vpow.pop %v2586
    %v2588 = vmul.f32 %v2569, 1.442695
    %v2589 = vpow.pop %v2588
    %v2590 = vmul.f32 %v2570, 1.442695
    %v2591 = vpow.pop %v2590
    %v2592 = vmul.f32 %v2571, 1.442695
    %v2593 = vpow.pop %v2592
    %v2594 = vmul.f32 %v2572, 1.442695
    %v2595 = vpow.pop %v2594
    %v2596 = vmul.f32 %v2573, 1.442695
    %v2597 = vpow.pop %v2596
    %v2598 = vmul.f32 %v2574, 1.442695
    %v2599 = vpow.pop %v2598
    %v2600 = vmul.f32 %v2575, 1.442695
    %v2601 = vpow.pop %v2600
    %v2602 = vmul.f32 %v2576, 1.442695
    %v2603 = vpow.pop %v2602
    %v2604 = vmul.f32 %v2577, 1.442695
    %v2605 = vpow.pop %v2604
    %v2606 = vmul.f32 %v2578, 1.442695
    %v2607 = vpow.pop %v2606
    %v2608 = vmul.f32 %v2579, 1.442695
    %v2609 = vpow.pop %v2608
    %v2610 = vmul.f32 %v2580, 1.442695
    %v2611 = vpow.pop %v2610
    %v2612 = vmul.f32 %v2581, 1.442695
    %v2613 = vpow.pop %v2612
    %v2614 = vadd.f32 %v2583, 1.0
    %v2615 = vadd.f32 %v2585, 1.0
    %v2616 = vadd.f32 %v2587, 1.0
    %v2617 = vadd.f32 %v2589, 1.0
    %v2618 = vadd.f32 %v2591, 1.0
    %v2619 = vadd.f32 %v2593, 1.0
    %v2620 = vadd.f32 %v2595, 1.0
    %v2621 = vadd.f32 %v2597, 1.0
    %v2622 = vadd.f32 %v2599, 1.0
    %v2623 = vadd.f32 %v2601, 1.0
    %v2624 = vadd.f32 %v2603, 1.0
    %v2625 = vadd.f32 %v2605, 1.0
    %v2626 = vadd.f32 %v2607, 1.0
    %v2627 = vadd.f32 %v2609, 1.0
    %v2628 = vadd.f32 %v2611, 1.0
    %v2629 = vadd.f32 %v2613, 1.0
    %v2630 = vrcp.pop %v2614
    %v2631 = vmul.f32 1.0, %v2630
    %v2632 = vrcp.pop %v2615
    %v2633 = vmul.f32 1.0, %v2632
    %v2634 = vrcp.pop %v2616
    %v2635 = vmul.f32 1.0, %v2634
    %v2636 = vrcp.pop %v2617
    %v2637 = vmul.f32 1.0, %v2636
    %v2638 = vrcp.pop %v2618
    %v2639 = vmul.f32 1.0, %v2638
    %v2640 = vrcp.pop %v2619
    %v2641 = vmul.f32 1.0, %v2640
    %v2642 = vrcp.pop %v2620
    %v2643 = vmul.f32 1.0, %v2642
    %v2644 = vrcp.pop %v2621
    %v2645 = vmul.f32 1.0, %v2644
    %v2646 = vrcp.pop %v2622
    %v2647 = vmul.f32 1.0, %v2646
    %v2648 = vrcp.pop %v2623
    %v2649 = vmul.f32 1.0, %v2648
    %v2650 = vrcp.pop %v2624
    %v2651 = vmul.f32 1.0, %v2650
    %v2652 = vrcp.pop %v2625
    %v2653 = vmul.f32 1.0, %v2652
    %v2654 = vrcp.pop %v2626
    %v2655 = vmul.f32 1.0, %v2654
    %v2656 = vrcp.pop %v2627
    %v2657 = vmul.f32 1.0, %v2656
    %v2658 = vrcp.pop %v2628
    %v2659 = vmul.f32 1.0, %v2658
    %v2660 = vrcp.pop %v2629
    %v2661 = vmul.f32 1.0, %v2660
    %v2662 = vmul.f32 %v2342, %v2631
    %v2663 = vmul.f32 %v2343, %v2633
    %v2664 = vmul.f32 %v2344, %v2635
    %v2665 = vmul.f32 %v2345, %v2637
    %v2666 = vmul.f32 %v2346, %v2639
    %v2667 = vmul.f32 %v2347, %v2641
    %v2668 = vmul.f32 %v2348, %v2643
    %v2669 = vmul.f32 %v2349, %v2645
    %v2670 = vmul.f32 %v2350, %v2647
    %v2671 = vmul.f32 %v2351, %v2649
    %v2672 = vmul.f32 %v2352, %v2651
    %v2673 = vmul.f32 %v2353, %v2653
    %v2674 = vmul.f32 %v2354, %v2655
    %v2675 = vmul.f32 %v2355, %v2657
    %v2676 = vmul.f32 %v2356, %v2659
    %v2677 = vmul.f32 %v2357, %v2661
    %2678 = vxpose.xlu0.b32.start [1/16] %v2662, 128
    %2679 = vxpose.xlu0.b32.cont [2/16] %v2663, 128
    %2680 = vxpose.xlu0.b32.cont [3/16] %v2664, 128
    %2681 = vxpose.xlu0.b32.cont [4/16] %v2665, 128
    %2682 = vxpose.xlu0.b32.cont [5/16] %v2666, 128
    %2683 = vxpose.xlu0.b32.cont [6/16] %v2667, 128
    %2684 = vxpose.xlu0.b32.cont [7/16] %v2668, 128
    %2685 = vxpose.xlu0.b32.cont [8/16] %v2669, 128
    %2686 = vxpose.xlu0.b32.cont [9/16] %v2670, 128
    %2687 = vxpose.xlu0.b32.cont [10/16] %v2671, 128
    %2688 = vxpose.xlu0.b32.cont [11/16] %v2672, 128
    %2689 = vxpose.xlu0.b32.cont [12/16] %v2673, 128
    %2690 = vxpose.xlu0.b32.cont [13/16] %v2674, 128
    %2691 = vxpose.xlu0.b32.cont [14/16] %v2675, 128
    %2692 = vxpose.xlu0.b32.cont [15/16] %v2676, 128
    %2693 = vxpose.xlu0.b32.end [16/16] %v2677, 128
    %v2694 = vpop.trf.xlu0
    %v2695 = vpop.trf.xlu0
    %v2696 = vpop.trf.xlu0
    %v2697 = vpop.trf.xlu0
    %v2698 = vpop.trf.xlu0
    %v2699 = vpop.trf.xlu0
    %v2700 = vpop.trf.xlu0
    %v2701 = vpop.trf.xlu0
    %v2702 = vpop.trf.xlu0
    %v2703 = vpop.trf.xlu0
    %v2704 = vpop.trf.xlu0
    %v2705 = vpop.trf.xlu0
    %v2706 = vpop.trf.xlu0
    %v2707 = vpop.trf.xlu0
    %v2708 = vpop.trf.xlu0
    %v2709 = vpop.trf.xlu0
    %s2710 = scalar_lea.vmem [#allocation4], 256
    %2711 = vst [vmem:[%s2710] sm:$0xff] %v2694
    %2712 = vst [vmem:[%s2710 + $0x8] sm:$0xff] %v2695
    %2713 = vst [vmem:[%s2710 + $0x10] sm:$0xff] %v2696
    %2714 = vst [vmem:[%s2710 + $0x18] sm:$0xff] %v2697
    %2715 = vst [vmem:[%s2710 + $0x20] sm:$0xff] %v2698
    %2716 = vst [vmem:[%s2710 + $0x28] sm:$0xff] %v2699
    %2717 = vst [vmem:[%s2710 + $0x30] sm:$0xff] %v2700
    %2718 = vst [vmem:[%s2710 + $0x38] sm:$0xff] %v2701
    %2719 = vst [vmem:[%s2710 + $0x40] sm:$0xff] %v2702
    %2720 = vst [vmem:[%s2710 + $0x48] sm:$0xff] %v2703
    %2721 = vst [vmem:[%s2710 + $0x50] sm:$0xff] %v2704
    %2722 = vst [vmem:[%s2710 + $0x58] sm:$0xff] %v2705
    %2723 = vst [vmem:[%s2710 + $0x60] sm:$0xff] %v2706
    %2724 = vst [vmem:[%s2710 + $0x68] sm:$0xff] %v2707
    %2725 = vst [vmem:[%s2710 + $0x70] sm:$0xff] %v2708
    %2726 = vst [vmem:[%s2710 + $0x78] sm:$0xff] %v2709
    %s2727 = scalar_lea.vmem [#allocation9], 384
    %v2728 = vld [vmem:[%s2727] sm:$0xff]
    %v2729 = vld [vmem:[%s2727 + $0x8] sm:$0xff]
    %v2730 = vld [vmem:[%s2727 + $0x10] sm:$0xff]
    %v2731 = vld [vmem:[%s2727 + $0x18] sm:$0xff]
    %v2732 = vld [vmem:[%s2727 + $0x20] sm:$0xff]
    %v2733 = vld [vmem:[%s2727 + $0x28] sm:$0xff]
    %v2734 = vld [vmem:[%s2727 + $0x30] sm:$0xff]
    %v2735 = vld [vmem:[%s2727 + $0x38] sm:$0xff]
    %v2736 = vld [vmem:[%s2727 + $0x40] sm:$0xff]
    %v2737 = vld [vmem:[%s2727 + $0x48] sm:$0xff]
    %v2738 = vld [vmem:[%s2727 + $0x50] sm:$0xff]
    %v2739 = vld [vmem:[%s2727 + $0x58] sm:$0xff]
    %v2740 = vld [vmem:[%s2727 + $0x60] sm:$0xff]
    %v2741 = vld [vmem:[%s2727 + $0x68] sm:$0xff]
    %v2742 = vld [vmem:[%s2727 + $0x70] sm:$0xff]
    %v2743 = vld [vmem:[%s2727 + $0x78] sm:$0xff]
    %2744 = vmax.xlane.f32.xlu0 %v2728
    %v2745 = vpop.xlane.xlu0 %2744
    %2746 = vmax.xlane.f32.xlu0 %v2729
    %v2747 = vpop.xlane.xlu0 %2746
    %2748 = vmax.xlane.f32.xlu0 %v2730
    %v2749 = vpop.xlane.xlu0 %2748
    %2750 = vmax.xlane.f32.xlu0 %v2731
    %v2751 = vpop.xlane.xlu0 %2750
    %2752 = vmax.xlane.f32.xlu0 %v2732
    %v2753 = vpop.xlane.xlu0 %2752
    %2754 = vmax.xlane.f32.xlu0 %v2733
    %v2755 = vpop.xlane.xlu0 %2754
    %2756 = vmax.xlane.f32.xlu0 %v2734
    %v2757 = vpop.xlane.xlu0 %2756
    %2758 = vmax.xlane.f32.xlu0 %v2735
    %v2759 = vpop.xlane.xlu0 %2758
    %2760 = vmax.xlane.f32.xlu0 %v2736
    %v2761 = vpop.xlane.xlu0 %2760
    %2762 = vmax.xlane.f32.xlu0 %v2737
    %v2763 = vpop.xlane.xlu0 %2762
    %2764 = vmax.xlane.f32.xlu0 %v2738
    %v2765 = vpop.xlane.xlu0 %2764
    %2766 = vmax.xlane.f32.xlu0 %v2739
    %v2767 = vpop.xlane.xlu0 %2766
    %2768 = vmax.xlane.f32.xlu0 %v2740
    %v2769 = vpop.xlane.xlu0 %2768
    %2770 = vmax.xlane.f32.xlu0 %v2741
    %v2771 = vpop.xlane.xlu0 %2770
    %2772 = vmax.xlane.f32.xlu0 %v2742
    %v2773 = vpop.xlane.xlu0 %2772
    %2774 = vmax.xlane.f32.xlu0 %v2743
    %v2775 = vpop.xlane.xlu0 %2774
    %2776 = vadd.xlane.f32.xlu0 %v2728
    %v2777 = vpop.xlane.xlu0 %2776
    %2778 = vadd.xlane.f32.xlu0 %v2729
    %v2779 = vpop.xlane.xlu0 %2778
    %2780 = vadd.xlane.f32.xlu0 %v2730
    %v2781 = vpop.xlane.xlu0 %2780
    %2782 = vadd.xlane.f32.xlu0 %v2731
    %v2783 = vpop.xlane.xlu0 %2782
    %2784 = vadd.xlane.f32.xlu0 %v2732
    %v2785 = vpop.xlane.xlu0 %2784
    %2786 = vadd.xlane.f32.xlu0 %v2733
    %v2787 = vpop.xlane.xlu0 %2786
    %2788 = vadd.xlane.f32.xlu0 %v2734
    %v2789 = vpop.xlane.xlu0 %2788
    %2790 = vadd.xlane.f32.xlu0 %v2735
    %v2791 = vpop.xlane.xlu0 %2790
    %2792 = vadd.xlane.f32.xlu0 %v2736
    %v2793 = vpop.xlane.xlu0 %2792
    %2794 = vadd.xlane.f32.xlu0 %v2737
    %v2795 = vpop.xlane.xlu0 %2794
    %2796 = vadd.xlane.f32.xlu0 %v2738
    %v2797 = vpop.xlane.xlu0 %2796
    %2798 = vadd.xlane.f32.xlu0 %v2739
    %v2799 = vpop.xlane.xlu0 %2798
    %2800 = vadd.xlane.f32.xlu0 %v2740
    %v2801 = vpop.xlane.xlu0 %2800
    %2802 = vadd.xlane.f32.xlu0 %v2741
    %v2803 = vpop.xlane.xlu0 %2802
    %2804 = vadd.xlane.f32.xlu0 %v2742
    %v2805 = vpop.xlane.xlu0 %2804
    %2806 = vadd.xlane.f32.xlu0 %v2743
    %v2807 = vpop.xlane.xlu0 %2806
    %v2808 = vmul.f32 %v2777, %v1644
    %v2809 = vmul.f32 %v2779, %v1644
    %v2810 = vmul.f32 %v2781, %v1644
    %v2811 = vmul.f32 %v2783, %v1644
    %v2812 = vmul.f32 %v2785, %v1644
    %v2813 = vmul.f32 %v2787, %v1644
    %v2814 = vmul.f32 %v2789, %v1644
    %v2815 = vmul.f32 %v2791, %v1644
    %v2816 = vmul.f32 %v2793, %v1644
    %v2817 = vmul.f32 %v2795, %v1644
    %v2818 = vmul.f32 %v2797, %v1644
    %v2819 = vmul.f32 %v2799, %v1644
    %v2820 = vmul.f32 %v2801, %v1644
    %v2821 = vmul.f32 %v2803, %v1644
    %v2822 = vmul.f32 %v2805, %v1644
    %v2823 = vmul.f32 %v2807, %v1644
    %v2824 = vmul.f32 %v1661, %v2745
    %v2825 = vmul.f32 %v1661, %v2747
    %v2826 = vmul.f32 %v1661, %v2749
    %v2827 = vmul.f32 %v1661, %v2751
    %v2828 = vmul.f32 %v1661, %v2753
    %v2829 = vmul.f32 %v1661, %v2755
    %v2830 = vmul.f32 %v1661, %v2757
    %v2831 = vmul.f32 %v1661, %v2759
    %v2832 = vmul.f32 %v1661, %v2761
    %v2833 = vmul.f32 %v1661, %v2763
    %v2834 = vmul.f32 %v1661, %v2765
    %v2835 = vmul.f32 %v1661, %v2767
    %v2836 = vmul.f32 %v1661, %v2769
    %v2837 = vmul.f32 %v1661, %v2771
    %v2838 = vmul.f32 %v1661, %v2773
    %v2839 = vmul.f32 %v1661, %v2775
    %v2840 = vmul.f32 %v1678, %v2808
    %v2841 = vmul.f32 %v1678, %v2809
    %v2842 = vmul.f32 %v1678, %v2810
    %v2843 = vmul.f32 %v1678, %v2811
    %v2844 = vmul.f32 %v1678, %v2812
    %v2845 = vmul.f32 %v1678, %v2813
    %v2846 = vmul.f32 %v1678, %v2814
    %v2847 = vmul.f32 %v1678, %v2815
    %v2848 = vmul.f32 %v1678, %v2816
    %v2849 = vmul.f32 %v1678, %v2817
    %v2850 = vmul.f32 %v1678, %v2818
    %v2851 = vmul.f32 %v1678, %v2819
    %v2852 = vmul.f32 %v1678, %v2820
    %v2853 = vmul.f32 %v1678, %v2821
    %v2854 = vmul.f32 %v1678, %v2822
    %v2855 = vmul.f32 %v1678, %v2823
    %v2856 = vadd.f32 %v2824, %v2840
    %v2857 = vadd.f32 %v2825, %v2841
    %v2858 = vadd.f32 %v2826, %v2842
    %v2859 = vadd.f32 %v2827, %v2843
    %v2860 = vadd.f32 %v2828, %v2844
    %v2861 = vadd.f32 %v2829, %v2845
    %v2862 = vadd.f32 %v2830, %v2846
    %v2863 = vadd.f32 %v2831, %v2847
    %v2864 = vadd.f32 %v2832, %v2848
    %v2865 = vadd.f32 %v2833, %v2849
    %v2866 = vadd.f32 %v2834, %v2850
    %v2867 = vadd.f32 %v2835, %v2851
    %v2868 = vadd.f32 %v2836, %v2852
    %v2869 = vadd.f32 %v2837, %v2853
    %v2870 = vadd.f32 %v2838, %v2854
    %v2871 = vadd.f32 %v2839, %v2855
    %v2872 = vadd.f32 %v2856, %v1711
    %v2873 = vadd.f32 %v2857, %v1711
    %v2874 = vadd.f32 %v2858, %v1711
    %v2875 = vadd.f32 %v2859, %v1711
    %v2876 = vadd.f32 %v2860, %v1711
    %v2877 = vadd.f32 %v2861, %v1711
    %v2878 = vadd.f32 %v2862, %v1711
    %v2879 = vadd.f32 %v2863, %v1711
    %v2880 = vadd.f32 %v2864, %v1711
    %v2881 = vadd.f32 %v2865, %v1711
    %v2882 = vadd.f32 %v2866, %v1711
    %v2883 = vadd.f32 %v2867, %v1711
    %v2884 = vadd.f32 %v2868, %v1711
    %v2885 = vadd.f32 %v2869, %v1711
    %v2886 = vadd.f32 %v2870, %v1711
    %v2887 = vadd.f32 %v2871, %v1711
    %v2888 = vsub.f32 %v2872, %v1728
    %v2889 = vsub.f32 %v2873, %v1728
    %v2890 = vsub.f32 %v2874, %v1728
    %v2891 = vsub.f32 %v2875, %v1728
    %v2892 = vsub.f32 %v2876, %v1728
    %v2893 = vsub.f32 %v2877, %v1728
    %v2894 = vsub.f32 %v2878, %v1728
    %v2895 = vsub.f32 %v2879, %v1728
    %v2896 = vsub.f32 %v2880, %v1728
    %v2897 = vsub.f32 %v2881, %v1728
    %v2898 = vsub.f32 %v2882, %v1728
    %v2899 = vsub.f32 %v2883, %v1728
    %v2900 = vsub.f32 %v2884, %v1728
    %v2901 = vsub.f32 %v2885, %v1728
    %v2902 = vsub.f32 %v2886, %v1728
    %v2903 = vsub.f32 %v2887, %v1728
    %v2904 = vmul.f32 %v2888, %v1745
    %v2905 = vmul.f32 %v2889, %v1745
    %v2906 = vmul.f32 %v2890, %v1745
    %v2907 = vmul.f32 %v2891, %v1745
    %v2908 = vmul.f32 %v2892, %v1745
    %v2909 = vmul.f32 %v2893, %v1745
    %v2910 = vmul.f32 %v2894, %v1745
    %v2911 = vmul.f32 %v2895, %v1745
    %v2912 = vmul.f32 %v2896, %v1745
    %v2913 = vmul.f32 %v2897, %v1745
    %v2914 = vmul.f32 %v2898, %v1745
    %v2915 = vmul.f32 %v2899, %v1745
    %v2916 = vmul.f32 %v2900, %v1745
    %v2917 = vmul.f32 %v2901, %v1745
    %v2918 = vmul.f32 %v2902, %v1745
    %v2919 = vmul.f32 %v2903, %v1745
    %v2920 = vadd.f32 %v2904, %v1762
    %v2921 = vadd.f32 %v2905, %v1762
    %v2922 = vadd.f32 %v2906, %v1762
    %v2923 = vadd.f32 %v2907, %v1762
    %v2924 = vadd.f32 %v2908, %v1762
    %v2925 = vadd.f32 %v2909, %v1762
    %v2926 = vadd.f32 %v2910, %v1762
    %v2927 = vadd.f32 %v2911, %v1762
    %v2928 = vadd.f32 %v2912, %v1762
    %v2929 = vadd.f32 %v2913, %v1762
    %v2930 = vadd.f32 %v2914, %v1762
    %v2931 = vadd.f32 %v2915, %v1762
    %v2932 = vadd.f32 %v2916, %v1762
    %v2933 = vadd.f32 %v2917, %v1762
    %v2934 = vadd.f32 %v2918, %v1762
    %v2935 = vadd.f32 %v2919, %v1762
    %v2936 = vmax.f32 %v2920, 0.0
    %v2937 = vmax.f32 %v2921, 0.0
    %v2938 = vmax.f32 %v2922, 0.0
    %v2939 = vmax.f32 %v2923, 0.0
    %v2940 = vmax.f32 %v2924, 0.0
    %v2941 = vmax.f32 %v2925, 0.0
    %v2942 = vmax.f32 %v2926, 0.0
    %v2943 = vmax.f32 %v2927, 0.0
    %v2944 = vmax.f32 %v2928, 0.0
    %v2945 = vmax.f32 %v2929, 0.0
    %v2946 = vmax.f32 %v2930, 0.0
    %v2947 = vmax.f32 %v2931, 0.0
    %v2948 = vmax.f32 %v2932, 0.0
    %v2949 = vmax.f32 %v2933, 0.0
    %v2950 = vmax.f32 %v2934, 0.0
    %v2951 = vmax.f32 %v2935, 0.0
    %v2952 = vxor.u32 %v2936, 2147483648
    %v2953 = vxor.u32 %v2937, 2147483648
    %v2954 = vxor.u32 %v2938, 2147483648
    %v2955 = vxor.u32 %v2939, 2147483648
    %v2956 = vxor.u32 %v2940, 2147483648
    %v2957 = vxor.u32 %v2941, 2147483648
    %v2958 = vxor.u32 %v2942, 2147483648
    %v2959 = vxor.u32 %v2943, 2147483648
    %v2960 = vxor.u32 %v2944, 2147483648
    %v2961 = vxor.u32 %v2945, 2147483648
    %v2962 = vxor.u32 %v2946, 2147483648
    %v2963 = vxor.u32 %v2947, 2147483648
    %v2964 = vxor.u32 %v2948, 2147483648
    %v2965 = vxor.u32 %v2949, 2147483648
    %v2966 = vxor.u32 %v2950, 2147483648
    %v2967 = vxor.u32 %v2951, 2147483648
    %v2968 = vmul.f32 %v2952, 1.442695
    %v2969 = vpow.pop %v2968
    %v2970 = vmul.f32 %v2953, 1.442695
    %v2971 = vpow.pop %v2970
    %v2972 = vmul.f32 %v2954, 1.442695
    %v2973 = vpow.pop %v2972
    %v2974 = vmul.f32 %v2955, 1.442695
    %v2975 = vpow.pop %v2974
    %v2976 = vmul.f32 %v2956, 1.442695
    %v2977 = vpow.pop %v2976
    %v2978 = vmul.f32 %v2957, 1.442695
    %v2979 = vpow.pop %v2978
    %v2980 = vmul.f32 %v2958, 1.442695
    %v2981 = vpow.pop %v2980
    %v2982 = vmul.f32 %v2959, 1.442695
    %v2983 = vpow.pop %v2982
    %v2984 = vmul.f32 %v2960, 1.442695
    %v2985 = vpow.pop %v2984
    %v2986 = vmul.f32 %v2961, 1.442695
    %v2987 = vpow.pop %v2986
    %v2988 = vmul.f32 %v2962, 1.442695
    %v2989 = vpow.pop %v2988
    %v2990 = vmul.f32 %v2963, 1.442695
    %v2991 = vpow.pop %v2990
    %v2992 = vmul.f32 %v2964, 1.442695
    %v2993 = vpow.pop %v2992
    %v2994 = vmul.f32 %v2965, 1.442695
    %v2995 = vpow.pop %v2994
    %v2996 = vmul.f32 %v2966, 1.442695
    %v2997 = vpow.pop %v2996
    %v2998 = vmul.f32 %v2967, 1.442695
    %v2999 = vpow.pop %v2998
    %v3000 = vadd.f32 %v2969, 1.0
    %v3001 = vadd.f32 %v2971, 1.0
    %v3002 = vadd.f32 %v2973, 1.0
    %v3003 = vadd.f32 %v2975, 1.0
    %v3004 = vadd.f32 %v2977, 1.0
    %v3005 = vadd.f32 %v2979, 1.0
    %v3006 = vadd.f32 %v2981, 1.0
    %v3007 = vadd.f32 %v2983, 1.0
    %v3008 = vadd.f32 %v2985, 1.0
    %v3009 = vadd.f32 %v2987, 1.0
    %v3010 = vadd.f32 %v2989, 1.0
    %v3011 = vadd.f32 %v2991, 1.0
    %v3012 = vadd.f32 %v2993, 1.0
    %v3013 = vadd.f32 %v2995, 1.0
    %v3014 = vadd.f32 %v2997, 1.0
    %v3015 = vadd.f32 %v2999, 1.0
    %v3016 = vrcp.pop %v3000
    %v3017 = vmul.f32 1.0, %v3016
    %v3018 = vrcp.pop %v3001
    %v3019 = vmul.f32 1.0, %v3018
    %v3020 = vrcp.pop %v3002
    %v3021 = vmul.f32 1.0, %v3020
    %v3022 = vrcp.pop %v3003
    %v3023 = vmul.f32 1.0, %v3022
    %v3024 = vrcp.pop %v3004
    %v3025 = vmul.f32 1.0, %v3024
    %v3026 = vrcp.pop %v3005
    %v3027 = vmul.f32 1.0, %v3026
    %v3028 = vrcp.pop %v3006
    %v3029 = vmul.f32 1.0, %v3028
    %v3030 = vrcp.pop %v3007
    %v3031 = vmul.f32 1.0, %v3030
    %v3032 = vrcp.pop %v3008
    %v3033 = vmul.f32 1.0, %v3032
    %v3034 = vrcp.pop %v3009
    %v3035 = vmul.f32 1.0, %v3034
    %v3036 = vrcp.pop %v3010
    %v3037 = vmul.f32 1.0, %v3036
    %v3038 = vrcp.pop %v3011
    %v3039 = vmul.f32 1.0, %v3038
    %v3040 = vrcp.pop %v3012
    %v3041 = vmul.f32 1.0, %v3040
    %v3042 = vrcp.pop %v3013
    %v3043 = vmul.f32 1.0, %v3042
    %v3044 = vrcp.pop %v3014
    %v3045 = vmul.f32 1.0, %v3044
    %v3046 = vrcp.pop %v3015
    %v3047 = vmul.f32 1.0, %v3046
    %v3048 = vmul.f32 %v2728, %v3017
    %v3049 = vmul.f32 %v2729, %v3019
    %v3050 = vmul.f32 %v2730, %v3021
    %v3051 = vmul.f32 %v2731, %v3023
    %v3052 = vmul.f32 %v2732, %v3025
    %v3053 = vmul.f32 %v2733, %v3027
    %v3054 = vmul.f32 %v2734, %v3029
    %v3055 = vmul.f32 %v2735, %v3031
    %v3056 = vmul.f32 %v2736, %v3033
    %v3057 = vmul.f32 %v2737, %v3035
    %v3058 = vmul.f32 %v2738, %v3037
    %v3059 = vmul.f32 %v2739, %v3039
    %v3060 = vmul.f32 %v2740, %v3041
    %v3061 = vmul.f32 %v2741, %v3043
    %v3062 = vmul.f32 %v2742, %v3045
    %v3063 = vmul.f32 %v2743, %v3047
    %3064 = vxpose.xlu0.b32.start [1/16] %v3048, 128
    %3065 = vxpose.xlu0.b32.cont [2/16] %v3049, 128
    %3066 = vxpose.xlu0.b32.cont [3/16] %v3050, 128
    %3067 = vxpose.xlu0.b32.cont [4/16] %v3051, 128
    %3068 = vxpose.xlu0.b32.cont [5/16] %v3052, 128
    %3069 = vxpose.xlu0.b32.cont [6/16] %v3053, 128
    %3070 = vxpose.xlu0.b32.cont [7/16] %v3054, 128
    %3071 = vxpose.xlu0.b32.cont [8/16] %v3055, 128
    %3072 = vxpose.xlu0.b32.cont [9/16] %v3056, 128
    %3073 = vxpose.xlu0.b32.cont [10/16] %v3057, 128
    %3074 = vxpose.xlu0.b32.cont [11/16] %v3058, 128
    %3075 = vxpose.xlu0.b32.cont [12/16] %v3059, 128
    %3076 = vxpose.xlu0.b32.cont [13/16] %v3060, 128
    %3077 = vxpose.xlu0.b32.cont [14/16] %v3061, 128
    %3078 = vxpose.xlu0.b32.cont [15/16] %v3062, 128
    %3079 = vxpose.xlu0.b32.end [16/16] %v3063, 128
    %v3080 = vpop.trf.xlu0
    %v3081 = vpop.trf.xlu0
    %v3082 = vpop.trf.xlu0
    %v3083 = vpop.trf.xlu0
    %v3084 = vpop.trf.xlu0
    %v3085 = vpop.trf.xlu0
    %v3086 = vpop.trf.xlu0
    %v3087 = vpop.trf.xlu0
    %v3088 = vpop.trf.xlu0
    %v3089 = vpop.trf.xlu0
    %v3090 = vpop.trf.xlu0
    %v3091 = vpop.trf.xlu0
    %v3092 = vpop.trf.xlu0
    %v3093 = vpop.trf.xlu0
    %v3094 = vpop.trf.xlu0
    %v3095 = vpop.trf.xlu0
    %s3096 = scalar_lea.vmem [#allocation4], 384
    %3097 = vst [vmem:[%s3096] sm:$0xff] %v3080
    %3098 = vst [vmem:[%s3096 + $0x8] sm:$0xff] %v3081
    %3099 = vst [vmem:[%s3096 + $0x10] sm:$0xff] %v3082
    %3100 = vst [vmem:[%s3096 + $0x18] sm:$0xff] %v3083
    %3101 = vst [vmem:[%s3096 + $0x20] sm:$0xff] %v3084
    %3102 = vst [vmem:[%s3096 + $0x28] sm:$0xff] %v3085
    %3103 = vst [vmem:[%s3096 + $0x30] sm:$0xff] %v3086
    %3104 = vst [vmem:[%s3096 + $0x38] sm:$0xff] %v3087
    %3105 = vst [vmem:[%s3096 + $0x40] sm:$0xff] %v3088
    %3106 = vst [vmem:[%s3096 + $0x48] sm:$0xff] %v3089
    %3107 = vst [vmem:[%s3096 + $0x50] sm:$0xff] %v3090
    %3108 = vst [vmem:[%s3096 + $0x58] sm:$0xff] %v3091
    %3109 = vst [vmem:[%s3096 + $0x60] sm:$0xff] %v3092
    %3110 = vst [vmem:[%s3096 + $0x68] sm:$0xff] %v3093
    %3111 = vst [vmem:[%s3096 + $0x70] sm:$0xff] %v3094
    %3112 = vst [vmem:[%s3096 + $0x78] sm:$0xff] %v3095
    %v3113 = vld [vmem:[#allocation3] sm:$0xff]
    %v3114 = vld [vmem:[#allocation3 + $0x8] sm:$0xff]
    %v3115 = vld [vmem:[#allocation3 + $0x10] sm:$0xff]
    %v3116 = vld [vmem:[#allocation3 + $0x18] sm:$0xff]
    %v3117 = vld [vmem:[#allocation3 + $0x20] sm:$0xff]
    %v3118 = vld [vmem:[#allocation3 + $0x28] sm:$0xff]
    %v3119 = vld [vmem:[#allocation3 + $0x30] sm:$0xff]
    %v3120 = vld [vmem:[#allocation3 + $0x38] sm:$0xff]
    %v3121 = vld [vmem:[#allocation3 + $0x40] sm:$0xff]
    %v3122 = vld [vmem:[#allocation3 + $0x48] sm:$0xff]
    %v3123 = vld [vmem:[#allocation3 + $0x50] sm:$0xff]
    %v3124 = vld [vmem:[#allocation3 + $0x58] sm:$0xff]
    %v3125 = vld [vmem:[#allocation3 + $0x60] sm:$0xff]
    %v3126 = vld [vmem:[#allocation3 + $0x68] sm:$0xff]
    %v3127 = vld [vmem:[#allocation3 + $0x70] sm:$0xff]
    %v3128 = vld [vmem:[#allocation3 + $0x78] sm:$0xff]
    %v3129 = vld [vmem:[#allocation2] sm:$0xff]
    %v3130 = vld [vmem:[#allocation2 + $0x8] sm:$0xff]
    %v3131 = vld [vmem:[#allocation2 + $0x10] sm:$0xff]
    %v3132 = vld [vmem:[#allocation2 + $0x18] sm:$0xff]
    %v3133 = vld [vmem:[#allocation2 + $0x20] sm:$0xff]
    %v3134 = vld [vmem:[#allocation2 + $0x28] sm:$0xff]
    %v3135 = vld [vmem:[#allocation2 + $0x30] sm:$0xff]
    %v3136 = vld [vmem:[#allocation2 + $0x38] sm:$0xff]
    %v3137 = vld [vmem:[#allocation2 + $0x40] sm:$0xff]
    %v3138 = vld [vmem:[#allocation2 + $0x48] sm:$0xff]
    %v3139 = vld [vmem:[#allocation2 + $0x50] sm:$0xff]
    %v3140 = vld [vmem:[#allocation2 + $0x58] sm:$0xff]
    %v3141 = vld [vmem:[#allocation2 + $0x60] sm:$0xff]
    %v3142 = vld [vmem:[#allocation2 + $0x68] sm:$0xff]
    %v3143 = vld [vmem:[#allocation2 + $0x70] sm:$0xff]
    %v3144 = vld [vmem:[#allocation2 + $0x78] sm:$0xff]
    %v3145 = vld [vmem:[#allocation4] sm:$0xff]
    %v3146 = vld [vmem:[#allocation4 + $0x8] sm:$0xff]
    %v3147 = vld [vmem:[#allocation4 + $0x10] sm:$0xff]
    %v3148 = vld [vmem:[#allocation4 + $0x18] sm:$0xff]
    %v3149 = vld [vmem:[#allocation4 + $0x20] sm:$0xff]
    %v3150 = vld [vmem:[#allocation4 + $0x28] sm:$0xff]
    %v3151 = vld [vmem:[#allocation4 + $0x30] sm:$0xff]
    %v3152 = vld [vmem:[#allocation4 + $0x38] sm:$0xff]
    %v3153 = vld [vmem:[#allocation4 + $0x40] sm:$0xff]
    %v3154 = vld [vmem:[#allocation4 + $0x48] sm:$0xff]
    %v3155 = vld [vmem:[#allocation4 + $0x50] sm:$0xff]
    %v3156 = vld [vmem:[#allocation4 + $0x58] sm:$0xff]
    %v3157 = vld [vmem:[#allocation4 + $0x60] sm:$0xff]
    %v3158 = vld [vmem:[#allocation4 + $0x68] sm:$0xff]
    %v3159 = vld [vmem:[#allocation4 + $0x70] sm:$0xff]
    %v3160 = vld [vmem:[#allocation4 + $0x78] sm:$0xff]
    %3161 = vmatprep.subr.mxu0 0.0
    %3162 = vmatpush1.msra.mxu0 %v3129
    %3163 = vmatprep.subr.mxu0 0.0
    %3164 = vmatpush1.msra.mxu0 %v3130
    %3165 = vmatprep.subr.mxu0 0.0
    %3166 = vmatpush1.msra.mxu0 %v3131
    %3167 = vmatprep.subr.mxu0 0.0
    %3168 = vmatpush1.msra.mxu0 %v3132
    %3169 = vmatprep.subr.mxu0 0.0
    %3170 = vmatpush1.msra.mxu0 %v3133
    %3171 = vmatprep.subr.mxu0 0.0
    %3172 = vmatpush1.msra.mxu0 %v3134
    %3173 = vmatprep.subr.mxu0 0.0
    %3174 = vmatpush1.msra.mxu0 %v3135
    %3175 = vmatprep.subr.mxu0 0.0
    %3176 = vmatpush1.msra.mxu0 %v3136
    %3177 = vmatprep.subr.mxu0 0.0
    %3178 = vmatpush1.msra.mxu0 %v3137
    %3179 = vmatprep.subr.mxu0 0.0
    %3180 = vmatpush1.msra.mxu0 %v3138
    %3181 = vmatprep.subr.mxu0 0.0
    %3182 = vmatpush1.msra.mxu0 %v3139
    %3183 = vmatprep.subr.mxu0 0.0
    %3184 = vmatpush1.msra.mxu0 %v3140
    %3185 = vmatprep.subr.mxu0 0.0
    %3186 = vmatpush1.msra.mxu0 %v3141
    %3187 = vmatprep.subr.mxu0 0.0
    %3188 = vmatpush1.msra.mxu0 %v3142
    %3189 = vmatprep.subr.mxu0 0.0
    %3190 = vmatpush1.msra.mxu0 %v3143
    %3191 = vmatprep.subr.mxu0 0.0
    %3192 = vmatpush1.msra.mxu0 %v3144
    %3193 = vmatprep.subr.mxu0 0.0
    %3194 = vmatpush1.msra.mxu0 0.0
    %3195 = vmatprep.subr.mxu0 0.0
    %3196 = vmatpush1.msra.mxu0 0.0
    %3197 = vmatprep.subr.mxu0 0.0
    %3198 = vmatpush1.msra.mxu0 0.0
    %3199 = vmatprep.subr.mxu0 0.0
    %3200 = vmatpush1.msra.mxu0 0.0
    %3201 = vmatprep.subr.mxu0 0.0
    %3202 = vmatpush1.msra.mxu0 0.0
    %3203 = vmatprep.subr.mxu0 0.0
    %3204 = vmatpush1.msra.mxu0 0.0
    %3205 = vmatprep.subr.mxu0 0.0
    %3206 = vmatpush1.msra.mxu0 0.0
    %3207 = vmatprep.subr.mxu0 0.0
    %3208 = vmatpush1.msra.mxu0 0.0
    %3209 = vmatprep.subr.mxu0 0.0
    %3210 = vmatpush1.msra.mxu0 0.0
    %3211 = vmatprep.subr.mxu0 0.0
    %3212 = vmatpush1.msra.mxu0 0.0
    %3213 = vmatprep.subr.mxu0 0.0
    %3214 = vmatpush1.msra.mxu0 0.0
    %3215 = vmatprep.subr.mxu0 0.0
    %3216 = vmatpush1.msra.mxu0 0.0
    %3217 = vmatprep.subr.mxu0 0.0
    %3218 = vmatpush1.msra.mxu0 0.0
    %3219 = vmatprep.subr.mxu0 0.0
    %3220 = vmatpush1.msra.mxu0 0.0
    %3221 = vmatprep.subr.mxu0 0.0
    %3222 = vmatpush1.msra.mxu0 0.0
    %3223 = vmatprep.subr.mxu0 0.0
    %3224 = vmatpush1.msra.mxu0 0.0
    %3225 = vmatprep.mubr.f32.mxu0 0.0
    %3226 = vmatmul.mubr.f32.gmra.mrb[0].mxu0 %v3113
    %v3227 = vpop.f32.mrb[0].mxu0
    %v3228 = vadd.f32 %v3145, %v3227
    %v3229 = vpop.f32.mrb[0].mxu0
    %3230 = vmatprep.mubr.f32.mxu0 0.0
    %3231 = vmatmul.mubr.f32.gmra.mrb[0].mxu0 %v3114
    %v3232 = vpop.f32.mrb[0].mxu0
    %v3233 = vadd.f32 %v3146, %v3232
    %v3234 = vpop.f32.mrb[0].mxu0
    %3235 = vmatprep.mubr.f32.mxu0 0.0
    %3236 = vmatmul.mubr.f32.gmra.mrb[0].mxu0 %v3115
    %v3237 = vpop.f32.mrb[0].mxu0
    %v3238 = vadd.f32 %v3147, %v3237
    %v3239 = vpop.f32.mrb[0].mxu0
    %3240 = vmatprep.mubr.f32.mxu0 0.0
    %3241 = vmatmul.mubr.f32.gmra.mrb[0].mxu0 %v3116
    %v3242 = vpop.f32.mrb[0].mxu0
    %v3243 = vadd.f32 %v3148, %v3242
    %v3244 = vpop.f32.mrb[0].mxu0
    %3245 = vmatprep.mubr.f32.mxu0 0.0
    %3246 = vmatmul.mubr.f32.gmra.mrb[0].mxu0 %v3117
    %v3247 = vpop.f32.mrb[0].mxu0
    %v3248 = vadd.f32 %v3149, %v3247
    %v3249 = vpop.f32.mrb[0].mxu0
    %3250 = vmatprep.mubr.f32.mxu0 0.0
    %3251 = vmatmul.mubr.f32.gmra.mrb[0].mxu0 %v3118
    %v3252 = vpop.f32.mrb[0].mxu0
    %v3253 = vadd.f32 %v3150, %v3252
    %v3254 = vpop.f32.mrb[0].mxu0
    %3255 = vmatprep.mubr.f32.mxu0 0.0
    %3256 = vmatmul.mubr.f32.gmra.mrb[0].mxu0 %v3119
    %v3257 = vpop.f32.mrb[0].mxu0
    %v3258 = vadd.f32 %v3151, %v3257
    %v3259 = vpop.f32.mrb[0].mxu0
    %3260 = vmatprep.mubr.f32.mxu0 0.0
    %3261 = vmatmul.mubr.f32.gmra.mrb[0].mxu0 %v3120
    %v3262 = vpop.f32.mrb[0].mxu0
    %v3263 = vadd.f32 %v3152, %v3262
    %v3264 = vpop.f32.mrb[0].mxu0
    %3265 = vmatprep.mubr.f32.mxu0 0.0
    %3266 = vmatmul.mubr.f32.gmra.mrb[0].mxu0 %v3121
    %v3267 = vpop.f32.mrb[0].mxu0
    %v3268 = vadd.f32 %v3153, %v3267
    %v3269 = vpop.f32.mrb[0].mxu0
    %3270 = vmatprep.mubr.f32.mxu0 0.0
    %3271 = vmatmul.mubr.f32.gmra.mrb[0].mxu0 %v3122
    %v3272 = vpop.f32.mrb[0].mxu0
    %v3273 = vadd.f32 %v3154, %v3272
    %v3274 = vpop.f32.mrb[0].mxu0
    %3275 = vmatprep.mubr.f32.mxu0 0.0
    %3276 = vmatmul.mubr.f32.gmra.mrb[0].mxu0 %v3123
    %v3277 = vpop.f32.mrb[0].mxu0
    %v3278 = vadd.f32 %v3155, %v3277
    %v3279 = vpop.f32.mrb[0].mxu0
    %3280 = vmatprep.mubr.f32.mxu0 0.0
    %3281 = vmatmul.mubr.f32.gmra.mrb[0].mxu0 %v3124
    %v3282 = vpop.f32.mrb[0].mxu0
    %v3283 = vadd.f32 %v3156, %v3282
    %v3284 = vpop.f32.mrb[0].mxu0
    %3285 = vmatprep.mubr.f32.mxu0 0.0
    %3286 = vmatmul.mubr.f32.gmra.mrb[0].mxu0 %v3125
    %v3287 = vpop.f32.mrb[0].mxu0
    %v3288 = vadd.f32 %v3157, %v3287
    %v3289 = vpop.f32.mrb[0].mxu0
    %3290 = vmatprep.mubr.f32.mxu0 0.0
    %3291 = vmatmul.mubr.f32.gmra.mrb[0].mxu0 %v3126
    %v3292 = vpop.f32.mrb[0].mxu0
    %v3293 = vadd.f32 %v3158, %v3292
    %v3294 = vpop.f32.mrb[0].mxu0
    %3295 = vmatprep.mubr.f32.mxu0 0.0
    %3296 = vmatmul.mubr.f32.gmra.mrb[0].mxu0 %v3127
    %v3297 = vpop.f32.mrb[0].mxu0
    %v3298 = vadd.f32 %v3159, %v3297
    %v3299 = vpop.f32.mrb[0].mxu0
    %3300 = vmatprep.mubr.f32.mxu0 0.0
    %3301 = vmatmul.mubr.f32.gmra.mrb[0].mxu0 %v3128
    %v3302 = vpop.f32.mrb[0].mxu0
    %v3303 = vadd.f32 %v3160, %v3302
    %v3304 = vpop.f32.mrb[0].mxu0
    %3305 = vdwg.mxu0
    %3306 = vst [vmem:[#allocation15] sm:$0xff] %v3228
    %3307 = vst [vmem:[#allocation15 + $0x8] sm:$0xff] %v3233
    %3308 = vst [vmem:[#allocation15 + $0x10] sm:$0xff] %v3238
    %3309 = vst [vmem:[#allocation15 + $0x18] sm:$0xff] %v3243
    %3310 = vst [vmem:[#allocation15 + $0x20] sm:$0xff] %v3248
    %3311 = vst [vmem:[#allocation15 + $0x28] sm:$0xff] %v3253
    %3312 = vst [vmem:[#allocation15 + $0x30] sm:$0xff] %v3258
    %3313 = vst [vmem:[#allocation15 + $0x38] sm:$0xff] %v3263
    %3314 = vst [vmem:[#allocation15 + $0x40] sm:$0xff] %v3268
    %3315 = vst [vmem:[#allocation15 + $0x48] sm:$0xff] %v3273
    %3316 = vst [vmem:[#allocation15 + $0x50] sm:$0xff] %v3278
    %3317 = vst [vmem:[#allocation15 + $0x58] sm:$0xff] %v3283
    %3318 = vst [vmem:[#allocation15 + $0x60] sm:$0xff] %v3288
    %3319 = vst [vmem:[#allocation15 + $0x68] sm:$0xff] %v3293
    %3320 = vst [vmem:[#allocation15 + $0x70] sm:$0xff] %v3298
    %3321 = vst [vmem:[#allocation15 + $0x78] sm:$0xff] %v3303
    %s3322 = scalar_lea.vmem [#allocation3], 128
    %v3323 = vld [vmem:[%s3322] sm:$0xff]
    %v3324 = vld [vmem:[%s3322 + $0x8] sm:$0xff]
    %v3325 = vld [vmem:[%s3322 + $0x10] sm:$0xff]
    %v3326 = vld [vmem:[%s3322 + $0x18] sm:$0xff]
    %v3327 = vld [vmem:[%s3322 + $0x20] sm:$0xff]
    %v3328 = vld [vmem:[%s3322 + $0x28] sm:$0xff]
    %v3329 = vld [vmem:[%s3322 + $0x30] sm:$0xff]
    %v3330 = vld [vmem:[%s3322 + $0x38] sm:$0xff]
    %v3331 = vld [vmem:[%s3322 + $0x40] sm:$0xff]
    %v3332 = vld [vmem:[%s3322 + $0x48] sm:$0xff]
    %v3333 = vld [vmem:[%s3322 + $0x50] sm:$0xff]
    %v3334 = vld [vmem:[%s3322 + $0x58] sm:$0xff]
    %v3335 = vld [vmem:[%s3322 + $0x60] sm:$0xff]
    %v3336 = vld [vmem:[%s3322 + $0x68] sm:$0xff]
    %v3337 = vld [vmem:[%s3322 + $0x70] sm:$0xff]
    %v3338 = vld [vmem:[%s3322 + $0x78] sm:$0xff]
    %s3339 = scalar_lea.vmem [#allocation2], 128
    %v3340 = vld [vmem:[%s3339] sm:$0xff]
    %v3341 = vld [vmem:[%s3339 + $0x8] sm:$0xff]
    %v3342 = vld [vmem:[%s3339 + $0x10] sm:$0xff]
    %v3343 = vld [vmem:[%s3339 + $0x18] sm:$0xff]
    %v3344 = vld [vmem:[%s3339 + $0x20] sm:$0xff]
    %v3345 = vld [vmem:[%s3339 + $0x28] sm:$0xff]
    %v3346 = vld [vmem:[%s3339 + $0x30] sm:$0xff]
    %v3347 = vld [vmem:[%s3339 + $0x38] sm:$0xff]
    %v3348 = vld [vmem:[%s3339 + $0x40] sm:$0xff]
    %v3349 = vld [vmem:[%s3339 + $0x48] sm:$0xff]
    %v3350 = vld [vmem:[%s3339 + $0x50] sm:$0xff]
    %v3351 = vld [vmem:[%s3339 + $0x58] sm:$0xff]
    %v3352 = vld [vmem:[%s3339 + $0x60] sm:$0xff]
    %v3353 = vld [vmem:[%s3339 + $0x68] sm:$0xff]
    %v3354 = vld [vmem:[%s3339 + $0x70] sm:$0xff]
    %v3355 = vld [vmem:[%s3339 + $0x78] sm:$0xff]
    %v3356 = vld [vmem:[%s2324] sm:$0xff]
    %v3357 = vld [vmem:[%s2324 + $0x8] sm:$0xff]
    %v3358 = vld [vmem:[%s2324 + $0x10] sm:$0xff]
    %v3359 = vld [vmem:[%s2324 + $0x18] sm:$0xff]
    %v3360 = vld [vmem:[%s2324 + $0x20] sm:$0xff]
    %v3361 = vld [vmem:[%s2324 + $0x28] sm:$0xff]
    %v3362 = vld [vmem:[%s2324 + $0x30] sm:$0xff]
    %v3363 = vld [vmem:[%s2324 + $0x38] sm:$0xff]
    %v3364 = vld [vmem:[%s2324 + $0x40] sm:$0xff]
    %v3365 = vld [vmem:[%s2324 + $0x48] sm:$0xff]
    %v3366 = vld [vmem:[%s2324 + $0x50] sm:$0xff]
    %v3367 = vld [vmem:[%s2324 + $0x58] sm:$0xff]
    %v3368 = vld [vmem:[%s2324 + $0x60] sm:$0xff]
    %v3369 = vld [vmem:[%s2324 + $0x68] sm:$0xff]
    %v3370 = vld [vmem:[%s2324 + $0x70] sm:$0xff]
    %v3371 = vld [vmem:[%s2324 + $0x78] sm:$0xff]
    %3372 = vmatprep.subr.mxu0 0.0
    %3373 = vmatpush1.msra.mxu0 %v3340
    %3374 = vmatprep.subr.mxu0 0.0
    %3375 = vmatpush1.msra.mxu0 %v3341
    %3376 = vmatprep.subr.mxu0 0.0
    %3377 = vmatpush1.msra.mxu0 %v3342
    %3378 = vmatprep.subr.mxu0 0.0
    %3379 = vmatpush1.msra.mxu0 %v3343
    %3380 = vmatprep.subr.mxu0 0.0
    %3381 = vmatpush1.msra.mxu0 %v3344
    %3382 = vmatprep.subr.mxu0 0.0
    %3383 = vmatpush1.msra.mxu0 %v3345
    %3384 = vmatprep.subr.mxu0 0.0
    %3385 = vmatpush1.msra.mxu0 %v3346
    %3386 = vmatprep.subr.mxu0 0.0
    %3387 = vmatpush1.msra.mxu0 %v3347
    %3388 = vmatprep.subr.mxu0 0.0
    %3389 = vmatpush1.msra.mxu0 %v3348
    %3390 = vmatprep.subr.mxu0 0.0
    %3391 = vmatpush1.msra.mxu0 %v3349
    %3392 = vmatprep.subr.mxu0 0.0
    %3393 = vmatpush1.msra.mxu0 %v3350
    %3394 = vmatprep.subr.mxu0 0.0
    %3395 = vmatpush1.msra.mxu0 %v3351
    %3396 = vmatprep.subr.mxu0 0.0
    %3397 = vmatpush1.msra.mxu0 %v3352
    %3398 = vmatprep.subr.mxu0 0.0
    %3399 = vmatpush1.msra.mxu0 %v3353
    %3400 = vmatprep.subr.mxu0 0.0
    %3401 = vmatpush1.msra.mxu0 %v3354
    %3402 = vmatprep.subr.mxu0 0.0
    %3403 = vmatpush1.msra.mxu0 %v3355
    %3404 = vmatprep.subr.mxu0 0.0
    %3405 = vmatpush1.msra.mxu0 0.0
    %3406 = vmatprep.subr.mxu0 0.0
    %3407 = vmatpush1.msra.mxu0 0.0
    %3408 = vmatprep.subr.mxu0 0.0
    %3409 = vmatpush1.msra.mxu0 0.0
    %3410 = vmatprep.subr.mxu0 0.0
    %3411 = vmatpush1.msra.mxu0 0.0
    %3412 = vmatprep.subr.mxu0 0.0
    %3413 = vmatpush1.msra.mxu0 0.0
    %3414 = vmatprep.subr.mxu0 0.0
    %3415 = vmatpush1.msra.mxu0 0.0
    %3416 = vmatprep.subr.mxu0 0.0
    %3417 = vmatpush1.msra.mxu0 0.0
    %3418 = vmatprep.subr.mxu0 0.0
    %3419 = vmatpush1.msra.mxu0 0.0
    %3420 = vmatprep.subr.mxu0 0.0
    %3421 = vmatpush1.msra.mxu0 0.0
    %3422 = vmatprep.subr.mxu0 0.0
    %3423 = vmatpush1.msra.mxu0 0.0
    %3424 = vmatprep.subr.mxu0 0.0
    %3425 = vmatpush1.msra.mxu0 0.0
    %3426 = vmatprep.subr.mxu0 0.0
    %3427 = vmatpush1.msra.mxu0 0.0
    %3428 = vmatprep.subr.mxu0 0.0
    %3429 = vmatpush1.msra.mxu0 0.0
    %3430 = vmatprep.subr.mxu0 0.0
    %3431 = vmatpush1.msra.mxu0 0.0
    %3432 = vmatprep.subr.mxu0 0.0
    %3433 = vmatpush1.msra.mxu0 0.0
    %3434 = vmatprep.subr.mxu0 0.0
    %3435 = vmatpush1.msra.mxu0 0.0
    %3436 = vmatprep.mubr.f32.mxu0 0.0
    %3437 = vmatmul.mubr.f32.gmra.mrb[0].mxu0 %v3323
    %v3438 = vpop.f32.mrb[0].mxu0
    %v3439 = vadd.f32 %v3356, %v3438
    %v3440 = vpop.f32.mrb[0].mxu0
    %3441 = vmatprep.mubr.f32.mxu0 0.0
    %3442 = vmatmul.mubr.f32.gmra.mrb[0].mxu0 %v3324
    %v3443 = vpop.f32.mrb[0].mxu0
    %v3444 = vadd.f32 %v3357, %v3443
    %v3445 = vpop.f32.mrb[0].mxu0
    %3446 = vmatprep.mubr.f32.mxu0 0.0
    %3447 = vmatmul.mubr.f32.gmra.mrb[0].mxu0 %v3325
    %v3448 = vpop.f32.mrb[0].mxu0
    %v3449 = vadd.f32 %v3358, %v3448
    %v3450 = vpop.f32.mrb[0].mxu0
    %3451 = vmatprep.mubr.f32.mxu0 0.0
    %3452 = vmatmul.mubr.f32.gmra.mrb[0].mxu0 %v3326
    %v3453 = vpop.f32.mrb[0].mxu0
    %v3454 = vadd.f32 %v3359, %v3453
    %v3455 = vpop.f32.mrb[0].mxu0
    %3456 = vmatprep.mubr.f32.mxu0 0.0
    %3457 = vmatmul.mubr.f32.gmra.mrb[0].mxu0 %v3327
    %v3458 = vpop.f32.mrb[0].mxu0
    %v3459 = vadd.f32 %v3360, %v3458
    %v3460 = vpop.f32.mrb[0].mxu0
    %3461 = vmatprep.mubr.f32.mxu0 0.0
    %3462 = vmatmul.mubr.f32.gmra.mrb[0].mxu0 %v3328
    %v3463 = vpop.f32.mrb[0].mxu0
    %v3464 = vadd.f32 %v3361, %v3463
    %v3465 = vpop.f32.mrb[0].mxu0
    %3466 = vmatprep.mubr.f32.mxu0 0.0
    %3467 = vmatmul.mubr.f32.gmra.mrb[0].mxu0 %v3329
    %v3468 = vpop.f32.mrb[0].mxu0
    %v3469 = vadd.f32 %v3362, %v3468
    %v3470 = vpop.f32.mrb[0].mxu0
    %3471 = vmatprep.mubr.f32.mxu0 0.0
    %3472 = vmatmul.mubr.f32.gmra.mrb[0].mxu0 %v3330
    %v3473 = vpop.f32.mrb[0].mxu0
    %v3474 = vadd.f32 %v3363, %v3473
    %v3475 = vpop.f32.mrb[0].mxu0
    %3476 = vmatprep.mubr.f32.mxu0 0.0
    %3477 = vmatmul.mubr.f32.gmra.mrb[0].mxu0 %v3331
    %v3478 = vpop.f32.mrb[0].mxu0
    %v3479 = vadd.f32 %v3364, %v3478
    %v3480 = vpop.f32.mrb[0].mxu0
    %3481 = vmatprep.mubr.f32.mxu0 0.0
    %3482 = vmatmul.mubr.f32.gmra.mrb[0].mxu0 %v3332
    %v3483 = vpop.f32.mrb[0].mxu0
    %v3484 = vadd.f32 %v3365, %v3483
    %v3485 = vpop.f32.mrb[0].mxu0
    %3486 = vmatprep.mubr.f32.mxu0 0.0
    %3487 = vmatmul.mubr.f32.gmra.mrb[0].mxu0 %v3333
    %v3488 = vpop.f32.mrb[0].mxu0
    %v3489 = vadd.f32 %v3366, %v3488
    %v3490 = vpop.f32.mrb[0].mxu0
    %3491 = vmatprep.mubr.f32.mxu0 0.0
    %3492 = vmatmul.mubr.f32.gmra.mrb[0].mxu0 %v3334
    %v3493 = vpop.f32.mrb[0].mxu0
    %v3494 = vadd.f32 %v3367, %v3493
    %v3495 = vpop.f32.mrb[0].mxu0
    %3496 = vmatprep.mubr.f32.mxu0 0.0
    %3497 = vmatmul.mubr.f32.gmra.mrb[0].mxu0 %v3335
    %v3498 = vpop.f32.mrb[0].mxu0
    %v3499 = vadd.f32 %v3368, %v3498
    %v3500 = vpop.f32.mrb[0].mxu0
    %3501 = vmatprep.mubr.f32.mxu0 0.0
    %3502 = vmatmul.mubr.f32.gmra.mrb[0].mxu0 %v3336
    %v3503 = vpop.f32.mrb[0].mxu0
    %v3504 = vadd.f32 %v3369, %v3503
    %v3505 = vpop.f32.mrb[0].mxu0
    %3506 = vmatprep.mubr.f32.mxu0 0.0
    %3507 = vmatmul.mubr.f32.gmra.mrb[0].mxu0 %v3337
    %v3508 = vpop.f32.mrb[0].mxu0
    %v3509 = vadd.f32 %v3370, %v3508
    %v3510 = vpop.f32.mrb[0].mxu0
    %3511 = vmatprep.mubr.f32.mxu0 0.0
    %3512 = vmatmul.mubr.f32.gmra.mrb[0].mxu0 %v3338
    %v3513 = vpop.f32.mrb[0].mxu0
    %v3514 = vadd.f32 %v3371, %v3513
    %v3515 = vpop.f32.mrb[0].mxu0
    %3516 = vdwg.mxu0
    %s3517 = scalar_lea.vmem [#allocation15], 128
    %3518 = vst [vmem:[%s3517] sm:$0xff] %v3439
    %3519 = vst [vmem:[%s3517 + $0x8] sm:$0xff] %v3444
    %3520 = vst [vmem:[%s3517 + $0x10] sm:$0xff] %v3449
    %3521 = vst [vmem:[%s3517 + $0x18] sm:$0xff] %v3454
    %3522 = vst [vmem:[%s3517 + $0x20] sm:$0xff] %v3459
    %3523 = vst [vmem:[%s3517 + $0x28] sm:$0xff] %v3464
    %3524 = vst [vmem:[%s3517 + $0x30] sm:$0xff] %v3469
    %3525 = vst [vmem:[%s3517 + $0x38] sm:$0xff] %v3474
    %3526 = vst [vmem:[%s3517 + $0x40] sm:$0xff] %v3479
    %3527 = vst [vmem:[%s3517 + $0x48] sm:$0xff] %v3484
    %3528 = vst [vmem:[%s3517 + $0x50] sm:$0xff] %v3489
    %3529 = vst [vmem:[%s3517 + $0x58] sm:$0xff] %v3494
    %3530 = vst [vmem:[%s3517 + $0x60] sm:$0xff] %v3499
    %3531 = vst [vmem:[%s3517 + $0x68] sm:$0xff] %v3504
    %3532 = vst [vmem:[%s3517 + $0x70] sm:$0xff] %v3509
    %3533 = vst [vmem:[%s3517 + $0x78] sm:$0xff] %v3514
    %s3534 = scalar_lea.vmem [#allocation3], 256
    %v3535 = vld [vmem:[%s3534] sm:$0xff]
    %v3536 = vld [vmem:[%s3534 + $0x8] sm:$0xff]
    %v3537 = vld [vmem:[%s3534 + $0x10] sm:$0xff]
    %v3538 = vld [vmem:[%s3534 + $0x18] sm:$0xff]
    %v3539 = vld [vmem:[%s3534 + $0x20] sm:$0xff]
    %v3540 = vld [vmem:[%s3534 + $0x28] sm:$0xff]
    %v3541 = vld [vmem:[%s3534 + $0x30] sm:$0xff]
    %v3542 = vld [vmem:[%s3534 + $0x38] sm:$0xff]
    %v3543 = vld [vmem:[%s3534 + $0x40] sm:$0xff]
    %v3544 = vld [vmem:[%s3534 + $0x48] sm:$0xff]
    %v3545 = vld [vmem:[%s3534 + $0x50] sm:$0xff]
    %v3546 = vld [vmem:[%s3534 + $0x58] sm:$0xff]
    %v3547 = vld [vmem:[%s3534 + $0x60] sm:$0xff]
    %v3548 = vld [vmem:[%s3534 + $0x68] sm:$0xff]
    %v3549 = vld [vmem:[%s3534 + $0x70] sm:$0xff]
    %v3550 = vld [vmem:[%s3534 + $0x78] sm:$0xff]
    %s3551 = scalar_lea.vmem [#allocation2], 256
    %v3552 = vld [vmem:[%s3551] sm:$0xff]
    %v3553 = vld [vmem:[%s3551 + $0x8] sm:$0xff]
    %v3554 = vld [vmem:[%s3551 + $0x10] sm:$0xff]
    %v3555 = vld [vmem:[%s3551 + $0x18] sm:$0xff]
    %v3556 = vld [vmem:[%s3551 + $0x20] sm:$0xff]
    %v3557 = vld [vmem:[%s3551 + $0x28] sm:$0xff]
    %v3558 = vld [vmem:[%s3551 + $0x30] sm:$0xff]
    %v3559 = vld [vmem:[%s3551 + $0x38] sm:$0xff]
    %v3560 = vld [vmem:[%s3551 + $0x40] sm:$0xff]
    %v3561 = vld [vmem:[%s3551 + $0x48] sm:$0xff]
    %v3562 = vld [vmem:[%s3551 + $0x50] sm:$0xff]
    %v3563 = vld [vmem:[%s3551 + $0x58] sm:$0xff]
    %v3564 = vld [vmem:[%s3551 + $0x60] sm:$0xff]
    %v3565 = vld [vmem:[%s3551 + $0x68] sm:$0xff]
    %v3566 = vld [vmem:[%s3551 + $0x70] sm:$0xff]
    %v3567 = vld [vmem:[%s3551 + $0x78] sm:$0xff]
    %v3568 = vld [vmem:[%s2710] sm:$0xff]
    %v3569 = vld [vmem:[%s2710 + $0x8] sm:$0xff]
    %v3570 = vld [vmem:[%s2710 + $0x10] sm:$0xff]
    %v3571 = vld [vmem:[%s2710 + $0x18] sm:$0xff]
    %v3572 = vld [vmem:[%s2710 + $0x20] sm:$0xff]
    %v3573 = vld [vmem:[%s2710 + $0x28] sm:$0xff]
    %v3574 = vld [vmem:[%s2710 + $0x30] sm:$0xff]
    %v3575 = vld [vmem:[%s2710 + $0x38] sm:$0xff]
    %v3576 = vld [vmem:[%s2710 + $0x40] sm:$0xff]
    %v3577 = vld [vmem:[%s2710 + $0x48] sm:$0xff]
    %v3578 = vld [vmem:[%s2710 + $0x50] sm:$0xff]
    %v3579 = vld [vmem:[%s2710 + $0x58] sm:$0xff]
    %v3580 = vld [vmem:[%s2710 + $0x60] sm:$0xff]
    %v3581 = vld [vmem:[%s2710 + $0x68] sm:$0xff]
    %v3582 = vld [vmem:[%s2710 + $0x70] sm:$0xff]
    %v3583 = vld [vmem:[%s2710 + $0x78] sm:$0xff]
    %3584 = vmatprep.subr.mxu0 0.0
    %3585 = vmatpush1.msra.mxu0 %v3552
    %3586 = vmatprep.subr.mxu0 0.0
    %3587 = vmatpush1.msra.mxu0 %v3553
    %3588 = vmatprep.subr.mxu0 0.0
    %3589 = vmatpush1.msra.mxu0 %v3554
    %3590 = vmatprep.subr.mxu0 0.0
    %3591 = vmatpush1.msra.mxu0 %v3555
    %3592 = vmatprep.subr.mxu0 0.0
    %3593 = vmatpush1.msra.mxu0 %v3556
    %3594 = vmatprep.subr.mxu0 0.0
    %3595 = vmatpush1.msra.mxu0 %v3557
    %3596 = vmatprep.subr.mxu0 0.0
    %3597 = vmatpush1.msra.mxu0 %v3558
    %3598 = vmatprep.subr.mxu0 0.0
    %3599 = vmatpush1.msra.mxu0 %v3559
    %3600 = vmatprep.subr.mxu0 0.0
    %3601 = vmatpush1.msra.mxu0 %v3560
    %3602 = vmatprep.subr.mxu0 0.0
    %3603 = vmatpush1.msra.mxu0 %v3561
    %3604 = vmatprep.subr.mxu0 0.0
    %3605 = vmatpush1.msra.mxu0 %v3562
    %3606 = vmatprep.subr.mxu0 0.0
    %3607 = vmatpush1.msra.mxu0 %v3563
    %3608 = vmatprep.subr.mxu0 0.0
    %3609 = vmatpush1.msra.mxu0 %v3564
    %3610 = vmatprep.subr.mxu0 0.0
    %3611 = vmatpush1.msra.mxu0 %v3565
    %3612 = vmatprep.subr.mxu0 0.0
    %3613 = vmatpush1.msra.mxu0 %v3566
    %3614 = vmatprep.subr.mxu0 0.0
    %3615 = vmatpush1.msra.mxu0 %v3567
    %3616 = vmatprep.subr.mxu0 0.0
    %3617 = vmatpush1.msra.mxu0 0.0
    %3618 = vmatprep.subr.mxu0 0.0
    %3619 = vmatpush1.msra.mxu0 0.0
    %3620 = vmatprep.subr.mxu0 0.0
    %3621 = vmatpush1.msra.mxu0 0.0
    %3622 = vmatprep.subr.mxu0 0.0
    %3623 = vmatpush1.msra.mxu0 0.0
    %3624 = vmatprep.subr.mxu0 0.0
    %3625 = vmatpush1.msra.mxu0 0.0
    %3626 = vmatprep.subr.mxu0 0.0
    %3627 = vmatpush1.msra.mxu0 0.0
    %3628 = vmatprep.subr.mxu0 0.0
    %3629 = vmatpush1.msra.mxu0 0.0
    %3630 = vmatprep.subr.mxu0 0.0
    %3631 = vmatpush1.msra.mxu0 0.0
    %3632 = vmatprep.subr.mxu0 0.0
    %3633 = vmatpush1.msra.mxu0 0.0
    %3634 = vmatprep.subr.mxu0 0.0
    %3635 = vmatpush1.msra.mxu0 0.0
    %3636 = vmatprep.subr.mxu0 0.0
    %3637 = vmatpush1.msra.mxu0 0.0
    %3638 = vmatprep.subr.mxu0 0.0
    %3639 = vmatpush1.msra.mxu0 0.0
    %3640 = vmatprep.subr.mxu0 0.0
    %3641 = vmatpush1.msra.mxu0 0.0
    %3642 = vmatprep.subr.mxu0 0.0
    %3643 = vmatpush1.msra.mxu0 0.0
    %3644 = vmatprep.subr.mxu0 0.0
    %3645 = vmatpush1.msra.mxu0 0.0
    %3646 = vmatprep.subr.mxu0 0.0
    %3647 = vmatpush1.msra.mxu0 0.0
    %3648 = vmatprep.mubr.f32.mxu0 0.0
    %3649 = vmatmul.mubr.f32.gmra.mrb[0].mxu0 %v3535
    %v3650 = vpop.f32.mrb[0].mxu0
    %v3651 = vadd.f32 %v3568, %v3650
    %v3652 = vpop.f32.mrb[0].mxu0
    %3653 = vmatprep.mubr.f32.mxu0 0.0
    %3654 = vmatmul.mubr.f32.gmra.mrb[0].mxu0 %v3536
    %v3655 = vpop.f32.mrb[0].mxu0
    %v3656 = vadd.f32 %v3569, %v3655
    %v3657 = vpop.f32.mrb[0].mxu0
    %3658 = vmatprep.mubr.f32.mxu0 0.0
    %3659 = vmatmul.mubr.f32.gmra.mrb[0].mxu0 %v3537
    %v3660 = vpop.f32.mrb[0].mxu0
    %v3661 = vadd.f32 %v3570, %v3660
    %v3662 = vpop.f32.mrb[0].mxu0
    %3663 = vmatprep.mubr.f32.mxu0 0.0
    %3664 = vmatmul.mubr.f32.gmra.mrb[0].mxu0 %v3538
    %v3665 = vpop.f32.mrb[0].mxu0
    %v3666 = vadd.f32 %v3571, %v3665
    %v3667 = vpop.f32.mrb[0].mxu0
    %3668 = vmatprep.mubr.f32.mxu0 0.0
    %3669 = vmatmul.mubr.f32.gmra.mrb[0].mxu0 %v3539
    %v3670 = vpop.f32.mrb[0].mxu0
    %v3671 = vadd.f32 %v3572, %v3670
    %v3672 = vpop.f32.mrb[0].mxu0
    %3673 = vmatprep.mubr.f32.mxu0 0.0
    %3674 = vmatmul.mubr.f32.gmra.mrb[0].mxu0 %v3540
    %v3675 = vpop.f32.mrb[0].mxu0
    %v3676 = vadd.f32 %v3573, %v3675
    %v3677 = vpop.f32.mrb[0].mxu0
    %3678 = vmatprep.mubr.f32.mxu0 0.0
    %3679 = vmatmul.mubr.f32.gmra.mrb[0].mxu0 %v3541
    %v3680 = vpop.f32.mrb[0].mxu0
    %v3681 = vadd.f32 %v3574, %v3680
    %v3682 = vpop.f32.mrb[0].mxu0
    %3683 = vmatprep.mubr.f32.mxu0 0.0
    %3684 = vmatmul.mubr.f32.gmra.mrb[0].mxu0 %v3542
    %v3685 = vpop.f32.mrb[0].mxu0
    %v3686 = vadd.f32 %v3575, %v3685
    %v3687 = vpop.f32.mrb[0].mxu0
    %3688 = vmatprep.mubr.f32.mxu0 0.0
    %3689 = vmatmul.mubr.f32.gmra.mrb[0].mxu0 %v3543
    %v3690 = vpop.f32.mrb[0].mxu0
    %v3691 = vadd.f32 %v3576, %v3690
    %v3692 = vpop.f32.mrb[0].mxu0
    %3693 = vmatprep.mubr.f32.mxu0 0.0
    %3694 = vmatmul.mubr.f32.gmra.mrb[0].mxu0 %v3544
    %v3695 = vpop.f32.mrb[0].mxu0
    %v3696 = vadd.f32 %v3577, %v3695
    %v3697 = vpop.f32.mrb[0].mxu0
    %3698 = vmatprep.mubr.f32.mxu0 0.0
    %3699 = vmatmul.mubr.f32.gmra.mrb[0].mxu0 %v3545
    %v3700 = vpop.f32.mrb[0].mxu0
    %v3701 = vadd.f32 %v3578, %v3700
    %v3702 = vpop.f32.mrb[0].mxu0
    %3703 = vmatprep.mubr.f32.mxu0 0.0
    %3704 = vmatmul.mubr.f32.gmra.mrb[0].mxu0 %v3546
    %v3705 = vpop.f32.mrb[0].mxu0
    %v3706 = vadd.f32 %v3579, %v3705
    %v3707 = vpop.f32.mrb[0].mxu0
    %3708 = vmatprep.mubr.f32.mxu0 0.0
    %3709 = vmatmul.mubr.f32.gmra.mrb[0].mxu0 %v3547
    %v3710 = vpop.f32.mrb[0].mxu0
    %v3711 = vadd.f32 %v3580, %v3710
    %v3712 = vpop.f32.mrb[0].mxu0
    %3713 = vmatprep.mubr.f32.mxu0 0.0
    %3714 = vmatmul.mubr.f32.gmra.mrb[0].mxu0 %v3548
    %v3715 = vpop.f32.mrb[0].mxu0
    %v3716 = vadd.f32 %v3581, %v3715
    %v3717 = vpop.f32.mrb[0].mxu0
    %3718 = vmatprep.mubr.f32.mxu0 0.0
    %3719 = vmatmul.mubr.f32.gmra.mrb[0].mxu0 %v3549
    %v3720 = vpop.f32.mrb[0].mxu0
    %v3721 = vadd.f32 %v3582, %v3720
    %v3722 = vpop.f32.mrb[0].mxu0
    %3723 = vmatprep.mubr.f32.mxu0 0.0
    %3724 = vmatmul.mubr.f32.gmra.mrb[0].mxu0 %v3550
    %v3725 = vpop.f32.mrb[0].mxu0
    %v3726 = vadd.f32 %v3583, %v3725
    %v3727 = vpop.f32.mrb[0].mxu0
    %3728 = vdwg.mxu0
    %s3729 = scalar_lea.vmem [#allocation15], 256
    %3730 = vst [vmem:[%s3729] sm:$0xff] %v3651
    %3731 = vst [vmem:[%s3729 + $0x8] sm:$0xff] %v3656
    %3732 = vst [vmem:[%s3729 + $0x10] sm:$0xff] %v3661
    %3733 = vst [vmem:[%s3729 + $0x18] sm:$0xff] %v3666
    %3734 = vst [vmem:[%s3729 + $0x20] sm:$0xff] %v3671
    %3735 = vst [vmem:[%s3729 + $0x28] sm:$0xff] %v3676
    %3736 = vst [vmem:[%s3729 + $0x30] sm:$0xff] %v3681
    %3737 = vst [vmem:[%s3729 + $0x38] sm:$0xff] %v3686
    %3738 = vst [vmem:[%s3729 + $0x40] sm:$0xff] %v3691
    %3739 = vst [vmem:[%s3729 + $0x48] sm:$0xff] %v3696
    %3740 = vst [vmem:[%s3729 + $0x50] sm:$0xff] %v3701
    %3741 = vst [vmem:[%s3729 + $0x58] sm:$0xff] %v3706
    %3742 = vst [vmem:[%s3729 + $0x60] sm:$0xff] %v3711
    %3743 = vst [vmem:[%s3729 + $0x68] sm:$0xff] %v3716
    %3744 = vst [vmem:[%s3729 + $0x70] sm:$0xff] %v3721
    %3745 = vst [vmem:[%s3729 + $0x78] sm:$0xff] %v3726
    %s3746 = scalar_lea.vmem [#allocation3], 384
    %v3747 = vld [vmem:[%s3746] sm:$0xff]
    %v3748 = vld [vmem:[%s3746 + $0x8] sm:$0xff]
    %v3749 = vld [vmem:[%s3746 + $0x10] sm:$0xff]
    %v3750 = vld [vmem:[%s3746 + $0x18] sm:$0xff]
    %v3751 = vld [vmem:[%s3746 + $0x20] sm:$0xff]
    %v3752 = vld [vmem:[%s3746 + $0x28] sm:$0xff]
    %v3753 = vld [vmem:[%s3746 + $0x30] sm:$0xff]
    %v3754 = vld [vmem:[%s3746 + $0x38] sm:$0xff]
    %v3755 = vld [vmem:[%s3746 + $0x40] sm:$0xff]
    %v3756 = vld [vmem:[%s3746 + $0x48] sm:$0xff]
    %v3757 = vld [vmem:[%s3746 + $0x50] sm:$0xff]
    %v3758 = vld [vmem:[%s3746 + $0x58] sm:$0xff]
    %v3759 = vld [vmem:[%s3746 + $0x60] sm:$0xff]
    %v3760 = vld [vmem:[%s3746 + $0x68] sm:$0xff]
    %v3761 = vld [vmem:[%s3746 + $0x70] sm:$0xff]
    %v3762 = vld [vmem:[%s3746 + $0x78] sm:$0xff]
    %s3763 = scalar_lea.vmem [#allocation2], 384
    %v3764 = vld [vmem:[%s3763] sm:$0xff]
    %v3765 = vld [vmem:[%s3763 + $0x8] sm:$0xff]
    %v3766 = vld [vmem:[%s3763 + $0x10] sm:$0xff]
    %v3767 = vld [vmem:[%s3763 + $0x18] sm:$0xff]
    %v3768 = vld [vmem:[%s3763 + $0x20] sm:$0xff]
    %v3769 = vld [vmem:[%s3763 + $0x28] sm:$0xff]
    %v3770 = vld [vmem:[%s3763 + $0x30] sm:$0xff]
    %v3771 = vld [vmem:[%s3763 + $0x38] sm:$0xff]
    %v3772 = vld [vmem:[%s3763 + $0x40] sm:$0xff]
    %v3773 = vld [vmem:[%s3763 + $0x48] sm:$0xff]
    %v3774 = vld [vmem:[%s3763 + $0x50] sm:$0xff]
    %v3775 = vld [vmem:[%s3763 + $0x58] sm:$0xff]
    %v3776 = vld [vmem:[%s3763 + $0x60] sm:$0xff]
    %v3777 = vld [vmem:[%s3763 + $0x68] sm:$0xff]
    %v3778 = vld [vmem:[%s3763 + $0x70] sm:$0xff]
    %v3779 = vld [vmem:[%s3763 + $0x78] sm:$0xff]
    %v3780 = vld [vmem:[%s3096] sm:$0xff]
    %v3781 = vld [vmem:[%s3096 + $0x8] sm:$0xff]
    %v3782 = vld [vmem:[%s3096 + $0x10] sm:$0xff]
    %v3783 = vld [vmem:[%s3096 + $0x18] sm:$0xff]
    %v3784 = vld [vmem:[%s3096 + $0x20] sm:$0xff]
    %v3785 = vld [vmem:[%s3096 + $0x28] sm:$0xff]
    %v3786 = vld [vmem:[%s3096 + $0x30] sm:$0xff]
    %v3787 = vld [vmem:[%s3096 + $0x38] sm:$0xff]
    %v3788 = vld [vmem:[%s3096 + $0x40] sm:$0xff]
    %v3789 = vld [vmem:[%s3096 + $0x48] sm:$0xff]
    %v3790 = vld [vmem:[%s3096 + $0x50] sm:$0xff]
    %v3791 = vld [vmem:[%s3096 + $0x58] sm:$0xff]
    %v3792 = vld [vmem:[%s3096 + $0x60] sm:$0xff]
    %v3793 = vld [vmem:[%s3096 + $0x68] sm:$0xff]
    %v3794 = vld [vmem:[%s3096 + $0x70] sm:$0xff]
    %v3795 = vld [vmem:[%s3096 + $0x78] sm:$0xff]
    %3796 = vmatprep.subr.mxu0 0.0
    %3797 = vmatpush1.msra.mxu0 %v3764
    %3798 = vmatprep.subr.mxu0 0.0
    %3799 = vmatpush1.msra.mxu0 %v3765
    %3800 = vmatprep.subr.mxu0 0.0
    %3801 = vmatpush1.msra.mxu0 %v3766
    %3802 = vmatprep.subr.mxu0 0.0
    %3803 = vmatpush1.msra.mxu0 %v3767
    %3804 = vmatprep.subr.mxu0 0.0
    %3805 = vmatpush1.msra.mxu0 %v3768
    %3806 = vmatprep.subr.mxu0 0.0
    %3807 = vmatpush1.msra.mxu0 %v3769
    %3808 = vmatprep.subr.mxu0 0.0
    %3809 = vmatpush1.msra.mxu0 %v3770
    %3810 = vmatprep.subr.mxu0 0.0
    %3811 = vmatpush1.msra.mxu0 %v3771
    %3812 = vmatprep.subr.mxu0 0.0
    %3813 = vmatpush1.msra.mxu0 %v3772
    %3814 = vmatprep.subr.mxu0 0.0
    %3815 = vmatpush1.msra.mxu0 %v3773
    %3816 = vmatprep.subr.mxu0 0.0
    %3817 = vmatpush1.msra.mxu0 %v3774
    %3818 = vmatprep.subr.mxu0 0.0
    %3819 = vmatpush1.msra.mxu0 %v3775
    %3820 = vmatprep.subr.mxu0 0.0
    %3821 = vmatpush1.msra.mxu0 %v3776
    %3822 = vmatprep.subr.mxu0 0.0
    %3823 = vmatpush1.msra.mxu0 %v3777
    %3824 = vmatprep.subr.mxu0 0.0
    %3825 = vmatpush1.msra.mxu0 %v3778
    %3826 = vmatprep.subr.mxu0 0.0
    %3827 = vmatpush1.msra.mxu0 %v3779
    %3828 = vmatprep.subr.mxu0 0.0
    %3829 = vmatpush1.msra.mxu0 0.0
    %3830 = vmatprep.subr.mxu0 0.0
    %3831 = vmatpush1.msra.mxu0 0.0
    %3832 = vmatprep.subr.mxu0 0.0
    %3833 = vmatpush1.msra.mxu0 0.0
    %3834 = vmatprep.subr.mxu0 0.0
    %3835 = vmatpush1.msra.mxu0 0.0
    %3836 = vmatprep.subr.mxu0 0.0
    %3837 = vmatpush1.msra.mxu0 0.0
    %3838 = vmatprep.subr.mxu0 0.0
    %3839 = vmatpush1.msra.mxu0 0.0
    %3840 = vmatprep.subr.mxu0 0.0
    %3841 = vmatpush1.msra.mxu0 0.0
    %3842 = vmatprep.subr.mxu0 0.0
    %3843 = vmatpush1.msra.mxu0 0.0
    %3844 = vmatprep.subr.mxu0 0.0
    %3845 = vmatpush1.msra.mxu0 0.0
    %3846 = vmatprep.subr.mxu0 0.0
    %3847 = vmatpush1.msra.mxu0 0.0
    %3848 = vmatprep.subr.mxu0 0.0
    %3849 = vmatpush1.msra.mxu0 0.0
    %3850 = vmatprep.subr.mxu0 0.0
    %3851 = vmatpush1.msra.mxu0 0.0
    %3852 = vmatprep.subr.mxu0 0.0
    %3853 = vmatpush1.msra.mxu0 0.0
    %3854 = vmatprep.subr.mxu0 0.0
    %3855 = vmatpush1.msra.mxu0 0.0
    %3856 = vmatprep.subr.mxu0 0.0
    %3857 = vmatpush1.msra.mxu0 0.0
    %3858 = vmatprep.subr.mxu0 0.0
    %3859 = vmatpush1.msra.mxu0 0.0
    %3860 = vmatprep.mubr.f32.mxu0 0.0
    %3861 = vmatmul.mubr.f32.gmra.mrb[0].mxu0 %v3747
    %v3862 = vpop.f32.mrb[0].mxu0
    %v3863 = vadd.f32 %v3780, %v3862
    %v3864 = vpop.f32.mrb[0].mxu0
    %3865 = vmatprep.mubr.f32.mxu0 0.0
    %3866 = vmatmul.mubr.f32.gmra.mrb[0].mxu0 %v3748
    %v3867 = vpop.f32.mrb[0].mxu0
    %v3868 = vadd.f32 %v3781, %v3867
    %v3869 = vpop.f32.mrb[0].mxu0
    %3870 = vmatprep.mubr.f32.mxu0 0.0
    %3871 = vmatmul.mubr.f32.gmra.mrb[0].mxu0 %v3749
    %v3872 = vpop.f32.mrb[0].mxu0
    %v3873 = vadd.f32 %v3782, %v3872
    %v3874 = vpop.f32.mrb[0].mxu0
    %3875 = vmatprep.mubr.f32.mxu0 0.0
    %3876 = vmatmul.mubr.f32.gmra.mrb[0].mxu0 %v3750
    %v3877 = vpop.f32.mrb[0].mxu0
    %v3878 = vadd.f32 %v3783, %v3877
    %v3879 = vpop.f32.mrb[0].mxu0
    %3880 = vmatprep.mubr.f32.mxu0 0.0
    %3881 = vmatmul.mubr.f32.gmra.mrb[0].mxu0 %v3751
    %v3882 = vpop.f32.mrb[0].mxu0
    %v3883 = vadd.f32 %v3784, %v3882
    %v3884 = vpop.f32.mrb[0].mxu0
    %3885 = vmatprep.mubr.f32.mxu0 0.0
    %3886 = vmatmul.mubr.f32.gmra.mrb[0].mxu0 %v3752
    %v3887 = vpop.f32.mrb[0].mxu0
    %v3888 = vadd.f32 %v3785, %v3887
    %v3889 = vpop.f32.mrb[0].mxu0
    %3890 = vmatprep.mubr.f32.mxu0 0.0
    %3891 = vmatmul.mubr.f32.gmra.mrb[0].mxu0 %v3753
    %v3892 = vpop.f32.mrb[0].mxu0
    %v3893 = vadd.f32 %v3786, %v3892
    %v3894 = vpop.f32.mrb[0].mxu0
    %3895 = vmatprep.mubr.f32.mxu0 0.0
    %3896 = vmatmul.mubr.f32.gmra.mrb[0].mxu0 %v3754
    %v3897 = vpop.f32.mrb[0].mxu0
    %v3898 = vadd.f32 %v3787, %v3897
    %v3899 = vpop.f32.mrb[0].mxu0
    %3900 = vmatprep.mubr.f32.mxu0 0.0
    %3901 = vmatmul.mubr.f32.gmra.mrb[0].mxu0 %v3755
    %v3902 = vpop.f32.mrb[0].mxu0
    %v3903 = vadd.f32 %v3788, %v3902
    %v3904 = vpop.f32.mrb[0].mxu0
    %3905 = vmatprep.mubr.f32.mxu0 0.0
    %3906 = vmatmul.mubr.f32.gmra.mrb[0].mxu0 %v3756
    %v3907 = vpop.f32.mrb[0].mxu0
    %v3908 = vadd.f32 %v3789, %v3907
    %v3909 = vpop.f32.mrb[0].mxu0
    %3910 = vmatprep.mubr.f32.mxu0 0.0
    %3911 = vmatmul.mubr.f32.gmra.mrb[0].mxu0 %v3757
    %v3912 = vpop.f32.mrb[0].mxu0
    %v3913 = vadd.f32 %v3790, %v3912
    %v3914 = vpop.f32.mrb[0].mxu0
    %3915 = vmatprep.mubr.f32.mxu0 0.0
    %3916 = vmatmul.mubr.f32.gmra.mrb[0].mxu0 %v3758
    %v3917 = vpop.f32.mrb[0].mxu0
    %v3918 = vadd.f32 %v3791, %v3917
    %v3919 = vpop.f32.mrb[0].mxu0
    %3920 = vmatprep.mubr.f32.mxu0 0.0
    %3921 = vmatmul.mubr.f32.gmra.mrb[0].mxu0 %v3759
    %v3922 = vpop.f32.mrb[0].mxu0
    %v3923 = vadd.f32 %v3792, %v3922
    %v3924 = vpop.f32.mrb[0].mxu0
    %3925 = vmatprep.mubr.f32.mxu0 0.0
    %3926 = vmatmul.mubr.f32.gmra.mrb[0].mxu0 %v3760
    %v3927 = vpop.f32.mrb[0].mxu0
    %v3928 = vadd.f32 %v3793, %v3927
    %v3929 = vpop.f32.mrb[0].mxu0
    %3930 = vmatprep.mubr.f32.mxu0 0.0
    %3931 = vmatmul.mubr.f32.gmra.mrb[0].mxu0 %v3761
    %v3932 = vpop.f32.mrb[0].mxu0
    %v3933 = vadd.f32 %v3794, %v3932
    %v3934 = vpop.f32.mrb[0].mxu0
    %3935 = vmatprep.mubr.f32.mxu0 0.0
    %3936 = vmatmul.mubr.f32.gmra.mrb[0].mxu0 %v3762
    %v3937 = vpop.f32.mrb[0].mxu0
    %v3938 = vadd.f32 %v3795, %v3937
    %v3939 = vpop.f32.mrb[0].mxu0
    %3940 = vdwg.mxu0
    %s3941 = scalar_lea.vmem [#allocation15], 384
    %3942 = vst [vmem:[%s3941] sm:$0xff] %v3863
    %3943 = vst [vmem:[%s3941 + $0x8] sm:$0xff] %v3868
    %3944 = vst [vmem:[%s3941 + $0x10] sm:$0xff] %v3873
    %3945 = vst [vmem:[%s3941 + $0x18] sm:$0xff] %v3878
    %3946 = vst [vmem:[%s3941 + $0x20] sm:$0xff] %v3883
    %3947 = vst [vmem:[%s3941 + $0x28] sm:$0xff] %v3888
    %3948 = vst [vmem:[%s3941 + $0x30] sm:$0xff] %v3893
    %3949 = vst [vmem:[%s3941 + $0x38] sm:$0xff] %v3898
    %3950 = vst [vmem:[%s3941 + $0x40] sm:$0xff] %v3903
    %3951 = vst [vmem:[%s3941 + $0x48] sm:$0xff] %v3908
    %3952 = vst [vmem:[%s3941 + $0x50] sm:$0xff] %v3913
    %3953 = vst [vmem:[%s3941 + $0x58] sm:$0xff] %v3918
    %3954 = vst [vmem:[%s3941 + $0x60] sm:$0xff] %v3923
    %3955 = vst [vmem:[%s3941 + $0x68] sm:$0xff] %v3928
    %3956 = vst [vmem:[%s3941 + $0x70] sm:$0xff] %v3933
    %3957 = vst [vmem:[%s3941 + $0x78] sm:$0xff] %v3938
    // Predicated region
    $region50: #{tpu_custom_call.1} parent=1 // pred_check
      _
    $region51: #{tpu_custom_call.1} parent=1 // pred_check_branch
      %3959 = sbr.rel (0) target = $region53
    $region52: #{tpu_custom_call.1} parent=1 // pred_region
      %s3961 = ssub.s32 8192, 8192
      %3962 = vsyncadd [#allocation7], %s3961
      %s3963 = sshll.u32 [#allocation15], 4
      %s3964 = int_to_ptr.vmem [resolvable:$true] %s3963
      %3969 = dma.vmem_to_hbm [thread:$0]  %s3964, 8192, %s7, [#allocation7], 128, 128, 8
    $region53: #{tpu_custom_call.1} parent=1 // pred_fallthru
      _
    // Predicated region
    $region54: #{tpu_custom_call.1} parent=1 // pred_check
      _
    $region55: #{tpu_custom_call.1} parent=1 // pred_check_branch
      %3971 = sbr.rel (0) target = $region57
    $region56: #{tpu_custom_call.1} parent=1 // pred_region
      %3972 = dma.done [#allocation7], 8192
    $region57: #{tpu_custom_call.1} parent=1 // pred_fallthru
      _
    %3973 = vsyncpa [#allocation6], 1
    %3974 = vsyncpa [#allocation10], 1
    %3975 = vsyncpa [#allocation13], 1
    %3976 = vsyncpa [#allocation7], 1
    %3977 = vsyncpa [#allocation8], 1

</llo_original>
